<compile_context>
chip_gen: v6e
topology: v6e:2x2x1
jax: 0.10.0
libtpu: 0.0.40
codegen_flags: <defaults>
</compile_context>

<pallas_src>
import math
from functools import partial

import jax
import jax.numpy as jnp
from jax import lax
from jax.experimental import pallas as pl
from jax.experimental.pallas import tpu as pltpu


def _round_up(x, m):
    return (x + m - 1) // m * m


def _pick_time_chunk(T, max_chunk=128):
    """Largest divisor of T that is <= max_chunk (grid iterates T // tc chunks)."""
    for c in range(min(T, max_chunk), 0, -1):
        if T % c == 0:
            return c
    return T


def _pick_unroll(tc, max_unroll=8):
    for u in range(min(tc, max_unroll), 0, -1):
        if tc % u == 0:
            return u
    return 1


# ----------------------------------------------------------------------------
# Pallas kernel: one GRU layer, one (batch_tile, time_chunk) grid cell.
# ----------------------------------------------------------------------------
def _gru_layer_kernel(*refs, hp: int, is_last: bool, unroll: int):
    """
    refs (intermediate layer):
      x_ref    : (tc, bt, D_in)  time-major input chunk
      wih_ref  : (D_in, 3*hp)    transposed, H-padded weight_ih (gate order r,z,n)
      whh_ref  : (hp, 3*hp)      transposed, H-padded weight_hh
      bfold_ref: (1, 3*hp)       b_ih + [b_hr, b_hz, 0]  (folded into projection)
      bhn_ref  : (1, hp)         b_hn (must stay inside r * (.))
      y_ref    : (tc, bt, hp)    hidden states for this chunk (output)
      h_scr    : (bt, hp) f32    hidden state carried across time chunks
      gi_scr   : (tc, bt, 3*hp)  per-chunk input projection (scratch)
    refs (last layer): y_ref is replaced by
      wlin_ref : (hp, O), blin_ref : (1, O), o_ref : (bt, O)
    """
    if is_last:
        (x_ref, wih_ref, whh_ref, bfold_ref, bhn_ref,
         wlin_ref, blin_ref, o_ref, h_scr, gi_scr) = refs
    else:
        (x_ref, wih_ref, whh_ref, bfold_ref, bhn_ref,
         y_ref, h_scr, gi_scr) = refs

    tc, bt, d_in = x_ref.shape

    # Zero-init the carried hidden state at the first time chunk of each batch
    # tile (matches the torch.zeros initial hidden state).
    @pl.when(pl.program_id(1) == 0)
    def _():
        h_scr[...] = jnp.zeros_like(h_scr)

    # ---- Hoisted input projection: one MXU matmul for the whole chunk ------
    x2d = x_ref[...].reshape(tc * bt, d_in)
    gi = jnp.dot(x2d, wih_ref[...], preferred_element_type=jnp.float32)
    gi_scr[...] = (gi + bfold_ref[...]).reshape(tc, bt, 3 * hp)

    # Hoist the (1, hp) -> (bt, hp) bias broadcast out of the serial loop.
    bhn = jnp.broadcast_to(bhn_ref[...], (bt, hp))

    def step(t, h):
        gi_t = gi_scr[t]                                          # (bt, 3*hp)
        gh = jnp.dot(h, whh_ref[...], preferred_element_type=jnp.float32)
        r = jax.nn.sigmoid(gi_t[:, 0:hp] + gh[:, 0:hp])
        z = jax.nn.sigmoid(gi_t[:, hp:2 * hp] + gh[:, hp:2 * hp])
        n = jnp.tanh(gi_t[:, 2 * hp:] + r * (gh[:, 2 * hp:] + bhn))
        h_new = n + z * (h - n)                  # == (1 - z) * n + z * h
        if not is_last:
            y_ref[t] = h_new.astype(y_ref.dtype)
        return h_new

    h_final = lax.fori_loop(0, tc, step, h_scr[...], unroll=unroll)
    h_scr[...] = h_final

    if is_last:
        # Fused Linear head: only on the final time chunk; the last layer's
        # full hidden-state sequence never hits HBM.
        @pl.when(pl.program_id(1) == pl.num_programs(1) - 1)
        def _():
            o = jnp.dot(h_final, wlin_ref[...], preferred_element_type=jnp.float32)
            o_ref[...] = (o + blin_ref[...]).astype(o_ref.dtype)


# ----------------------------------------------------------------------------
# Per-layer pallas_call wrapper
# ----------------------------------------------------------------------------
def _gru_layer(seq_tm, wih_t, whh_t, bfold, bhn, *, hp, tc, bt, unroll,
               wlin=None, blin=None):
    """seq_tm: (T, B_pad, D_in) time-major.

    Returns (T, B_pad, hp) hidden-state sequence, or (B_pad, O) if this is the
    last layer (fused Linear head)."""
    T, B_pad, d_in = seq_tm.shape
    nb, nt = B_pad // bt, T // tc
    is_last = wlin is not None

    in_specs = [
        pl.BlockSpec((tc, bt, d_in), lambda b, t: (t, b, 0)),
        pl.BlockSpec((d_in, 3 * hp), lambda b, t: (0, 0)),
        pl.BlockSpec((hp, 3 * hp), lambda b, t: (0, 0)),
        pl.BlockSpec((1, 3 * hp), lambda b, t: (0, 0)),
        pl.BlockSpec((1, hp), lambda b, t: (0, 0)),
    ]
    inputs = [seq_tm, wih_t, whh_t, bfold, bhn]

    if is_last:
        out_dim = wlin.shape[1]
        in_specs += [pl.BlockSpec((hp, out_dim), lambda b, t: (0, 0)),
                     pl.BlockSpec((1, out_dim), lambda b, t: (0, 0))]
        inputs += [wlin, blin]
        out_shape = jax.ShapeDtypeStruct((B_pad, out_dim), jnp.float32)
        out_specs = pl.BlockSpec((bt, out_dim), lambda b, t: (b, 0))
    else:
        out_shape = jax.ShapeDtypeStruct((T, B_pad, hp), jnp.float32)
        out_specs = pl.BlockSpec((tc, bt, hp), lambda b, t: (t, b, 0))

    return pl.pallas_call(
        partial(_gru_layer_kernel, hp=hp, is_last=is_last, unroll=unroll),
        grid=(nb, nt),
        in_specs=in_specs,
        out_specs=out_specs,
        out_shape=out_shape,
        scratch_shapes=[
            pltpu.VMEM((bt, hp), jnp.float32),          # carried hidden state
            pltpu.VMEM((tc, bt, 3 * hp), jnp.float32),  # per-chunk projection
        ],
        compiler_params=pltpu.CompilerParams(
            # Batch tiles are independent (shardable across v7x's two TCs);
            # the time axis carries the recurrence -> "arbitrary".
            dimension_semantics=("parallel", "arbitrary"),
            vmem_limit_bytes=32 * 1024 * 1024,
        ),
    )(*inputs)


# ----------------------------------------------------------------------------
# Weight preparation (PyTorch layout -> padded, transposed kernel operands)
# ----------------------------------------------------------------------------
def _prep_layer_weights(w_ih, w_hh, b_ih, b_hh, H, hp, pad_in):
    """Zero-pad each gate block from H to hp and return transposed,
    gate-concatenated operands (lane-aligned gate slabs)."""
    d_in = w_ih.shape[1]
    dh = hp - H
    w_ih3 = jnp.pad(w_ih.reshape(3, H, d_in), ((0, 0), (0, dh), (0, 0)))
    if pad_in:  # hidden layers consume the previous layer's hp-wide output
        w_ih3 = jnp.pad(w_ih3, ((0, 0), (0, 0), (0, dh)))
        d_in = hp
    w_hh3 = jnp.pad(w_hh.reshape(3, H, H), ((0, 0), (0, dh), (0, dh)))
    b_ih3 = jnp.pad(b_ih.reshape(3, H), ((0, 0), (0, dh)))
    b_hh3 = jnp.pad(b_hh.reshape(3, H), ((0, 0), (0, dh)))

    wih_t = w_ih3.reshape(3 * hp, d_in).T          # (D_in, 3*hp)
    whh_t = w_hh3.reshape(3 * hp, hp).T            # (hp, 3*hp)
    # Fold b_ih (all gates) and the r/z parts of b_hh into the projection bias.
    bfold = jnp.concatenate(
        [b_ih3[0] + b_hh3[0], b_ih3[1] + b_hh3[1], b_ih3[2]]).reshape(1, 3 * hp)
    bhn = b_hh3[2].reshape(1, hp)
    return wih_t, whh_t, bfold, bhn


# ----------------------------------------------------------------------------
# Full forward pass (equivalent of GRU.forward)
# ----------------------------------------------------------------------------
@partial(jax.jit, static_argnames=("hidden_dim", "num_layers"))
def gru_forward(x, params, hidden_dim, num_layers):
    """Multi-layer GRU (zero initial state, batch_first), take the top layer's
    last timestep, apply the Linear head."""
    B, T, _ = x.shape
    H = hidden_dim
    hp = _round_up(H, 128)           # lane-aligned hidden width
    B_pad = _round_up(B, 8)          # full sublanes
    tc = _pick_time_chunk(T)         # pipelined time chunk
    bt = B_pad // 2 if (B_pad % 16 == 0) else B_pad   # >=2 batch tiles when possible
    unroll = _pick_unroll(tc)

    # Layout glue for layer 0 only: batch_first -> time-major + sublane pad.
    # Intermediate layers stay time-major inside Pallas (no further transposes).
    seq = jnp.transpose(x, (1, 0, 2)).astype(jnp.float32)
    if B_pad != B:
        seq = jnp.pad(seq, ((0, 0), (0, B_pad - B), (0, 0)))

    out = None
    for layer in range(num_layers):
        w_ih, w_hh, b_ih, b_hh = params["gru"][layer]
        wih_t, whh_t, bfold, bhn = _prep_layer_weights(
            w_ih, w_hh, b_ih, b_hh, H, hp, pad_in=(layer > 0))
        if layer == num_layers - 1:
            wlin = jnp.pad(params["lin_w"], ((0, 0), (0, hp - H))).T   # (hp, O)
            blin = params["lin_b"].reshape(1, -1)
            out = _gru_layer(seq, wih_t, whh_t, bfold, bhn,
                             hp=hp, tc=tc, bt=bt, unroll=unroll,
                             wlin=wlin, blin=blin)
        else:
            seq = _gru_layer(seq, wih_t, whh_t, bfold, bhn,
                             hp=hp, tc=tc, bt=bt, unroll=unroll)
    return out[:B]


# ----------------------------------------------------------------------------
# Deterministic parameter init (matches nn.GRU / nn.Linear shapes)
# ----------------------------------------------------------------------------
def init_params(key, input_dim, hidden_dim, num_layers, output_dim):
    params = {"gru": []}
    k_gru = 1.0 / math.sqrt(hidden_dim)
    for layer in range(num_layers):
        d_in = input_dim if layer == 0 else hidden_dim
        key, k1, k2, k3, k4 = jax.random.split(key, 5)
        w_ih = jax.random.uniform(k1, (3 * hidden_dim, d_in), jnp.float32, -k_gru, k_gru)
        w_hh = jax.random.uniform(k2, (3 * hidden_dim, hidden_dim), jnp.float32, -k_gru, k_gru)
        b_ih = jax.random.uniform(k3, (3 * hidden_dim,), jnp.float32, -k_gru, k_gru)
        b_hh = jax.random.uniform(k4, (3 * hidden_dim,), jnp.float32, -k_gru, k_gru)
        params["gru"].append((w_ih, w_hh, b_ih, b_hh))
    key, k5, k6 = jax.random.split(key, 3)
    k_lin = 1.0 / math.sqrt(hidden_dim)
    params["lin_w"] = jax.random.uniform(k5, (output_dim, hidden_dim), jnp.float32, -k_lin, k_lin)
    params["lin_b"] = jax.random.uniform(k6, (output_dim,), jnp.float32, -k_lin, k_lin)
    return params


if __name__ == "__main__":
    batch = 2
    seq = 8
    input_dim = 4
    hidden_dim = 32
    num_layers = 2
    output_dim = 4

    key = jax.random.PRNGKey(0)
    key, xkey = jax.random.split(key)
    x = jax.random.normal(xkey, (batch, seq, input_dim), dtype=jnp.float32)

    params = init_params(key, input_dim, hidden_dim, num_layers, output_dim)

    out = gru_forward(x, params, hidden_dim, num_layers)
    out = jax.block_until_ready(out)
    assert out.shape == (batch, output_dim), out.shape
    print("KERNEL_OK")
</pallas_src>

<mosaic_0001>
module attributes {stable_mosaic.version = 11 : i64} {
  func.func @_gru_layer_kernel(%arg0: i32, %arg1: i32, %arg2: memref<8x8x4xf32, #tpu.memory_space<vmem>>, %arg3: memref<4x384xf32, #tpu.memory_space<vmem>>, %arg4: memref<128x384xf32, #tpu.memory_space<vmem>>, %arg5: memref<1x384xf32, #tpu.memory_space<vmem>>, %arg6: memref<1x128xf32, #tpu.memory_space<vmem>>, %arg7: memref<8x8x128xf32, #tpu.memory_space<vmem>>, %arg8: memref<8x128xf32, #tpu.memory_space<vmem>>, %arg9: memref<8x8x384xf32, #tpu.memory_space<vmem>>) attributes {dimension_semantics = [#tpu.dimension_semantics<parallel>, #tpu.dimension_semantics<arbitrary>], iteration_bounds = array<i64: 1, 1>, scalar_prefetch = 0 : i64, scratch_operands = 2 : i64, tpu.core_type = #tpu.core_type<tc>, window_params = [{transform_indices = @transform_0, window_bounds = array<i64: 8, 8, 4>}, {pipeline_mode = #tpu.pipeline_mode<synchronous>, transform_indices = @transform_1, window_bounds = array<i64: 4, 384>}, {pipeline_mode = #tpu.pipeline_mode<synchronous>, transform_indices = @transform_2, window_bounds = array<i64: 128, 384>}, {pipeline_mode = #tpu.pipeline_mode<synchronous>, transform_indices = @transform_3, window_bounds = array<i64: 1, 384>}, {pipeline_mode = #tpu.pipeline_mode<synchronous>, transform_indices = @transform_4, window_bounds = array<i64: 1, 128>}, {transform_indices = @transform_5, window_bounds = array<i64: 8, 8, 128>}]} {
    %c0_i32 = arith.constant 0 : i32
    %0 = arith.cmpi eq, %arg1, %c0_i32 : i32
    %1 = arith.extui %0 : i1 to i32
    %c0_i32_0 = arith.constant 0 : i32
    %2 = arith.cmpi ne, %1, %c0_i32_0 : i32
    scf.if %2 {
      %cst_89 = arith.constant 0.000000e+00 : f32
      %289 = vector.broadcast %cst_89 : f32 to vector<8x128xf32>
      %c0_90 = arith.constant 0 : index
      %c0_91 = arith.constant 0 : index
      %290 = vector.load %arg8[%c0_90, %c0_91] : memref<8x128xf32, #tpu.memory_space<vmem>>, vector<8x128xf32>
      tpu.vector_store %arg8[%c0_90, %c0_91], %289 {strides = array<i32>} : memref<8x128xf32, #tpu.memory_space<vmem>>, vector<8x128xf32>,
    } else {
    }
    %c0 = arith.constant 0 : index
    %c0_1 = arith.constant 0 : index
    %c0_2 = arith.constant 0 : index
    %3 = vector.load %arg2[%c0, %c0_1, %c0_2] : memref<8x8x4xf32, #tpu.memory_space<vmem>>, vector<8x8x4xf32>
    %4 = vector.shape_cast %3 : vector<8x8x4xf32> to vector<64x4xf32>
    %c0_3 = arith.constant 0 : index
    %c0_4 = arith.constant 0 : index
    %5 = vector.load %arg3[%c0_3, %c0_4] : memref<4x384xf32, #tpu.memory_space<vmem>>, vector<4x384xf32>
    %cst = arith.constant dense<0.000000e+00> : vector<64x384xf32>
    %6 = tpu.matmul %4, %5, %cst {dimension_numbers = #tpu.dot_dimension_numbers<[1], [0], [0], [1], [0, 0, 1, 1], [], []>} : vector<64x4xf32>, vector<4x384xf32>, vector<64x384xf32> -> vector<64x384xf32>
    %c0_5 = arith.constant 0 : index
    %c0_6 = arith.constant 0 : index
    %7 = vector.load %arg5[%c0_5, %c0_6] : memref<1x384xf32, #tpu.memory_space<vmem>>, vector<1x384xf32>
    %8 = vector.broadcast %7 : vector<1x384xf32> to vector<64x384xf32>
    %9 = arith.addf %6, %8 : vector<64x384xf32>
    %10 = vector.shape_cast %9 : vector<64x384xf32> to vector<8x8x384xf32>
    %c0_7 = arith.constant 0 : index
    %c0_8 = arith.constant 0 : index
    %c0_9 = arith.constant 0 : index
    %11 = vector.load %arg9[%c0_7, %c0_8, %c0_9] : memref<8x8x384xf32, #tpu.memory_space<vmem>>, vector<8x8x384xf32>
    tpu.vector_store %arg9[%c0_7, %c0_8, %c0_9], %10 {strides = array<i32>} : memref<8x8x384xf32, #tpu.memory_space<vmem>>, vector<8x8x384xf32>,
    %c0_10 = arith.constant 0 : index
    %c0_11 = arith.constant 0 : index
    %12 = vector.load %arg6[%c0_10, %c0_11] : memref<1x128xf32, #tpu.memory_space<vmem>>, vector<1x128xf32>
    %13 = vector.shape_cast %12 : vector<1x128xf32> to vector<1x128xf32>
    %14 = vector.broadcast %13 : vector<1x128xf32> to vector<8x128xf32>
    %c0_12 = arith.constant 0 : index
    %c0_13 = arith.constant 0 : index
    %15 = vector.load %arg8[%c0_12, %c0_13] : memref<8x128xf32, #tpu.memory_space<vmem>>, vector<8x128xf32>
    %c0_i32_14 = arith.constant 0 : i32
    %16 = arith.index_cast %c0_i32_14 : i32 to index
    %c0_15 = arith.constant 0 : index
    %c0_16 = arith.constant 0 : index
    %17 = vector.load %arg9[%16, %c0_15, %c0_16] : memref<8x8x384xf32, #tpu.memory_space<vmem>>, vector<1x8x384xf32>
    %18 = vector.shape_cast %17 : vector<1x8x384xf32> to vector<8x384xf32>
    %c0_17 = arith.constant 0 : index
    %c0_18 = arith.constant 0 : index
    %19 = vector.load %arg4[%c0_17, %c0_18] : memref<128x384xf32, #tpu.memory_space<vmem>>, vector<128x384xf32>
    %cst_19 = arith.constant dense<0.000000e+00> : vector<8x384xf32>
    %20 = tpu.matmul %15, %19, %cst_19 {dimension_numbers = #tpu.dot_dimension_numbers<[1], [0], [0], [1], [0, 0, 1, 1], [], []>} : vector<8x128xf32>, vector<128x384xf32>, vector<8x384xf32> -> vector<8x384xf32>
    %21 = vector.extract_strided_slice %18 {offsets = [0, 0], sizes = [8, 128], strides = [1, 1]} : vector<8x384xf32> to vector<8x128xf32>
    %22 = vector.extract_strided_slice %20 {offsets = [0, 0], sizes = [8, 128], strides = [1, 1]} : vector<8x384xf32> to vector<8x128xf32>
    %23 = arith.addf %21, %22 : vector<8x128xf32>
    %24 = arith.negf %23 : vector<8x128xf32>
    %25 = math.exp %24 : vector<8x128xf32>
    %cst_20 = arith.constant 1.000000e+00 : f32
    %26 = vector.broadcast %cst_20 : f32 to vector<8x128xf32>
    %27 = arith.addf %26, %25 : vector<8x128xf32>
    %28 = arith.divf %26, %27 : vector<8x128xf32>
    %29 = vector.extract_strided_slice %18 {offsets = [0, 128], sizes = [8, 128], strides = [1, 1]} : vector<8x384xf32> to vector<8x128xf32>
    %30 = vector.extract_strided_slice %20 {offsets = [0, 128], sizes = [8, 128], strides = [1, 1]} : vector<8x384xf32> to vector<8x128xf32>
    %31 = arith.addf %29, %30 : vector<8x128xf32>
    %32 = arith.negf %31 : vector<8x128xf32>
    %33 = math.exp %32 : vector<8x128xf32>
    %cst_21 = arith.constant 1.000000e+00 : f32
    %34 = vector.broadcast %cst_21 : f32 to vector<8x128xf32>
    %35 = arith.addf %34, %33 : vector<8x128xf32>
    %36 = arith.divf %34, %35 : vector<8x128xf32>
    %37 = vector.extract_strided_slice %18 {offsets = [0, 256], sizes = [8, 128], strides = [1, 1]} : vector<8x384xf32> to vector<8x128xf32>
    %38 = vector.extract_strided_slice %20 {offsets = [0, 256], sizes = [8, 128], strides = [1, 1]} : vector<8x384xf32> to vector<8x128xf32>
    %39 = arith.addf %38, %14 : vector<8x128xf32>
    %40 = arith.mulf %28, %39 : vector<8x128xf32>
    %41 = arith.addf %37, %40 : vector<8x128xf32>
    %42 = math.tanh %41 : vector<8x128xf32>
    %43 = arith.subf %15, %42 : vector<8x128xf32>
    %44 = arith.mulf %36, %43 : vector<8x128xf32>
    %45 = arith.addf %42, %44 : vector<8x128xf32>
    %46 = arith.index_cast %c0_i32_14 : i32 to index
    %c0_22 = arith.constant 0 : index
    %c0_23 = arith.constant 0 : index
    %47 = vector.load %arg7[%46, %c0_22, %c0_23] : memref<8x8x128xf32, #tpu.memory_space<vmem>>, vector<1x8x128xf32>
    %48 = vector.shape_cast %47 : vector<1x8x128xf32> to vector<8x128xf32>
    %49 = vector.shape_cast %45 : vector<8x128xf32> to vector<1x8x128xf32>
    tpu.vector_store %arg7[%46, %c0_22, %c0_23], %49 {strides = array<i32>} : memref<8x8x128xf32, #tpu.memory_space<vmem>>, vector<1x8x128xf32>,
    %c1_i32 = arith.constant 1 : i32
    %50 = arith.index_cast %c1_i32 : i32 to index
    %c0_24 = arith.constant 0 : index
    %c0_25 = arith.constant 0 : index
    %51 = vector.load %arg9[%50, %c0_24, %c0_25] : memref<8x8x384xf32, #tpu.memory_space<vmem>>, vector<1x8x384xf32>
    %52 = vector.shape_cast %51 : vector<1x8x384xf32> to vector<8x384xf32>
    %c0_26 = arith.constant 0 : index
    %c0_27 = arith.constant 0 : index
    %53 = vector.load %arg4[%c0_26, %c0_27] : memref<128x384xf32, #tpu.memory_space<vmem>>, vector<128x384xf32>
    %cst_28 = arith.constant dense<0.000000e+00> : vector<8x384xf32>
    %54 = tpu.matmul %45, %53, %cst_28 {dimension_numbers = #tpu.dot_dimension_numbers<[1], [0], [0], [1], [0, 0, 1, 1], [], []>} : vector<8x128xf32>, vector<128x384xf32>, vector<8x384xf32> -> vector<8x384xf32>
    %55 = vector.extract_strided_slice %52 {offsets = [0, 0], sizes = [8, 128], strides = [1, 1]} : vector<8x384xf32> to vector<8x128xf32>
    %56 = vector.extract_strided_slice %54 {offsets = [0, 0], sizes = [8, 128], strides = [1, 1]} : vector<8x384xf32> to vector<8x128xf32>
    %57 = arith.addf %55, %56 : vector<8x128xf32>
    %58 = arith.negf %57 : vector<8x128xf32>
    %59 = math.exp %58 : vector<8x128xf32>
    %cst_29 = arith.constant 1.000000e+00 : f32
    %60 = vector.broadcast %cst_29 : f32 to vector<8x128xf32>
    %61 = arith.addf %60, %59 : vector<8x128xf32>
    %62 = arith.divf %60, %61 : vector<8x128xf32>
    %63 = vector.extract_strided_slice %52 {offsets = [0, 128], sizes = [8, 128], strides = [1, 1]} : vector<8x384xf32> to vector<8x128xf32>
    %64 = vector.extract_strided_slice %54 {offsets = [0, 128], sizes = [8, 128], strides = [1, 1]} : vector<8x384xf32> to vector<8x128xf32>
    %65 = arith.addf %63, %64 : vector<8x128xf32>
    %66 = arith.negf %65 : vector<8x128xf32>
    %67 = math.exp %66 : vector<8x128xf32>
    %cst_30 = arith.constant 1.000000e+00 : f32
    %68 = vector.broadcast %cst_30 : f32 to vector<8x128xf32>
    %69 = arith.addf %68, %67 : vector<8x128xf32>
    %70 = arith.divf %68, %69 : vector<8x128xf32>
    %71 = vector.extract_strided_slice %52 {offsets = [0, 256], sizes = [8, 128], strides = [1, 1]} : vector<8x384xf32> to vector<8x128xf32>
    %72 = vector.extract_strided_slice %54 {offsets = [0, 256], sizes = [8, 128], strides = [1, 1]} : vector<8x384xf32> to vector<8x128xf32>
    %73 = arith.addf %72, %14 : vector<8x128xf32>
    %74 = arith.mulf %62, %73 : vector<8x128xf32>
    %75 = arith.addf %71, %74 : vector<8x128xf32>
    %76 = math.tanh %75 : vector<8x128xf32>
    %77 = arith.subf %45, %76 : vector<8x128xf32>
    %78 = arith.mulf %70, %77 : vector<8x128xf32>
    %79 = arith.addf %76, %78 : vector<8x128xf32>
    %80 = arith.index_cast %c1_i32 : i32 to index
    %c0_31 = arith.constant 0 : index
    %c0_32 = arith.constant 0 : index
    %81 = vector.load %arg7[%80, %c0_31, %c0_32] : memref<8x8x128xf32, #tpu.memory_space<vmem>>, vector<1x8x128xf32>
    %82 = vector.shape_cast %81 : vector<1x8x128xf32> to vector<8x128xf32>
    %83 = vector.shape_cast %79 : vector<8x128xf32> to vector<1x8x128xf32>
    tpu.vector_store %arg7[%80, %c0_31, %c0_32], %83 {strides = array<i32>} : memref<8x8x128xf32, #tpu.memory_space<vmem>>, vector<1x8x128xf32>,
    %c2_i32 = arith.constant 2 : i32
    %84 = arith.index_cast %c2_i32 : i32 to index
    %c0_33 = arith.constant 0 : index
    %c0_34 = arith.constant 0 : index
    %85 = vector.load %arg9[%84, %c0_33, %c0_34] : memref<8x8x384xf32, #tpu.memory_space<vmem>>, vector<1x8x384xf32>
    %86 = vector.shape_cast %85 : vector<1x8x384xf32> to vector<8x384xf32>
    %c0_35 = arith.constant 0 : index
    %c0_36 = arith.constant 0 : index
    %87 = vector.load %arg4[%c0_35, %c0_36] : memref<128x384xf32, #tpu.memory_space<vmem>>, vector<128x384xf32>
    %cst_37 = arith.constant dense<0.000000e+00> : vector<8x384xf32>
    %88 = tpu.matmul %79, %87, %cst_37 {dimension_numbers = #tpu.dot_dimension_numbers<[1], [0], [0], [1], [0, 0, 1, 1], [], []>} : vector<8x128xf32>, vector<128x384xf32>, vector<8x384xf32> -> vector<8x384xf32>
    %89 = vector.extract_strided_slice %86 {offsets = [0, 0], sizes = [8, 128], strides = [1, 1]} : vector<8x384xf32> to vector<8x128xf32>
    %90 = vector.extract_strided_slice %88 {offsets = [0, 0], sizes = [8, 128], strides = [1, 1]} : vector<8x384xf32> to vector<8x128xf32>
    %91 = arith.addf %89, %90 : vector<8x128xf32>
    %92 = arith.negf %91 : vector<8x128xf32>
    %93 = math.exp %92 : vector<8x128xf32>
    %cst_38 = arith.constant 1.000000e+00 : f32
    %94 = vector.broadcast %cst_38 : f32 to vector<8x128xf32>
    %95 = arith.addf %94, %93 : vector<8x128xf32>
    %96 = arith.divf %94, %95 : vector<8x128xf32>
    %97 = vector.extract_strided_slice %86 {offsets = [0, 128], sizes = [8, 128], strides = [1, 1]} : vector<8x384xf32> to vector<8x128xf32>
    %98 = vector.extract_strided_slice %88 {offsets = [0, 128], sizes = [8, 128], strides = [1, 1]} : vector<8x384xf32> to vector<8x128xf32>
    %99 = arith.addf %97, %98 : vector<8x128xf32>
    %100 = arith.negf %99 : vector<8x128xf32>
    %101 = math.exp %100 : vector<8x128xf32>
    %cst_39 = arith.constant 1.000000e+00 : f32
    %102 = vector.broadcast %cst_39 : f32 to vector<8x128xf32>
    %103 = arith.addf %102, %101 : vector<8x128xf32>
    %104 = arith.divf %102, %103 : vector<8x128xf32>
    %105 = vector.extract_strided_slice %86 {offsets = [0, 256], sizes = [8, 128], strides = [1, 1]} : vector<8x384xf32> to vector<8x128xf32>
    %106 = vector.extract_strided_slice %88 {offsets = [0, 256], sizes = [8, 128], strides = [1, 1]} : vector<8x384xf32> to vector<8x128xf32>
    %107 = arith.addf %106, %14 : vector<8x128xf32>
    %108 = arith.mulf %96, %107 : vector<8x128xf32>
    %109 = arith.addf %105, %108 : vector<8x128xf32>
    %110 = math.tanh %109 : vector<8x128xf32>
    %111 = arith.subf %79, %110 : vector<8x128xf32>
    %112 = arith.mulf %104, %111 : vector<8x128xf32>
    %113 = arith.addf %110, %112 : vector<8x128xf32>
    %114 = arith.index_cast %c2_i32 : i32 to index
    %c0_40 = arith.constant 0 : index
    %c0_41 = arith.constant 0 : index
    %115 = vector.load %arg7[%114, %c0_40, %c0_41] : memref<8x8x128xf32, #tpu.memory_space<vmem>>, vector<1x8x128xf32>
    %116 = vector.shape_cast %115 : vector<1x8x128xf32> to vector<8x128xf32>
    %117 = vector.shape_cast %113 : vector<8x128xf32> to vector<1x8x128xf32>
    tpu.vector_store %arg7[%114, %c0_40, %c0_41], %117 {strides = array<i32>} : memref<8x8x128xf32, #tpu.memory_space<vmem>>, vector<1x8x128xf32>,
    %c3_i32 = arith.constant 3 : i32
    %118 = arith.index_cast %c3_i32 : i32 to index
    %c0_42 = arith.constant 0 : index
    %c0_43 = arith.constant 0 : index
    %119 = vector.load %arg9[%118, %c0_42, %c0_43] : memref<8x8x384xf32, #tpu.memory_space<vmem>>, vector<1x8x384xf32>
    %120 = vector.shape_cast %119 : vector<1x8x384xf32> to vector<8x384xf32>
    %c0_44 = arith.constant 0 : index
    %c0_45 = arith.constant 0 : index
    %121 = vector.load %arg4[%c0_44, %c0_45] : memref<128x384xf32, #tpu.memory_space<vmem>>, vector<128x384xf32>
    %cst_46 = arith.constant dense<0.000000e+00> : vector<8x384xf32>
    %122 = tpu.matmul %113, %121, %cst_46 {dimension_numbers = #tpu.dot_dimension_numbers<[1], [0], [0], [1], [0, 0, 1, 1], [], []>} : vector<8x128xf32>, vector<128x384xf32>, vector<8x384xf32> -> vector<8x384xf32>
    %123 = vector.extract_strided_slice %120 {offsets = [0, 0], sizes = [8, 128], strides = [1, 1]} : vector<8x384xf32> to vector<8x128xf32>
    %124 = vector.extract_strided_slice %122 {offsets = [0, 0], sizes = [8, 128], strides = [1, 1]} : vector<8x384xf32> to vector<8x128xf32>
    %125 = arith.addf %123, %124 : vector<8x128xf32>
    %126 = arith.negf %125 : vector<8x128xf32>
    %127 = math.exp %126 : vector<8x128xf32>
    %cst_47 = arith.constant 1.000000e+00 : f32
    %128 = vector.broadcast %cst_47 : f32 to vector<8x128xf32>
    %129 = arith.addf %128, %127 : vector<8x128xf32>
    %130 = arith.divf %128, %129 : vector<8x128xf32>
    %131 = vector.extract_strided_slice %120 {offsets = [0, 128], sizes = [8, 128], strides = [1, 1]} : vector<8x384xf32> to vector<8x128xf32>
    %132 = vector.extract_strided_slice %122 {offsets = [0, 128], sizes = [8, 128], strides = [1, 1]} : vector<8x384xf32> to vector<8x128xf32>
    %133 = arith.addf %131, %132 : vector<8x128xf32>
    %134 = arith.negf %133 : vector<8x128xf32>
    %135 = math.exp %134 : vector<8x128xf32>
    %cst_48 = arith.constant 1.000000e+00 : f32
    %136 = vector.broadcast %cst_48 : f32 to vector<8x128xf32>
    %137 = arith.addf %136, %135 : vector<8x128xf32>
    %138 = arith.divf %136, %137 : vector<8x128xf32>
    %139 = vector.extract_strided_slice %120 {offsets = [0, 256], sizes = [8, 128], strides = [1, 1]} : vector<8x384xf32> to vector<8x128xf32>
    %140 = vector.extract_strided_slice %122 {offsets = [0, 256], sizes = [8, 128], strides = [1, 1]} : vector<8x384xf32> to vector<8x128xf32>
    %141 = arith.addf %140, %14 : vector<8x128xf32>
    %142 = arith.mulf %130, %141 : vector<8x128xf32>
    %143 = arith.addf %139, %142 : vector<8x128xf32>
    %144 = math.tanh %143 : vector<8x128xf32>
    %145 = arith.subf %113, %144 : vector<8x128xf32>
    %146 = arith.mulf %138, %145 : vector<8x128xf32>
    %147 = arith.addf %144, %146 : vector<8x128xf32>
    %148 = arith.index_cast %c3_i32 : i32 to index
    %c0_49 = arith.constant 0 : index
    %c0_50 = arith.constant 0 : index
    %149 = vector.load %arg7[%148, %c0_49, %c0_50] : memref<8x8x128xf32, #tpu.memory_space<vmem>>, vector<1x8x128xf32>
    %150 = vector.shape_cast %149 : vector<1x8x128xf32> to vector<8x128xf32>
    %151 = vector.shape_cast %147 : vector<8x128xf32> to vector<1x8x128xf32>
    tpu.vector_store %arg7[%148, %c0_49, %c0_50], %151 {strides = array<i32>} : memref<8x8x128xf32, #tpu.memory_space<vmem>>, vector<1x8x128xf32>,
    %c4_i32 = arith.constant 4 : i32
    %152 = arith.index_cast %c4_i32 : i32 to index
    %c0_51 = arith.constant 0 : index
    %c0_52 = arith.constant 0 : index
    %153 = vector.load %arg9[%152, %c0_51, %c0_52] : memref<8x8x384xf32, #tpu.memory_space<vmem>>, vector<1x8x384xf32>
    %154 = vector.shape_cast %153 : vector<1x8x384xf32> to vector<8x384xf32>
    %c0_53 = arith.constant 0 : index
    %c0_54 = arith.constant 0 : index
    %155 = vector.load %arg4[%c0_53, %c0_54] : memref<128x384xf32, #tpu.memory_space<vmem>>, vector<128x384xf32>
    %cst_55 = arith.constant dense<0.000000e+00> : vector<8x384xf32>
    %156 = tpu.matmul %147, %155, %cst_55 {dimension_numbers = #tpu.dot_dimension_numbers<[1], [0], [0], [1], [0, 0, 1, 1], [], []>} : vector<8x128xf32>, vector<128x384xf32>, vector<8x384xf32> -> vector<8x384xf32>
    %157 = vector.extract_strided_slice %154 {offsets = [0, 0], sizes = [8, 128], strides = [1, 1]} : vector<8x384xf32> to vector<8x128xf32>
    %158 = vector.extract_strided_slice %156 {offsets = [0, 0], sizes = [8, 128], strides = [1, 1]} : vector<8x384xf32> to vector<8x128xf32>
    %159 = arith.addf %157, %158 : vector<8x128xf32>
    %160 = arith.negf %159 : vector<8x128xf32>
    %161 = math.exp %160 : vector<8x128xf32>
    %cst_56 = arith.constant 1.000000e+00 : f32
    %162 = vector.broadcast %cst_56 : f32 to vector<8x128xf32>
    %163 = arith.addf %162, %161 : vector<8x128xf32>
    %164 = arith.divf %162, %163 : vector<8x128xf32>
    %165 = vector.extract_strided_slice %154 {offsets = [0, 128], sizes = [8, 128], strides = [1, 1]} : vector<8x384xf32> to vector<8x128xf32>
    %166 = vector.extract_strided_slice %156 {offsets = [0, 128], sizes = [8, 128], strides = [1, 1]} : vector<8x384xf32> to vector<8x128xf32>
    %167 = arith.addf %165, %166 : vector<8x128xf32>
    %168 = arith.negf %167 : vector<8x128xf32>
    %169 = math.exp %168 : vector<8x128xf32>
    %cst_57 = arith.constant 1.000000e+00 : f32
    %170 = vector.broadcast %cst_57 : f32 to vector<8x128xf32>
    %171 = arith.addf %170, %169 : vector<8x128xf32>
    %172 = arith.divf %170, %171 : vector<8x128xf32>
    %173 = vector.extract_strided_slice %154 {offsets = [0, 256], sizes = [8, 128], strides = [1, 1]} : vector<8x384xf32> to vector<8x128xf32>
    %174 = vector.extract_strided_slice %156 {offsets = [0, 256], sizes = [8, 128], strides = [1, 1]} : vector<8x384xf32> to vector<8x128xf32>
    %175 = arith.addf %174, %14 : vector<8x128xf32>
    %176 = arith.mulf %164, %175 : vector<8x128xf32>
    %177 = arith.addf %173, %176 : vector<8x128xf32>
    %178 = math.tanh %177 : vector<8x128xf32>
    %179 = arith.subf %147, %178 : vector<8x128xf32>
    %180 = arith.mulf %172, %179 : vector<8x128xf32>
    %181 = arith.addf %178, %180 : vector<8x128xf32>
    %182 = arith.index_cast %c4_i32 : i32 to index
    %c0_58 = arith.constant 0 : index
    %c0_59 = arith.constant 0 : index
    %183 = vector.load %arg7[%182, %c0_58, %c0_59] : memref<8x8x128xf32, #tpu.memory_space<vmem>>, vector<1x8x128xf32>
    %184 = vector.shape_cast %183 : vector<1x8x128xf32> to vector<8x128xf32>
    %185 = vector.shape_cast %181 : vector<8x128xf32> to vector<1x8x128xf32>
    tpu.vector_store %arg7[%182, %c0_58, %c0_59], %185 {strides = array<i32>} : memref<8x8x128xf32, #tpu.memory_space<vmem>>, vector<1x8x128xf32>,
    %c5_i32 = arith.constant 5 : i32
    %186 = arith.index_cast %c5_i32 : i32 to index
    %c0_60 = arith.constant 0 : index
    %c0_61 = arith.constant 0 : index
    %187 = vector.load %arg9[%186, %c0_60, %c0_61] : memref<8x8x384xf32, #tpu.memory_space<vmem>>, vector<1x8x384xf32>
    %188 = vector.shape_cast %187 : vector<1x8x384xf32> to vector<8x384xf32>
    %c0_62 = arith.constant 0 : index
    %c0_63 = arith.constant 0 : index
    %189 = vector.load %arg4[%c0_62, %c0_63] : memref<128x384xf32, #tpu.memory_space<vmem>>, vector<128x384xf32>
    %cst_64 = arith.constant dense<0.000000e+00> : vector<8x384xf32>
    %190 = tpu.matmul %181, %189, %cst_64 {dimension_numbers = #tpu.dot_dimension_numbers<[1], [0], [0], [1], [0, 0, 1, 1], [], []>} : vector<8x128xf32>, vector<128x384xf32>, vector<8x384xf32> -> vector<8x384xf32>
    %191 = vector.extract_strided_slice %188 {offsets = [0, 0], sizes = [8, 128], strides = [1, 1]} : vector<8x384xf32> to vector<8x128xf32>
    %192 = vector.extract_strided_slice %190 {offsets = [0, 0], sizes = [8, 128], strides = [1, 1]} : vector<8x384xf32> to vector<8x128xf32>
    %193 = arith.addf %191, %192 : vector<8x128xf32>
    %194 = arith.negf %193 : vector<8x128xf32>
    %195 = math.exp %194 : vector<8x128xf32>
    %cst_65 = arith.constant 1.000000e+00 : f32
    %196 = vector.broadcast %cst_65 : f32 to vector<8x128xf32>
    %197 = arith.addf %196, %195 : vector<8x128xf32>
    %198 = arith.divf %196, %197 : vector<8x128xf32>
    %199 = vector.extract_strided_slice %188 {offsets = [0, 128], sizes = [8, 128], strides = [1, 1]} : vector<8x384xf32> to vector<8x128xf32>
    %200 = vector.extract_strided_slice %190 {offsets = [0, 128], sizes = [8, 128], strides = [1, 1]} : vector<8x384xf32> to vector<8x128xf32>
    %201 = arith.addf %199, %200 : vector<8x128xf32>
    %202 = arith.negf %201 : vector<8x128xf32>
    %203 = math.exp %202 : vector<8x128xf32>
    %cst_66 = arith.constant 1.000000e+00 : f32
    %204 = vector.broadcast %cst_66 : f32 to vector<8x128xf32>
    %205 = arith.addf %204, %203 : vector<8x128xf32>
    %206 = arith.divf %204, %205 : vector<8x128xf32>
    %207 = vector.extract_strided_slice %188 {offsets = [0, 256], sizes = [8, 128], strides = [1, 1]} : vector<8x384xf32> to vector<8x128xf32>
    %208 = vector.extract_strided_slice %190 {offsets = [0, 256], sizes = [8, 128], strides = [1, 1]} : vector<8x384xf32> to vector<8x128xf32>
    %209 = arith.addf %208, %14 : vector<8x128xf32>
    %210 = arith.mulf %198, %209 : vector<8x128xf32>
    %211 = arith.addf %207, %210 : vector<8x128xf32>
    %212 = math.tanh %211 : vector<8x128xf32>
    %213 = arith.subf %181, %212 : vector<8x128xf32>
    %214 = arith.mulf %206, %213 : vector<8x128xf32>
    %215 = arith.addf %212, %214 : vector<8x128xf32>
    %216 = arith.index_cast %c5_i32 : i32 to index
    %c0_67 = arith.constant 0 : index
    %c0_68 = arith.constant 0 : index
    %217 = vector.load %arg7[%216, %c0_67, %c0_68] : memref<8x8x128xf32, #tpu.memory_space<vmem>>, vector<1x8x128xf32>
    %218 = vector.shape_cast %217 : vector<1x8x128xf32> to vector<8x128xf32>
    %219 = vector.shape_cast %215 : vector<8x128xf32> to vector<1x8x128xf32>
    tpu.vector_store %arg7[%216, %c0_67, %c0_68], %219 {strides = array<i32>} : memref<8x8x128xf32, #tpu.memory_space<vmem>>, vector<1x8x128xf32>,
    %c6_i32 = arith.constant 6 : i32
    %220 = arith.index_cast %c6_i32 : i32 to index
    %c0_69 = arith.constant 0 : index
    %c0_70 = arith.constant 0 : index
    %221 = vector.load %arg9[%220, %c0_69, %c0_70] : memref<8x8x384xf32, #tpu.memory_space<vmem>>, vector<1x8x384xf32>
    %222 = vector.shape_cast %221 : vector<1x8x384xf32> to vector<8x384xf32>
    %c0_71 = arith.constant 0 : index
    %c0_72 = arith.constant 0 : index
    %223 = vector.load %arg4[%c0_71, %c0_72] : memref<128x384xf32, #tpu.memory_space<vmem>>, vector<128x384xf32>
    %cst_73 = arith.constant dense<0.000000e+00> : vector<8x384xf32>
    %224 = tpu.matmul %215, %223, %cst_73 {dimension_numbers = #tpu.dot_dimension_numbers<[1], [0], [0], [1], [0, 0, 1, 1], [], []>} : vector<8x128xf32>, vector<128x384xf32>, vector<8x384xf32> -> vector<8x384xf32>
    %225 = vector.extract_strided_slice %222 {offsets = [0, 0], sizes = [8, 128], strides = [1, 1]} : vector<8x384xf32> to vector<8x128xf32>
    %226 = vector.extract_strided_slice %224 {offsets = [0, 0], sizes = [8, 128], strides = [1, 1]} : vector<8x384xf32> to vector<8x128xf32>
    %227 = arith.addf %225, %226 : vector<8x128xf32>
    %228 = arith.negf %227 : vector<8x128xf32>
    %229 = math.exp %228 : vector<8x128xf32>
    %cst_74 = arith.constant 1.000000e+00 : f32
    %230 = vector.broadcast %cst_74 : f32 to vector<8x128xf32>
    %231 = arith.addf %230, %229 : vector<8x128xf32>
    %232 = arith.divf %230, %231 : vector<8x128xf32>
    %233 = vector.extract_strided_slice %222 {offsets = [0, 128], sizes = [8, 128], strides = [1, 1]} : vector<8x384xf32> to vector<8x128xf32>
    %234 = vector.extract_strided_slice %224 {offsets = [0, 128], sizes = [8, 128], strides = [1, 1]} : vector<8x384xf32> to vector<8x128xf32>
    %235 = arith.addf %233, %234 : vector<8x128xf32>
    %236 = arith.negf %235 : vector<8x128xf32>
    %237 = math.exp %236 : vector<8x128xf32>
    %cst_75 = arith.constant 1.000000e+00 : f32
    %238 = vector.broadcast %cst_75 : f32 to vector<8x128xf32>
    %239 = arith.addf %238, %237 : vector<8x128xf32>
    %240 = arith.divf %238, %239 : vector<8x128xf32>
    %241 = vector.extract_strided_slice %222 {offsets = [0, 256], sizes = [8, 128], strides = [1, 1]} : vector<8x384xf32> to vector<8x128xf32>
    %242 = vector.extract_strided_slice %224 {offsets = [0, 256], sizes = [8, 128], strides = [1, 1]} : vector<8x384xf32> to vector<8x128xf32>
    %243 = arith.addf %242, %14 : vector<8x128xf32>
    %244 = arith.mulf %232, %243 : vector<8x128xf32>
    %245 = arith.addf %241, %244 : vector<8x128xf32>
    %246 = math.tanh %245 : vector<8x128xf32>
    %247 = arith.subf %215, %246 : vector<8x128xf32>
    %248 = arith.mulf %240, %247 : vector<8x128xf32>
    %249 = arith.addf %246, %248 : vector<8x128xf32>
    %250 = arith.index_cast %c6_i32 : i32 to index
    %c0_76 = arith.constant 0 : index
    %c0_77 = arith.constant 0 : index
    %251 = vector.load %arg7[%250, %c0_76, %c0_77] : memref<8x8x128xf32, #tpu.memory_space<vmem>>, vector<1x8x128xf32>
    %252 = vector.shape_cast %251 : vector<1x8x128xf32> to vector<8x128xf32>
    %253 = vector.shape_cast %249 : vector<8x128xf32> to vector<1x8x128xf32>
    tpu.vector_store %arg7[%250, %c0_76, %c0_77], %253 {strides = array<i32>} : memref<8x8x128xf32, #tpu.memory_space<vmem>>, vector<1x8x128xf32>,
    %c7_i32 = arith.constant 7 : i32
    %254 = arith.index_cast %c7_i32 : i32 to index
    %c0_78 = arith.constant 0 : index
    %c0_79 = arith.constant 0 : index
    %255 = vector.load %arg9[%254, %c0_78, %c0_79] : memref<8x8x384xf32, #tpu.memory_space<vmem>>, vector<1x8x384xf32>
    %256 = vector.shape_cast %255 : vector<1x8x384xf32> to vector<8x384xf32>
    %c0_80 = arith.constant 0 : index
    %c0_81 = arith.constant 0 : index
    %257 = vector.load %arg4[%c0_80, %c0_81] : memref<128x384xf32, #tpu.memory_space<vmem>>, vector<128x384xf32>
    %cst_82 = arith.constant dense<0.000000e+00> : vector<8x384xf32>
    %258 = tpu.matmul %249, %257, %cst_82 {dimension_numbers = #tpu.dot_dimension_numbers<[1], [0], [0], [1], [0, 0, 1, 1], [], []>} : vector<8x128xf32>, vector<128x384xf32>, vector<8x384xf32> -> vector<8x384xf32>
    %259 = vector.extract_strided_slice %256 {offsets = [0, 0], sizes = [8, 128], strides = [1, 1]} : vector<8x384xf32> to vector<8x128xf32>
    %260 = vector.extract_strided_slice %258 {offsets = [0, 0], sizes = [8, 128], strides = [1, 1]} : vector<8x384xf32> to vector<8x128xf32>
    %261 = arith.addf %259, %260 : vector<8x128xf32>
    %262 = arith.negf %261 : vector<8x128xf32>
    %263 = math.exp %262 : vector<8x128xf32>
    %cst_83 = arith.constant 1.000000e+00 : f32
    %264 = vector.broadcast %cst_83 : f32 to vector<8x128xf32>
    %265 = arith.addf %264, %263 : vector<8x128xf32>
    %266 = arith.divf %264, %265 : vector<8x128xf32>
    %267 = vector.extract_strided_slice %256 {offsets = [0, 128], sizes = [8, 128], strides = [1, 1]} : vector<8x384xf32> to vector<8x128xf32>
    %268 = vector.extract_strided_slice %258 {offsets = [0, 128], sizes = [8, 128], strides = [1, 1]} : vector<8x384xf32> to vector<8x128xf32>
    %269 = arith.addf %267, %268 : vector<8x128xf32>
    %270 = arith.negf %269 : vector<8x128xf32>
    %271 = math.exp %270 : vector<8x128xf32>
    %cst_84 = arith.constant 1.000000e+00 : f32
    %272 = vector.broadcast %cst_84 : f32 to vector<8x128xf32>
    %273 = arith.addf %272, %271 : vector<8x128xf32>
    %274 = arith.divf %272, %273 : vector<8x128xf32>
    %275 = vector.extract_strided_slice %256 {offsets = [0, 256], sizes = [8, 128], strides = [1, 1]} : vector<8x384xf32> to vector<8x128xf32>
    %276 = vector.extract_strided_slice %258 {offsets = [0, 256], sizes = [8, 128], strides = [1, 1]} : vector<8x384xf32> to vector<8x128xf32>
    %277 = arith.addf %276, %14 : vector<8x128xf32>
    %278 = arith.mulf %266, %277 : vector<8x128xf32>
    %279 = arith.addf %275, %278 : vector<8x128xf32>
    %280 = math.tanh %279 : vector<8x128xf32>
    %281 = arith.subf %249, %280 : vector<8x128xf32>
    %282 = arith.mulf %274, %281 : vector<8x128xf32>
    %283 = arith.addf %280, %282 : vector<8x128xf32>
    %284 = arith.index_cast %c7_i32 : i32 to index
    %c0_85 = arith.constant 0 : index
    %c0_86 = arith.constant 0 : index
    %285 = vector.load %arg7[%284, %c0_85, %c0_86] : memref<8x8x128xf32, #tpu.memory_space<vmem>>, vector<1x8x128xf32>
    %286 = vector.shape_cast %285 : vector<1x8x128xf32> to vector<8x128xf32>
    %287 = vector.shape_cast %283 : vector<8x128xf32> to vector<1x8x128xf32>
    tpu.vector_store %arg7[%284, %c0_85, %c0_86], %287 {strides = array<i32>} : memref<8x8x128xf32, #tpu.memory_space<vmem>>, vector<1x8x128xf32>,
    %c8_i32 = arith.constant 8 : i32
    %c0_87 = arith.constant 0 : index
    %c0_88 = arith.constant 0 : index
    %288 = vector.load %arg8[%c0_87, %c0_88] : memref<8x128xf32, #tpu.memory_space<vmem>>, vector<8x128xf32>
    tpu.vector_store %arg8[%c0_87, %c0_88], %283 {strides = array<i32>} : memref<8x128xf32, #tpu.memory_space<vmem>>, vector<8x128xf32>,
    return
  }
  func.func @transform_0(%arg0: i32, %arg1: i32) -> (i32, i32, i32) {
    %c0_i32 = arith.constant 0 : i32
    %c0_i32_0 = arith.constant 0 : i32
    return %arg1, %arg0, %c0_i32 : i32, i32, i32
  }
  func.func @transform_1(%arg0: i32, %arg1: i32) -> (i32, i32) {
    %c0_i32 = arith.constant 0 : i32
    %c0_i32_0 = arith.constant 0 : i32
    %c0_i32_1 = arith.constant 0 : i32
    return %c0_i32, %c0_i32_0 : i32, i32
  }
  func.func @transform_2(%arg0: i32, %arg1: i32) -> (i32, i32) {
    %c0_i32 = arith.constant 0 : i32
    %c0_i32_0 = arith.constant 0 : i32
    %c0_i32_1 = arith.constant 0 : i32
    return %c0_i32, %c0_i32_0 : i32, i32
  }
  func.func @transform_3(%arg0: i32, %arg1: i32) -> (i32, i32) {
    %c0_i32 = arith.constant 0 : i32
    %c0_i32_0 = arith.constant 0 : i32
    %c0_i32_1 = arith.constant 0 : i32
    return %c0_i32, %c0_i32_0 : i32, i32
  }
  func.func @transform_4(%arg0: i32, %arg1: i32) -> (i32, i32) {
    %c0_i32 = arith.constant 0 : i32
    %c0_i32_0 = arith.constant 0 : i32
    %c0_i32_1 = arith.constant 0 : i32
    return %c0_i32, %c0_i32_0 : i32, i32
  }
  func.func @transform_5(%arg0: i32, %arg1: i32) -> (i32, i32, i32) {
    %c0_i32 = arith.constant 0 : i32
    %c0_i32_0 = arith.constant 0 : i32
    return %arg1, %arg0, %c0_i32 : i32, i32, i32
  }
}

module attributes {stable_mosaic.version = 11 : i64} {
  func.func @_gru_layer_kernel(%arg0: i32, %arg1: i32, %arg2: memref<8x8x128xf32, #tpu.memory_space<vmem>>, %arg3: memref<128x384xf32, #tpu.memory_space<vmem>>, %arg4: memref<128x384xf32, #tpu.memory_space<vmem>>, %arg5: memref<1x384xf32, #tpu.memory_space<vmem>>, %arg6: memref<1x128xf32, #tpu.memory_space<vmem>>, %arg7: memref<128x4xf32, #tpu.memory_space<vmem>>, %arg8: memref<1x4xf32, #tpu.memory_space<vmem>>, %arg9: memref<8x4xf32, #tpu.memory_space<vmem>>, %arg10: memref<8x128xf32, #tpu.memory_space<vmem>>, %arg11: memref<8x8x384xf32, #tpu.memory_space<vmem>>) attributes {dimension_semantics = [#tpu.dimension_semantics<parallel>, #tpu.dimension_semantics<arbitrary>], iteration_bounds = array<i64: 1, 1>, scalar_prefetch = 0 : i64, scratch_operands = 2 : i64, tpu.core_type = #tpu.core_type<tc>, window_params = [{transform_indices = @transform_0, window_bounds = array<i64: 8, 8, 128>}, {pipeline_mode = #tpu.pipeline_mode<synchronous>, transform_indices = @transform_1, window_bounds = array<i64: 128, 384>}, {pipeline_mode = #tpu.pipeline_mode<synchronous>, transform_indices = @transform_2, window_bounds = array<i64: 128, 384>}, {pipeline_mode = #tpu.pipeline_mode<synchronous>, transform_indices = @transform_3, window_bounds = array<i64: 1, 384>}, {pipeline_mode = #tpu.pipeline_mode<synchronous>, transform_indices = @transform_4, window_bounds = array<i64: 1, 128>}, {pipeline_mode = #tpu.pipeline_mode<synchronous>, transform_indices = @transform_5, window_bounds = array<i64: 128, 4>}, {pipeline_mode = #tpu.pipeline_mode<synchronous>, transform_indices = @transform_6, window_bounds = array<i64: 1, 4>}, {transform_indices = @transform_7, window_bounds = array<i64: 8, 4>}]} {
    %c0_i32 = arith.constant 0 : i32
    %0 = arith.cmpi eq, %arg1, %c0_i32 : i32
    %1 = arith.extui %0 : i1 to i32
    %c0_i32_0 = arith.constant 0 : i32
    %2 = arith.cmpi ne, %1, %c0_i32_0 : i32
    scf.if %2 {
      %cst_75 = arith.constant 0.000000e+00 : f32
      %260 = vector.broadcast %cst_75 : f32 to vector<8x128xf32>
      %c0_76 = arith.constant 0 : index
      %c0_77 = arith.constant 0 : index
      %261 = vector.load %arg10[%c0_76, %c0_77] : memref<8x128xf32, #tpu.memory_space<vmem>>, vector<8x128xf32>
      tpu.vector_store %arg10[%c0_76, %c0_77], %260 {strides = array<i32>} : memref<8x128xf32, #tpu.memory_space<vmem>>, vector<8x128xf32>,
    } else {
    }
    %c0 = arith.constant 0 : index
    %c0_1 = arith.constant 0 : index
    %c0_2 = arith.constant 0 : index
    %3 = vector.load %arg2[%c0, %c0_1, %c0_2] : memref<8x8x128xf32, #tpu.memory_space<vmem>>, vector<8x8x128xf32>
    %4 = vector.shape_cast %3 : vector<8x8x128xf32> to vector<64x128xf32>
    %c0_3 = arith.constant 0 : index
    %c0_4 = arith.constant 0 : index
    %5 = vector.load %arg3[%c0_3, %c0_4] : memref<128x384xf32, #tpu.memory_space<vmem>>, vector<128x384xf32>
    %cst = arith.constant dense<0.000000e+00> : vector<64x384xf32>
    %6 = tpu.matmul %4, %5, %cst {dimension_numbers = #tpu.dot_dimension_numbers<[1], [0], [0], [1], [0, 0, 1, 1], [], []>} : vector<64x128xf32>, vector<128x384xf32>, vector<64x384xf32> -> vector<64x384xf32>
    %c0_5 = arith.constant 0 : index
    %c0_6 = arith.constant 0 : index
    %7 = vector.load %arg5[%c0_5, %c0_6] : memref<1x384xf32, #tpu.memory_space<vmem>>, vector<1x384xf32>
    %8 = vector.broadcast %7 : vector<1x384xf32> to vector<64x384xf32>
    %9 = arith.addf %6, %8 : vector<64x384xf32>
    %10 = vector.shape_cast %9 : vector<64x384xf32> to vector<8x8x384xf32>
    %c0_7 = arith.constant 0 : index
    %c0_8 = arith.constant 0 : index
    %c0_9 = arith.constant 0 : index
    %11 = vector.load %arg11[%c0_7, %c0_8, %c0_9] : memref<8x8x384xf32, #tpu.memory_space<vmem>>, vector<8x8x384xf32>
    tpu.vector_store %arg11[%c0_7, %c0_8, %c0_9], %10 {strides = array<i32>} : memref<8x8x384xf32, #tpu.memory_space<vmem>>, vector<8x8x384xf32>,
    %c0_10 = arith.constant 0 : index
    %c0_11 = arith.constant 0 : index
    %12 = vector.load %arg6[%c0_10, %c0_11] : memref<1x128xf32, #tpu.memory_space<vmem>>, vector<1x128xf32>
    %13 = vector.shape_cast %12 : vector<1x128xf32> to vector<1x128xf32>
    %14 = vector.broadcast %13 : vector<1x128xf32> to vector<8x128xf32>
    %c0_12 = arith.constant 0 : index
    %c0_13 = arith.constant 0 : index
    %15 = vector.load %arg10[%c0_12, %c0_13] : memref<8x128xf32, #tpu.memory_space<vmem>>, vector<8x128xf32>
    %c0_i32_14 = arith.constant 0 : i32
    %16 = arith.index_cast %c0_i32_14 : i32 to index
    %c0_15 = arith.constant 0 : index
    %c0_16 = arith.constant 0 : index
    %17 = vector.load %arg11[%16, %c0_15, %c0_16] : memref<8x8x384xf32, #tpu.memory_space<vmem>>, vector<1x8x384xf32>
    %18 = vector.shape_cast %17 : vector<1x8x384xf32> to vector<8x384xf32>
    %c0_17 = arith.constant 0 : index
    %c0_18 = arith.constant 0 : index
    %19 = vector.load %arg4[%c0_17, %c0_18] : memref<128x384xf32, #tpu.memory_space<vmem>>, vector<128x384xf32>
    %cst_19 = arith.constant dense<0.000000e+00> : vector<8x384xf32>
    %20 = tpu.matmul %15, %19, %cst_19 {dimension_numbers = #tpu.dot_dimension_numbers<[1], [0], [0], [1], [0, 0, 1, 1], [], []>} : vector<8x128xf32>, vector<128x384xf32>, vector<8x384xf32> -> vector<8x384xf32>
    %21 = vector.extract_strided_slice %18 {offsets = [0, 0], sizes = [8, 128], strides = [1, 1]} : vector<8x384xf32> to vector<8x128xf32>
    %22 = vector.extract_strided_slice %20 {offsets = [0, 0], sizes = [8, 128], strides = [1, 1]} : vector<8x384xf32> to vector<8x128xf32>
    %23 = arith.addf %21, %22 : vector<8x128xf32>
    %24 = arith.negf %23 : vector<8x128xf32>
    %25 = math.exp %24 : vector<8x128xf32>
    %cst_20 = arith.constant 1.000000e+00 : f32
    %26 = vector.broadcast %cst_20 : f32 to vector<8x128xf32>
    %27 = arith.addf %26, %25 : vector<8x128xf32>
    %28 = arith.divf %26, %27 : vector<8x128xf32>
    %29 = vector.extract_strided_slice %18 {offsets = [0, 128], sizes = [8, 128], strides = [1, 1]} : vector<8x384xf32> to vector<8x128xf32>
    %30 = vector.extract_strided_slice %20 {offsets = [0, 128], sizes = [8, 128], strides = [1, 1]} : vector<8x384xf32> to vector<8x128xf32>
    %31 = arith.addf %29, %30 : vector<8x128xf32>
    %32 = arith.negf %31 : vector<8x128xf32>
    %33 = math.exp %32 : vector<8x128xf32>
    %cst_21 = arith.constant 1.000000e+00 : f32
    %34 = vector.broadcast %cst_21 : f32 to vector<8x128xf32>
    %35 = arith.addf %34, %33 : vector<8x128xf32>
    %36 = arith.divf %34, %35 : vector<8x128xf32>
    %37 = vector.extract_strided_slice %18 {offsets = [0, 256], sizes = [8, 128], strides = [1, 1]} : vector<8x384xf32> to vector<8x128xf32>
    %38 = vector.extract_strided_slice %20 {offsets = [0, 256], sizes = [8, 128], strides = [1, 1]} : vector<8x384xf32> to vector<8x128xf32>
    %39 = arith.addf %38, %14 : vector<8x128xf32>
    %40 = arith.mulf %28, %39 : vector<8x128xf32>
    %41 = arith.addf %37, %40 : vector<8x128xf32>
    %42 = math.tanh %41 : vector<8x128xf32>
    %43 = arith.subf %15, %42 : vector<8x128xf32>
    %44 = arith.mulf %36, %43 : vector<8x128xf32>
    %45 = arith.addf %42, %44 : vector<8x128xf32>
    %c1_i32 = arith.constant 1 : i32
    %46 = arith.index_cast %c1_i32 : i32 to index
    %c0_22 = arith.constant 0 : index
    %c0_23 = arith.constant 0 : index
    %47 = vector.load %arg11[%46, %c0_22, %c0_23] : memref<8x8x384xf32, #tpu.memory_space<vmem>>, vector<1x8x384xf32>
    %48 = vector.shape_cast %47 : vector<1x8x384xf32> to vector<8x384xf32>
    %c0_24 = arith.constant 0 : index
    %c0_25 = arith.constant 0 : index
    %49 = vector.load %arg4[%c0_24, %c0_25] : memref<128x384xf32, #tpu.memory_space<vmem>>, vector<128x384xf32>
    %cst_26 = arith.constant dense<0.000000e+00> : vector<8x384xf32>
    %50 = tpu.matmul %45, %49, %cst_26 {dimension_numbers = #tpu.dot_dimension_numbers<[1], [0], [0], [1], [0, 0, 1, 1], [], []>} : vector<8x128xf32>, vector<128x384xf32>, vector<8x384xf32> -> vector<8x384xf32>
    %51 = vector.extract_strided_slice %48 {offsets = [0, 0], sizes = [8, 128], strides = [1, 1]} : vector<8x384xf32> to vector<8x128xf32>
    %52 = vector.extract_strided_slice %50 {offsets = [0, 0], sizes = [8, 128], strides = [1, 1]} : vector<8x384xf32> to vector<8x128xf32>
    %53 = arith.addf %51, %52 : vector<8x128xf32>
    %54 = arith.negf %53 : vector<8x128xf32>
    %55 = math.exp %54 : vector<8x128xf32>
    %cst_27 = arith.constant 1.000000e+00 : f32
    %56 = vector.broadcast %cst_27 : f32 to vector<8x128xf32>
    %57 = arith.addf %56, %55 : vector<8x128xf32>
    %58 = arith.divf %56, %57 : vector<8x128xf32>
    %59 = vector.extract_strided_slice %48 {offsets = [0, 128], sizes = [8, 128], strides = [1, 1]} : vector<8x384xf32> to vector<8x128xf32>
    %60 = vector.extract_strided_slice %50 {offsets = [0, 128], sizes = [8, 128], strides = [1, 1]} : vector<8x384xf32> to vector<8x128xf32>
    %61 = arith.addf %59, %60 : vector<8x128xf32>
    %62 = arith.negf %61 : vector<8x128xf32>
    %63 = math.exp %62 : vector<8x128xf32>
    %cst_28 = arith.constant 1.000000e+00 : f32
    %64 = vector.broadcast %cst_28 : f32 to vector<8x128xf32>
    %65 = arith.addf %64, %63 : vector<8x128xf32>
    %66 = arith.divf %64, %65 : vector<8x128xf32>
    %67 = vector.extract_strided_slice %48 {offsets = [0, 256], sizes = [8, 128], strides = [1, 1]} : vector<8x384xf32> to vector<8x128xf32>
    %68 = vector.extract_strided_slice %50 {offsets = [0, 256], sizes = [8, 128], strides = [1, 1]} : vector<8x384xf32> to vector<8x128xf32>
    %69 = arith.addf %68, %14 : vector<8x128xf32>
    %70 = arith.mulf %58, %69 : vector<8x128xf32>
    %71 = arith.addf %67, %70 : vector<8x128xf32>
    %72 = math.tanh %71 : vector<8x128xf32>
    %73 = arith.subf %45, %72 : vector<8x128xf32>
    %74 = arith.mulf %66, %73 : vector<8x128xf32>
    %75 = arith.addf %72, %74 : vector<8x128xf32>
    %c2_i32 = arith.constant 2 : i32
    %76 = arith.index_cast %c2_i32 : i32 to index
    %c0_29 = arith.constant 0 : index
    %c0_30 = arith.constant 0 : index
    %77 = vector.load %arg11[%76, %c0_29, %c0_30] : memref<8x8x384xf32, #tpu.memory_space<vmem>>, vector<1x8x384xf32>
    %78 = vector.shape_cast %77 : vector<1x8x384xf32> to vector<8x384xf32>
    %c0_31 = arith.constant 0 : index
    %c0_32 = arith.constant 0 : index
    %79 = vector.load %arg4[%c0_31, %c0_32] : memref<128x384xf32, #tpu.memory_space<vmem>>, vector<128x384xf32>
    %cst_33 = arith.constant dense<0.000000e+00> : vector<8x384xf32>
    %80 = tpu.matmul %75, %79, %cst_33 {dimension_numbers = #tpu.dot_dimension_numbers<[1], [0], [0], [1], [0, 0, 1, 1], [], []>} : vector<8x128xf32>, vector<128x384xf32>, vector<8x384xf32> -> vector<8x384xf32>
    %81 = vector.extract_strided_slice %78 {offsets = [0, 0], sizes = [8, 128], strides = [1, 1]} : vector<8x384xf32> to vector<8x128xf32>
    %82 = vector.extract_strided_slice %80 {offsets = [0, 0], sizes = [8, 128], strides = [1, 1]} : vector<8x384xf32> to vector<8x128xf32>
    %83 = arith.addf %81, %82 : vector<8x128xf32>
    %84 = arith.negf %83 : vector<8x128xf32>
    %85 = math.exp %84 : vector<8x128xf32>
    %cst_34 = arith.constant 1.000000e+00 : f32
    %86 = vector.broadcast %cst_34 : f32 to vector<8x128xf32>
    %87 = arith.addf %86, %85 : vector<8x128xf32>
    %88 = arith.divf %86, %87 : vector<8x128xf32>
    %89 = vector.extract_strided_slice %78 {offsets = [0, 128], sizes = [8, 128], strides = [1, 1]} : vector<8x384xf32> to vector<8x128xf32>
    %90 = vector.extract_strided_slice %80 {offsets = [0, 128], sizes = [8, 128], strides = [1, 1]} : vector<8x384xf32> to vector<8x128xf32>
    %91 = arith.addf %89, %90 : vector<8x128xf32>
    %92 = arith.negf %91 : vector<8x128xf32>
    %93 = math.exp %92 : vector<8x128xf32>
    %cst_35 = arith.constant 1.000000e+00 : f32
    %94 = vector.broadcast %cst_35 : f32 to vector<8x128xf32>
    %95 = arith.addf %94, %93 : vector<8x128xf32>
    %96 = arith.divf %94, %95 : vector<8x128xf32>
    %97 = vector.extract_strided_slice %78 {offsets = [0, 256], sizes = [8, 128], strides = [1, 1]} : vector<8x384xf32> to vector<8x128xf32>
    %98 = vector.extract_strided_slice %80 {offsets = [0, 256], sizes = [8, 128], strides = [1, 1]} : vector<8x384xf32> to vector<8x128xf32>
    %99 = arith.addf %98, %14 : vector<8x128xf32>
    %100 = arith.mulf %88, %99 : vector<8x128xf32>
    %101 = arith.addf %97, %100 : vector<8x128xf32>
    %102 = math.tanh %101 : vector<8x128xf32>
    %103 = arith.subf %75, %102 : vector<8x128xf32>
    %104 = arith.mulf %96, %103 : vector<8x128xf32>
    %105 = arith.addf %102, %104 : vector<8x128xf32>
    %c3_i32 = arith.constant 3 : i32
    %106 = arith.index_cast %c3_i32 : i32 to index
    %c0_36 = arith.constant 0 : index
    %c0_37 = arith.constant 0 : index
    %107 = vector.load %arg11[%106, %c0_36, %c0_37] : memref<8x8x384xf32, #tpu.memory_space<vmem>>, vector<1x8x384xf32>
    %108 = vector.shape_cast %107 : vector<1x8x384xf32> to vector<8x384xf32>
    %c0_38 = arith.constant 0 : index
    %c0_39 = arith.constant 0 : index
    %109 = vector.load %arg4[%c0_38, %c0_39] : memref<128x384xf32, #tpu.memory_space<vmem>>, vector<128x384xf32>
    %cst_40 = arith.constant dense<0.000000e+00> : vector<8x384xf32>
    %110 = tpu.matmul %105, %109, %cst_40 {dimension_numbers = #tpu.dot_dimension_numbers<[1], [0], [0], [1], [0, 0, 1, 1], [], []>} : vector<8x128xf32>, vector<128x384xf32>, vector<8x384xf32> -> vector<8x384xf32>
    %111 = vector.extract_strided_slice %108 {offsets = [0, 0], sizes = [8, 128], strides = [1, 1]} : vector<8x384xf32> to vector<8x128xf32>
    %112 = vector.extract_strided_slice %110 {offsets = [0, 0], sizes = [8, 128], strides = [1, 1]} : vector<8x384xf32> to vector<8x128xf32>
    %113 = arith.addf %111, %112 : vector<8x128xf32>
    %114 = arith.negf %113 : vector<8x128xf32>
    %115 = math.exp %114 : vector<8x128xf32>
    %cst_41 = arith.constant 1.000000e+00 : f32
    %116 = vector.broadcast %cst_41 : f32 to vector<8x128xf32>
    %117 = arith.addf %116, %115 : vector<8x128xf32>
    %118 = arith.divf %116, %117 : vector<8x128xf32>
    %119 = vector.extract_strided_slice %108 {offsets = [0, 128], sizes = [8, 128], strides = [1, 1]} : vector<8x384xf32> to vector<8x128xf32>
    %120 = vector.extract_strided_slice %110 {offsets = [0, 128], sizes = [8, 128], strides = [1, 1]} : vector<8x384xf32> to vector<8x128xf32>
    %121 = arith.addf %119, %120 : vector<8x128xf32>
    %122 = arith.negf %121 : vector<8x128xf32>
    %123 = math.exp %122 : vector<8x128xf32>
    %cst_42 = arith.constant 1.000000e+00 : f32
    %124 = vector.broadcast %cst_42 : f32 to vector<8x128xf32>
    %125 = arith.addf %124, %123 : vector<8x128xf32>
    %126 = arith.divf %124, %125 : vector<8x128xf32>
    %127 = vector.extract_strided_slice %108 {offsets = [0, 256], sizes = [8, 128], strides = [1, 1]} : vector<8x384xf32> to vector<8x128xf32>
    %128 = vector.extract_strided_slice %110 {offsets = [0, 256], sizes = [8, 128], strides = [1, 1]} : vector<8x384xf32> to vector<8x128xf32>
    %129 = arith.addf %128, %14 : vector<8x128xf32>
    %130 = arith.mulf %118, %129 : vector<8x128xf32>
    %131 = arith.addf %127, %130 : vector<8x128xf32>
    %132 = math.tanh %131 : vector<8x128xf32>
    %133 = arith.subf %105, %132 : vector<8x128xf32>
    %134 = arith.mulf %126, %133 : vector<8x128xf32>
    %135 = arith.addf %132, %134 : vector<8x128xf32>
    %c4_i32 = arith.constant 4 : i32
    %136 = arith.index_cast %c4_i32 : i32 to index
    %c0_43 = arith.constant 0 : index
    %c0_44 = arith.constant 0 : index
    %137 = vector.load %arg11[%136, %c0_43, %c0_44] : memref<8x8x384xf32, #tpu.memory_space<vmem>>, vector<1x8x384xf32>
    %138 = vector.shape_cast %137 : vector<1x8x384xf32> to vector<8x384xf32>
    %c0_45 = arith.constant 0 : index
    %c0_46 = arith.constant 0 : index
    %139 = vector.load %arg4[%c0_45, %c0_46] : memref<128x384xf32, #tpu.memory_space<vmem>>, vector<128x384xf32>
    %cst_47 = arith.constant dense<0.000000e+00> : vector<8x384xf32>
    %140 = tpu.matmul %135, %139, %cst_47 {dimension_numbers = #tpu.dot_dimension_numbers<[1], [0], [0], [1], [0, 0, 1, 1], [], []>} : vector<8x128xf32>, vector<128x384xf32>, vector<8x384xf32> -> vector<8x384xf32>
    %141 = vector.extract_strided_slice %138 {offsets = [0, 0], sizes = [8, 128], strides = [1, 1]} : vector<8x384xf32> to vector<8x128xf32>
    %142 = vector.extract_strided_slice %140 {offsets = [0, 0], sizes = [8, 128], strides = [1, 1]} : vector<8x384xf32> to vector<8x128xf32>
    %143 = arith.addf %141, %142 : vector<8x128xf32>
    %144 = arith.negf %143 : vector<8x128xf32>
    %145 = math.exp %144 : vector<8x128xf32>
    %cst_48 = arith.constant 1.000000e+00 : f32
    %146 = vector.broadcast %cst_48 : f32 to vector<8x128xf32>
    %147 = arith.addf %146, %145 : vector<8x128xf32>
    %148 = arith.divf %146, %147 : vector<8x128xf32>
    %149 = vector.extract_strided_slice %138 {offsets = [0, 128], sizes = [8, 128], strides = [1, 1]} : vector<8x384xf32> to vector<8x128xf32>
    %150 = vector.extract_strided_slice %140 {offsets = [0, 128], sizes = [8, 128], strides = [1, 1]} : vector<8x384xf32> to vector<8x128xf32>
    %151 = arith.addf %149, %150 : vector<8x128xf32>
    %152 = arith.negf %151 : vector<8x128xf32>
    %153 = math.exp %152 : vector<8x128xf32>
    %cst_49 = arith.constant 1.000000e+00 : f32
    %154 = vector.broadcast %cst_49 : f32 to vector<8x128xf32>
    %155 = arith.addf %154, %153 : vector<8x128xf32>
    %156 = arith.divf %154, %155 : vector<8x128xf32>
    %157 = vector.extract_strided_slice %138 {offsets = [0, 256], sizes = [8, 128], strides = [1, 1]} : vector<8x384xf32> to vector<8x128xf32>
    %158 = vector.extract_strided_slice %140 {offsets = [0, 256], sizes = [8, 128], strides = [1, 1]} : vector<8x384xf32> to vector<8x128xf32>
    %159 = arith.addf %158, %14 : vector<8x128xf32>
    %160 = arith.mulf %148, %159 : vector<8x128xf32>
    %161 = arith.addf %157, %160 : vector<8x128xf32>
    %162 = math.tanh %161 : vector<8x128xf32>
    %163 = arith.subf %135, %162 : vector<8x128xf32>
    %164 = arith.mulf %156, %163 : vector<8x128xf32>
    %165 = arith.addf %162, %164 : vector<8x128xf32>
    %c5_i32 = arith.constant 5 : i32
    %166 = arith.index_cast %c5_i32 : i32 to index
    %c0_50 = arith.constant 0 : index
    %c0_51 = arith.constant 0 : index
    %167 = vector.load %arg11[%166, %c0_50, %c0_51] : memref<8x8x384xf32, #tpu.memory_space<vmem>>, vector<1x8x384xf32>
    %168 = vector.shape_cast %167 : vector<1x8x384xf32> to vector<8x384xf32>
    %c0_52 = arith.constant 0 : index
    %c0_53 = arith.constant 0 : index
    %169 = vector.load %arg4[%c0_52, %c0_53] : memref<128x384xf32, #tpu.memory_space<vmem>>, vector<128x384xf32>
    %cst_54 = arith.constant dense<0.000000e+00> : vector<8x384xf32>
    %170 = tpu.matmul %165, %169, %cst_54 {dimension_numbers = #tpu.dot_dimension_numbers<[1], [0], [0], [1], [0, 0, 1, 1], [], []>} : vector<8x128xf32>, vector<128x384xf32>, vector<8x384xf32> -> vector<8x384xf32>
    %171 = vector.extract_strided_slice %168 {offsets = [0, 0], sizes = [8, 128], strides = [1, 1]} : vector<8x384xf32> to vector<8x128xf32>
    %172 = vector.extract_strided_slice %170 {offsets = [0, 0], sizes = [8, 128], strides = [1, 1]} : vector<8x384xf32> to vector<8x128xf32>
    %173 = arith.addf %171, %172 : vector<8x128xf32>
    %174 = arith.negf %173 : vector<8x128xf32>
    %175 = math.exp %174 : vector<8x128xf32>
    %cst_55 = arith.constant 1.000000e+00 : f32
    %176 = vector.broadcast %cst_55 : f32 to vector<8x128xf32>
    %177 = arith.addf %176, %175 : vector<8x128xf32>
    %178 = arith.divf %176, %177 : vector<8x128xf32>
    %179 = vector.extract_strided_slice %168 {offsets = [0, 128], sizes = [8, 128], strides = [1, 1]} : vector<8x384xf32> to vector<8x128xf32>
    %180 = vector.extract_strided_slice %170 {offsets = [0, 128], sizes = [8, 128], strides = [1, 1]} : vector<8x384xf32> to vector<8x128xf32>
    %181 = arith.addf %179, %180 : vector<8x128xf32>
    %182 = arith.negf %181 : vector<8x128xf32>
    %183 = math.exp %182 : vector<8x128xf32>
    %cst_56 = arith.constant 1.000000e+00 : f32
    %184 = vector.broadcast %cst_56 : f32 to vector<8x128xf32>
    %185 = arith.addf %184, %183 : vector<8x128xf32>
    %186 = arith.divf %184, %185 : vector<8x128xf32>
    %187 = vector.extract_strided_slice %168 {offsets = [0, 256], sizes = [8, 128], strides = [1, 1]} : vector<8x384xf32> to vector<8x128xf32>
    %188 = vector.extract_strided_slice %170 {offsets = [0, 256], sizes = [8, 128], strides = [1, 1]} : vector<8x384xf32> to vector<8x128xf32>
    %189 = arith.addf %188, %14 : vector<8x128xf32>
    %190 = arith.mulf %178, %189 : vector<8x128xf32>
    %191 = arith.addf %187, %190 : vector<8x128xf32>
    %192 = math.tanh %191 : vector<8x128xf32>
    %193 = arith.subf %165, %192 : vector<8x128xf32>
    %194 = arith.mulf %186, %193 : vector<8x128xf32>
    %195 = arith.addf %192, %194 : vector<8x128xf32>
    %c6_i32 = arith.constant 6 : i32
    %196 = arith.index_cast %c6_i32 : i32 to index
    %c0_57 = arith.constant 0 : index
    %c0_58 = arith.constant 0 : index
    %197 = vector.load %arg11[%196, %c0_57, %c0_58] : memref<8x8x384xf32, #tpu.memory_space<vmem>>, vector<1x8x384xf32>
    %198 = vector.shape_cast %197 : vector<1x8x384xf32> to vector<8x384xf32>
    %c0_59 = arith.constant 0 : index
    %c0_60 = arith.constant 0 : index
    %199 = vector.load %arg4[%c0_59, %c0_60] : memref<128x384xf32, #tpu.memory_space<vmem>>, vector<128x384xf32>
    %cst_61 = arith.constant dense<0.000000e+00> : vector<8x384xf32>
    %200 = tpu.matmul %195, %199, %cst_61 {dimension_numbers = #tpu.dot_dimension_numbers<[1], [0], [0], [1], [0, 0, 1, 1], [], []>} : vector<8x128xf32>, vector<128x384xf32>, vector<8x384xf32> -> vector<8x384xf32>
    %201 = vector.extract_strided_slice %198 {offsets = [0, 0], sizes = [8, 128], strides = [1, 1]} : vector<8x384xf32> to vector<8x128xf32>
    %202 = vector.extract_strided_slice %200 {offsets = [0, 0], sizes = [8, 128], strides = [1, 1]} : vector<8x384xf32> to vector<8x128xf32>
    %203 = arith.addf %201, %202 : vector<8x128xf32>
    %204 = arith.negf %203 : vector<8x128xf32>
    %205 = math.exp %204 : vector<8x128xf32>
    %cst_62 = arith.constant 1.000000e+00 : f32
    %206 = vector.broadcast %cst_62 : f32 to vector<8x128xf32>
    %207 = arith.addf %206, %205 : vector<8x128xf32>
    %208 = arith.divf %206, %207 : vector<8x128xf32>
    %209 = vector.extract_strided_slice %198 {offsets = [0, 128], sizes = [8, 128], strides = [1, 1]} : vector<8x384xf32> to vector<8x128xf32>
    %210 = vector.extract_strided_slice %200 {offsets = [0, 128], sizes = [8, 128], strides = [1, 1]} : vector<8x384xf32> to vector<8x128xf32>
    %211 = arith.addf %209, %210 : vector<8x128xf32>
    %212 = arith.negf %211 : vector<8x128xf32>
    %213 = math.exp %212 : vector<8x128xf32>
    %cst_63 = arith.constant 1.000000e+00 : f32
    %214 = vector.broadcast %cst_63 : f32 to vector<8x128xf32>
    %215 = arith.addf %214, %213 : vector<8x128xf32>
    %216 = arith.divf %214, %215 : vector<8x128xf32>
    %217 = vector.extract_strided_slice %198 {offsets = [0, 256], sizes = [8, 128], strides = [1, 1]} : vector<8x384xf32> to vector<8x128xf32>
    %218 = vector.extract_strided_slice %200 {offsets = [0, 256], sizes = [8, 128], strides = [1, 1]} : vector<8x384xf32> to vector<8x128xf32>
    %219 = arith.addf %218, %14 : vector<8x128xf32>
    %220 = arith.mulf %208, %219 : vector<8x128xf32>
    %221 = arith.addf %217, %220 : vector<8x128xf32>
    %222 = math.tanh %221 : vector<8x128xf32>
    %223 = arith.subf %195, %222 : vector<8x128xf32>
    %224 = arith.mulf %216, %223 : vector<8x128xf32>
    %225 = arith.addf %222, %224 : vector<8x128xf32>
    %c7_i32 = arith.constant 7 : i32
    %226 = arith.index_cast %c7_i32 : i32 to index
    %c0_64 = arith.constant 0 : index
    %c0_65 = arith.constant 0 : index
    %227 = vector.load %arg11[%226, %c0_64, %c0_65] : memref<8x8x384xf32, #tpu.memory_space<vmem>>, vector<1x8x384xf32>
    %228 = vector.shape_cast %227 : vector<1x8x384xf32> to vector<8x384xf32>
    %c0_66 = arith.constant 0 : index
    %c0_67 = arith.constant 0 : index
    %229 = vector.load %arg4[%c0_66, %c0_67] : memref<128x384xf32, #tpu.memory_space<vmem>>, vector<128x384xf32>
    %cst_68 = arith.constant dense<0.000000e+00> : vector<8x384xf32>
    %230 = tpu.matmul %225, %229, %cst_68 {dimension_numbers = #tpu.dot_dimension_numbers<[1], [0], [0], [1], [0, 0, 1, 1], [], []>} : vector<8x128xf32>, vector<128x384xf32>, vector<8x384xf32> -> vector<8x384xf32>
    %231 = vector.extract_strided_slice %228 {offsets = [0, 0], sizes = [8, 128], strides = [1, 1]} : vector<8x384xf32> to vector<8x128xf32>
    %232 = vector.extract_strided_slice %230 {offsets = [0, 0], sizes = [8, 128], strides = [1, 1]} : vector<8x384xf32> to vector<8x128xf32>
    %233 = arith.addf %231, %232 : vector<8x128xf32>
    %234 = arith.negf %233 : vector<8x128xf32>
    %235 = math.exp %234 : vector<8x128xf32>
    %cst_69 = arith.constant 1.000000e+00 : f32
    %236 = vector.broadcast %cst_69 : f32 to vector<8x128xf32>
    %237 = arith.addf %236, %235 : vector<8x128xf32>
    %238 = arith.divf %236, %237 : vector<8x128xf32>
    %239 = vector.extract_strided_slice %228 {offsets = [0, 128], sizes = [8, 128], strides = [1, 1]} : vector<8x384xf32> to vector<8x128xf32>
    %240 = vector.extract_strided_slice %230 {offsets = [0, 128], sizes = [8, 128], strides = [1, 1]} : vector<8x384xf32> to vector<8x128xf32>
    %241 = arith.addf %239, %240 : vector<8x128xf32>
    %242 = arith.negf %241 : vector<8x128xf32>
    %243 = math.exp %242 : vector<8x128xf32>
    %cst_70 = arith.constant 1.000000e+00 : f32
    %244 = vector.broadcast %cst_70 : f32 to vector<8x128xf32>
    %245 = arith.addf %244, %243 : vector<8x128xf32>
    %246 = arith.divf %244, %245 : vector<8x128xf32>
    %247 = vector.extract_strided_slice %228 {offsets = [0, 256], sizes = [8, 128], strides = [1, 1]} : vector<8x384xf32> to vector<8x128xf32>
    %248 = vector.extract_strided_slice %230 {offsets = [0, 256], sizes = [8, 128], strides = [1, 1]} : vector<8x384xf32> to vector<8x128xf32>
    %249 = arith.addf %248, %14 : vector<8x128xf32>
    %250 = arith.mulf %238, %249 : vector<8x128xf32>
    %251 = arith.addf %247, %250 : vector<8x128xf32>
    %252 = math.tanh %251 : vector<8x128xf32>
    %253 = arith.subf %225, %252 : vector<8x128xf32>
    %254 = arith.mulf %246, %253 : vector<8x128xf32>
    %255 = arith.addf %252, %254 : vector<8x128xf32>
    %c8_i32 = arith.constant 8 : i32
    %c0_71 = arith.constant 0 : index
    %c0_72 = arith.constant 0 : index
    %256 = vector.load %arg10[%c0_71, %c0_72] : memref<8x128xf32, #tpu.memory_space<vmem>>, vector<8x128xf32>
    tpu.vector_store %arg10[%c0_71, %c0_72], %255 {strides = array<i32>} : memref<8x128xf32, #tpu.memory_space<vmem>>, vector<8x128xf32>,
    %c0_i32_73 = arith.constant 0 : i32
    %257 = arith.cmpi eq, %arg1, %c0_i32_73 : i32
    %258 = arith.extui %257 : i1 to i32
    %c0_i32_74 = arith.constant 0 : i32
    %259 = arith.cmpi ne, %258, %c0_i32_74 : i32
    scf.if %259 {
      %c0_75 = arith.constant 0 : index
      %c0_76 = arith.constant 0 : index
      %260 = vector.load %arg7[%c0_75, %c0_76] : memref<128x4xf32, #tpu.memory_space<vmem>>, vector<128x4xf32>
      %cst_77 = arith.constant dense<0.000000e+00> : vector<8x4xf32>
      %261 = tpu.matmul %255, %260, %cst_77 {dimension_numbers = #tpu.dot_dimension_numbers<[1], [0], [0], [1], [0, 0, 1, 1], [], []>} : vector<8x128xf32>, vector<128x4xf32>, vector<8x4xf32> -> vector<8x4xf32>
      %c0_78 = arith.constant 0 : index
      %c0_79 = arith.constant 0 : index
      %262 = vector.load %arg8[%c0_78, %c0_79] : memref<1x4xf32, #tpu.memory_space<vmem>>, vector<1x4xf32>
      %263 = vector.broadcast %262 : vector<1x4xf32> to vector<8x4xf32>
      %264 = arith.addf %261, %263 : vector<8x4xf32>
      %c0_80 = arith.constant 0 : index
      %c0_81 = arith.constant 0 : index
      %265 = vector.load %arg9[%c0_80, %c0_81] : memref<8x4xf32, #tpu.memory_space<vmem>>, vector<8x4xf32>
      tpu.vector_store %arg9[%c0_80, %c0_81], %264 {strides = array<i32>} : memref<8x4xf32, #tpu.memory_space<vmem>>, vector<8x4xf32>,
    } else {
    }
    return
  }
  func.func @transform_0(%arg0: i32, %arg1: i32) -> (i32, i32, i32) {
    %c0_i32 = arith.constant 0 : i32
    %c0_i32_0 = arith.constant 0 : i32
    return %arg1, %arg0, %c0_i32 : i32, i32, i32
  }
  func.func @transform_1(%arg0: i32, %arg1: i32) -> (i32, i32) {
    %c0_i32 = arith.constant 0 : i32
    %c0_i32_0 = arith.constant 0 : i32
    %c0_i32_1 = arith.constant 0 : i32
    return %c0_i32, %c0_i32_0 : i32, i32
  }
  func.func @transform_2(%arg0: i32, %arg1: i32) -> (i32, i32) {
    %c0_i32 = arith.constant 0 : i32
    %c0_i32_0 = arith.constant 0 : i32
    %c0_i32_1 = arith.constant 0 : i32
    return %c0_i32, %c0_i32_0 : i32, i32
  }
  func.func @transform_3(%arg0: i32, %arg1: i32) -> (i32, i32) {
    %c0_i32 = arith.constant 0 : i32
    %c0_i32_0 = arith.constant 0 : i32
    %c0_i32_1 = arith.constant 0 : i32
    return %c0_i32, %c0_i32_0 : i32, i32
  }
  func.func @transform_4(%arg0: i32, %arg1: i32) -> (i32, i32) {
    %c0_i32 = arith.constant 0 : i32
    %c0_i32_0 = arith.constant 0 : i32
    %c0_i32_1 = arith.constant 0 : i32
    return %c0_i32, %c0_i32_0 : i32, i32
  }
  func.func @transform_5(%arg0: i32, %arg1: i32) -> (i32, i32) {
    %c0_i32 = arith.constant 0 : i32
    %c0_i32_0 = arith.constant 0 : i32
    %c0_i32_1 = arith.constant 0 : i32
    return %c0_i32, %c0_i32_0 : i32, i32
  }
  func.func @transform_6(%arg0: i32, %arg1: i32) -> (i32, i32) {
    %c0_i32 = arith.constant 0 : i32
    %c0_i32_0 = arith.constant 0 : i32
    %c0_i32_1 = arith.constant 0 : i32
    return %c0_i32, %c0_i32_0 : i32, i32
  }
  func.func @transform_7(%arg0: i32, %arg1: i32) -> (i32, i32) {
    %c0_i32 = arith.constant 0 : i32
    %c0_i32_0 = arith.constant 0 : i32
    return %arg0, %c0_i32 : i32, i32
  }
}

</mosaic_0001>

<llo_original>
// kernel: gru_forward.2
$region0: #{gru_forward.2}
  #allocation0 [shape = 'u32[]', space=smem, size = 0x4, offset = 0x4, fixed_abs, tag = 'smem constant byte address 0x4 - core index']
  #allocation1 [shape = 'u32[144,128]{1,0:T(1,128)}', space=vmem, size = 0x12000, scoped, tag = 'internal scratch']
  #allocation2 [shape = 'f32[8,128]{1,0:T(8,128)}', space=vmem, size = 0x1000, scoped, tag = 'scratch operand']
  #allocation3 [shape = 'f32[8,8,384]{2,1,0:T(8,128)}', space=vmem, size = 0x18000, scoped, tag = 'scratch operand']
  %s0 = inlined_call_operand.vmem [shape: f32[8,8,4], index: 0, kind: input, shape index: {}]
  %s1 = inlined_call_operand.vmem [shape: f32[4,384], index: 1, kind: input, shape index: {}]
  %s2 = inlined_call_operand.vmem [shape: f32[128,384], index: 2, kind: input, shape index: {}]
  %s3 = inlined_call_operand.vmem [shape: f32[1,384], index: 3, kind: input, shape index: {}]
  %s4 = inlined_call_operand.vmem [shape: f32[1,128], index: 4, kind: input, shape index: {}]
  %s5 = inlined_call_operand.vmem [shape: f32[8,8,128], index: 5, kind: output, shape index: {}]
  %s6 = sld [smem:[#allocation0]]
  $region34: #{gru_forward.2} parent=0
    _
  %s8 = ssub.s32 1, %s6
  %s9 = scalar_select 0, %s8, %s6
  // Predicated region
  $region2: #{gru_forward.2} parent=0 // pred_check
    _
  $region3: #{gru_forward.2} parent=0 // pred_check_branch
    %11 = sbr.rel (0) target = $region5
  $region4: #{gru_forward.2} parent=0 // pred_region
    _
  $region5: #{gru_forward.2} parent=0 // pred_fallthru
    _
  // Predicated region
  $region6: #{gru_forward.2} parent=0 // pred_check
    _
  $region7: #{gru_forward.2} parent=0 // pred_check_branch
    %13 = sbr.rel (0) target = $region9
  $region8: #{gru_forward.2} parent=0 // pred_region
    _
  $region9: #{gru_forward.2} parent=0 // pred_fallthru
    _
  // Predicated region
  $region10: #{gru_forward.2} parent=0 // pred_check
    _
  $region11: #{gru_forward.2} parent=0 // pred_check_branch
    %15 = sbr.rel (0) target = $region13
  $region12: #{gru_forward.2} parent=0 // pred_region
    _
  $region13: #{gru_forward.2} parent=0 // pred_fallthru
    _
  // Predicated region
  $region14: #{gru_forward.2} parent=0 // pred_check
    _
  $region15: #{gru_forward.2} parent=0 // pred_check_branch
    %17 = sbr.rel (0) target = $region17
  $region16: #{gru_forward.2} parent=0 // pred_region
    _
  $region17: #{gru_forward.2} parent=0 // pred_fallthru
    _
  // Predicated region
  $region18: #{gru_forward.2} parent=0 // pred_check
    _
  $region19: #{gru_forward.2} parent=0 // pred_check_branch
    %19 = sbr.rel (0) target = $region21
  $region20: #{gru_forward.2} parent=0 // pred_region
    _
  $region21: #{gru_forward.2} parent=0 // pred_fallthru
    _
  %p20 = scmp.eq.s32.totalorder 0, 0
  // Predicated region
  $region22: #{gru_forward.2} parent=0 // pred_check
    %p21 = pneg %p20
  $region23: #{gru_forward.2} parent=0 // pred_check_branch
    %23 = sbr.rel (%p21) target = $region25
  $region24: #{gru_forward.2} parent=0 // pred_region
    %24 = vst [vmem:[#allocation2] sm:$0xff] 0.0
  $region25: #{gru_forward.2} parent=0 // pred_fallthru
    _
  %v25 = vld [vmem:[%s0] sm:$0xff]
  %v26 = vld [vmem:[%s0 + $0x8] sm:$0xff]
  %v27 = vld [vmem:[%s0 + $0x10] sm:$0xff]
  %v28 = vld [vmem:[%s0 + $0x18] sm:$0xff]
  %v29 = vld [vmem:[%s0 + $0x20] sm:$0xff]
  %v30 = vld [vmem:[%s0 + $0x28] sm:$0xff]
  %v31 = vld [vmem:[%s0 + $0x30] sm:$0xff]
  %v32 = vld [vmem:[%s0 + $0x38] sm:$0xff]
  %v33 = vld [vmem:[%s1] sm:$0xff]
  %v34 = vld [vmem:[%s1 + $0x8] sm:$0xf]
  %v35 = vld [vmem:[%s3] sm:$0x7]
  %v37 = vlaneseq
  %v38 = vshrl.u32 %v37, 7
  %v39 = vsub.s32 0, %v38
  %v40 = vrot.slane %v35, %v39
  %v41 = vlaneseq
  %v42 = vshrl.u32 %v41, 7
  %v43 = vsub.s32 1, %v42
  %v44 = vrot.slane %v35, %v43
  %v45 = vlaneseq
  %v46 = vshrl.u32 %v45, 7
  %v47 = vsub.s32 2, %v46
  %v48 = vrot.slane %v35, %v47
  %v54 = vcombine.high %v33, %v33
  %vm55 = vcmask 31744
  %v57 = vsel %vm55, %v25, 0
  %v60 = vsel %vm55, %v26, 0
  %v63 = vsel %vm55, %v27, 0
  %v66 = vsel %vm55, %v28, 0
  %v69 = vsel %vm55, %v29, 0
  %v72 = vsel %vm55, %v30, 0
  %v75 = vsel %vm55, %v31, 0
  %v78 = vsel %vm55, %v32, 0
  %vm80 = vcmask 1043456
  %v81 = vsel %vm80, %v33, 0
  %v83 = vsel %vm80, %v54, 0
  %v85 = vsel %vm80, %v34, 0
  %87 = vmatprep.subr.mxu0 0.0
  %88 = vmatpush1.msra.mxu0 0.0
  %89 = vmatprep.subr.mxu0 0.0
  %90 = vmatpush1.msra.mxu0 0.0
  %91 = vmatprep.subr.mxu0 0.0
  %92 = vmatpush1.msra.mxu0 0.0
  %93 = vmatprep.subr.mxu0 0.0
  %94 = vmatpush1.msra.mxu0 0.0
  %95 = vmatprep.subr.mxu0 0.0
  %96 = vmatpush1.msra.mxu0 0.0
  %97 = vmatprep.subr.mxu0 0.0
  %98 = vmatpush1.msra.mxu0 0.0
  %99 = vmatprep.subr.mxu0 0.0
  %100 = vmatpush1.msra.mxu0 0.0
  %101 = vmatprep.subr.mxu0 0.0
  %102 = vmatpush1.msra.mxu0 0.0
  %103 = vmatprep.subr.mxu0 0.0
  %104 = vmatpush1.msra.mxu0 0.0
  %105 = vmatprep.subr.mxu0 0.0
  %106 = vmatpush1.msra.mxu0 0.0
  %107 = vmatprep.subr.mxu0 0.0
  %108 = vmatpush1.msra.mxu0 0.0
  %109 = vmatprep.subr.mxu0 0.0
  %110 = vmatpush1.msra.mxu0 0.0
  %111 = vmatprep.subr.mxu0 0.0
  %112 = vmatpush1.msra.mxu0 0.0
  %113 = vmatprep.subr.mxu0 0.0
  %114 = vmatpush1.msra.mxu0 0.0
  %115 = vmatprep.subr.mxu0 0.0
  %116 = vmatpush1.msra.mxu0 0.0
  %117 = vmatprep.subr.mxu0 %v83
  %118 = vmatpush1.msra.mxu0 %v81
  %119 = vmatprep.subr.mxu0 0.0
  %120 = vmatpush2.msra.mxu0 0.0
  %121 = vmatprep.subr.mxu0 0.0
  %122 = vmatpush2.msra.mxu0 0.0
  %123 = vmatprep.subr.mxu0 0.0
  %124 = vmatpush2.msra.mxu0 0.0
  %125 = vmatprep.subr.mxu0 0.0
  %126 = vmatpush2.msra.mxu0 0.0
  %127 = vmatprep.subr.mxu0 0.0
  %128 = vmatpush2.msra.mxu0 0.0
  %129 = vmatprep.subr.mxu0 0.0
  %130 = vmatpush2.msra.mxu0 0.0
  %131 = vmatprep.subr.mxu0 0.0
  %132 = vmatpush2.msra.mxu0 0.0
  %133 = vmatprep.subr.mxu0 0.0
  %134 = vmatpush2.msra.mxu0 0.0
  %135 = vmatprep.subr.mxu0 0.0
  %136 = vmatpush2.msra.mxu0 0.0
  %137 = vmatprep.subr.mxu0 0.0
  %138 = vmatpush2.msra.mxu0 0.0
  %139 = vmatprep.subr.mxu0 0.0
  %140 = vmatpush2.msra.mxu0 0.0
  %141 = vmatprep.subr.mxu0 0.0
  %142 = vmatpush2.msra.mxu0 0.0
  %143 = vmatprep.subr.mxu0 0.0
  %144 = vmatpush2.msra.mxu0 0.0
  %145 = vmatprep.subr.mxu0 0.0
  %146 = vmatpush2.msra.mxu0 0.0
  %147 = vmatprep.subr.mxu0 0.0
  %148 = vmatpush2.msra.mxu0 0.0
  %149 = vmatprep.subr.mxu0 0.0
  %150 = vmatpush2.msra.mxu0 0.0
  %151 = vmatprep.mubr.f32.mxu0 0.0
  %152 = vmatmul.mubr.f32.gmra.mxu0 %v57
  %v153 = vpop.f32.mrf.mxu0
  %v154 = vadd.f32 %v40, %v153
  %v155 = vpop.f32.mrf.mxu0
  %v156 = vadd.f32 %v44, %v155
  %157 = vmatprep.mubr.f32.mxu0 0.0
  %158 = vmatmul.mubr.f32.gmra.mxu0 %v60
  %v159 = vpop.f32.mrf.mxu0
  %v160 = vadd.f32 %v40, %v159
  %v161 = vpop.f32.mrf.mxu0
  %v162 = vadd.f32 %v44, %v161
  %163 = vmatprep.mubr.f32.mxu0 0.0
  %164 = vmatmul.mubr.f32.gmra.mxu0 %v63
  %v165 = vpop.f32.mrf.mxu0
  %v166 = vadd.f32 %v40, %v165
  %v167 = vpop.f32.mrf.mxu0
  %v168 = vadd.f32 %v44, %v167
  %169 = vmatprep.mubr.f32.mxu0 0.0
  %170 = vmatmul.mubr.f32.gmra.mxu0 %v66
  %v171 = vpop.f32.mrf.mxu0
  %v172 = vadd.f32 %v40, %v171
  %v173 = vpop.f32.mrf.mxu0
  %v174 = vadd.f32 %v44, %v173
  %175 = vmatprep.mubr.f32.mxu0 0.0
  %176 = vmatmul.mubr.f32.gmra.mxu0 %v69
  %v177 = vpop.f32.mrf.mxu0
  %v178 = vadd.f32 %v40, %v177
  %v179 = vpop.f32.mrf.mxu0
  %v180 = vadd.f32 %v44, %v179
  %181 = vmatprep.mubr.f32.mxu0 0.0
  %182 = vmatmul.mubr.f32.gmra.mxu0 %v72
  %v183 = vpop.f32.mrf.mxu0
  %v184 = vadd.f32 %v40, %v183
  %v185 = vpop.f32.mrf.mxu0
  %v186 = vadd.f32 %v44, %v185
  %187 = vmatprep.mubr.f32.mxu0 0.0
  %188 = vmatmul.mubr.f32.gmra.mxu0 %v75
  %v189 = vpop.f32.mrf.mxu0
  %v190 = vadd.f32 %v40, %v189
  %v191 = vpop.f32.mrf.mxu0
  %v192 = vadd.f32 %v44, %v191
  %193 = vmatprep.mubr.f32.mxu0 0.0
  %194 = vmatmul.mubr.f32.gmra.mxu0 %v78
  %v195 = vpop.f32.mrf.mxu0
  %v196 = vadd.f32 %v40, %v195
  %v197 = vpop.f32.mrf.mxu0
  %v198 = vadd.f32 %v44, %v197
  %199 = vdwg.mxu0
  %200 = vmatprep.subr.mxu0 0.0
  %201 = vmatpush1.msra.mxu0 0.0
  %202 = vmatprep.subr.mxu0 0.0
  %203 = vmatpush1.msra.mxu0 0.0
  %204 = vmatprep.subr.mxu0 0.0
  %205 = vmatpush1.msra.mxu0 0.0
  %206 = vmatprep.subr.mxu0 0.0
  %207 = vmatpush1.msra.mxu0 0.0
  %208 = vmatprep.subr.mxu0 0.0
  %209 = vmatpush1.msra.mxu0 0.0
  %210 = vmatprep.subr.mxu0 0.0
  %211 = vmatpush1.msra.mxu0 0.0
  %212 = vmatprep.subr.mxu0 0.0
  %213 = vmatpush1.msra.mxu0 0.0
  %214 = vmatprep.subr.mxu0 0.0
  %215 = vmatpush1.msra.mxu0 0.0
  %216 = vmatprep.subr.mxu0 0.0
  %217 = vmatpush1.msra.mxu0 0.0
  %218 = vmatprep.subr.mxu0 0.0
  %219 = vmatpush1.msra.mxu0 0.0
  %220 = vmatprep.subr.mxu0 0.0
  %221 = vmatpush1.msra.mxu0 0.0
  %222 = vmatprep.subr.mxu0 0.0
  %223 = vmatpush1.msra.mxu0 0.0
  %224 = vmatprep.subr.mxu0 0.0
  %225 = vmatpush1.msra.mxu0 0.0
  %226 = vmatprep.subr.mxu0 0.0
  %227 = vmatpush1.msra.mxu0 0.0
  %228 = vmatprep.subr.mxu0 0.0
  %229 = vmatpush1.msra.mxu0 0.0
  %230 = vmatprep.subr.mxu0 0.0
  %231 = vmatpush1.msra.mxu0 %v85
  %232 = vmatprep.subr.mxu0 0.0
  %233 = vmatpush2.msra.mxu0 0.0
  %234 = vmatprep.subr.mxu0 0.0
  %235 = vmatpush2.msra.mxu0 0.0
  %236 = vmatprep.subr.mxu0 0.0
  %237 = vmatpush2.msra.mxu0 0.0
  %238 = vmatprep.subr.mxu0 0.0
  %239 = vmatpush2.msra.mxu0 0.0
  %240 = vmatprep.subr.mxu0 0.0
  %241 = vmatpush2.msra.mxu0 0.0
  %242 = vmatprep.subr.mxu0 0.0
  %243 = vmatpush2.msra.mxu0 0.0
  %244 = vmatprep.subr.mxu0 0.0
  %245 = vmatpush2.msra.mxu0 0.0
  %246 = vmatprep.subr.mxu0 0.0
  %247 = vmatpush2.msra.mxu0 0.0
  %248 = vmatprep.subr.mxu0 0.0
  %249 = vmatpush2.msra.mxu0 0.0
  %250 = vmatprep.subr.mxu0 0.0
  %251 = vmatpush2.msra.mxu0 0.0
  %252 = vmatprep.subr.mxu0 0.0
  %253 = vmatpush2.msra.mxu0 0.0
  %254 = vmatprep.subr.mxu0 0.0
  %255 = vmatpush2.msra.mxu0 0.0
  %256 = vmatprep.subr.mxu0 0.0
  %257 = vmatpush2.msra.mxu0 0.0
  %258 = vmatprep.subr.mxu0 0.0
  %259 = vmatpush2.msra.mxu0 0.0
  %260 = vmatprep.subr.mxu0 0.0
  %261 = vmatpush2.msra.mxu0 0.0
  %262 = vmatprep.subr.mxu0 0.0
  %263 = vmatpush2.msra.mxu0 0.0
  %264 = vmatprep.mubr.f32.mxu0 0.0
  %265 = vmatmul.mubr.f32.gmra.mxu0 %v57
  %v266 = vpop.f32.mrf.mxu0
  %v267 = vadd.f32 %v48, %v266
  %v268 = vpop.f32.mrf.mxu0
  %269 = vmatprep.mubr.f32.mxu0 0.0
  %270 = vmatmul.mubr.f32.gmra.mxu0 %v60
  %v271 = vpop.f32.mrf.mxu0
  %v272 = vadd.f32 %v48, %v271
  %v273 = vpop.f32.mrf.mxu0
  %274 = vmatprep.mubr.f32.mxu0 0.0
  %275 = vmatmul.mubr.f32.gmra.mxu0 %v63
  %v276 = vpop.f32.mrf.mxu0
  %v277 = vadd.f32 %v48, %v276
  %v278 = vpop.f32.mrf.mxu0
  %279 = vmatprep.mubr.f32.mxu0 0.0
  %280 = vmatmul.mubr.f32.gmra.mxu0 %v66
  %v281 = vpop.f32.mrf.mxu0
  %v282 = vadd.f32 %v48, %v281
  %v283 = vpop.f32.mrf.mxu0
  %284 = vmatprep.mubr.f32.mxu0 0.0
  %285 = vmatmul.mubr.f32.gmra.mxu0 %v69
  %v286 = vpop.f32.mrf.mxu0
  %v287 = vadd.f32 %v48, %v286
  %v288 = vpop.f32.mrf.mxu0
  %289 = vmatprep.mubr.f32.mxu0 0.0
  %290 = vmatmul.mubr.f32.gmra.mxu0 %v72
  %v291 = vpop.f32.mrf.mxu0
  %v292 = vadd.f32 %v48, %v291
  %v293 = vpop.f32.mrf.mxu0
  %294 = vmatprep.mubr.f32.mxu0 0.0
  %295 = vmatmul.mubr.f32.gmra.mxu0 %v75
  %v296 = vpop.f32.mrf.mxu0
  %v297 = vadd.f32 %v48, %v296
  %v298 = vpop.f32.mrf.mxu0
  %299 = vmatprep.mubr.f32.mxu0 0.0
  %300 = vmatmul.mubr.f32.gmra.mxu0 %v78
  %v301 = vpop.f32.mrf.mxu0
  %v302 = vadd.f32 %v48, %v301
  %v303 = vpop.f32.mrf.mxu0
  %304 = vdwg.mxu0
  %305 = vst [vmem:[#allocation3] sm:$0xff] %v154
  %306 = vst [vmem:[#allocation3 + $0x8] sm:$0xff] %v156
  %307 = vst [vmem:[#allocation3 + $0x10] sm:$0xff] %v267
  %308 = vst [vmem:[#allocation3 + $0x18] sm:$0xff] %v160
  %309 = vst [vmem:[#allocation3 + $0x20] sm:$0xff] %v162
  %310 = vst [vmem:[#allocation3 + $0x28] sm:$0xff] %v272
  %311 = vst [vmem:[#allocation3 + $0x30] sm:$0xff] %v166
  %312 = vst [vmem:[#allocation3 + $0x38] sm:$0xff] %v168
  %313 = vst [vmem:[#allocation3 + $0x40] sm:$0xff] %v277
  %314 = vst [vmem:[#allocation3 + $0x48] sm:$0xff] %v172
  %315 = vst [vmem:[#allocation3 + $0x50] sm:$0xff] %v174
  %316 = vst [vmem:[#allocation3 + $0x58] sm:$0xff] %v282
  %317 = vst [vmem:[#allocation3 + $0x60] sm:$0xff] %v178
  %318 = vst [vmem:[#allocation3 + $0x68] sm:$0xff] %v180
  %319 = vst [vmem:[#allocation3 + $0x70] sm:$0xff] %v287
  %320 = vst [vmem:[#allocation3 + $0x78] sm:$0xff] %v184
  %321 = vst [vmem:[#allocation3 + $0x80] sm:$0xff] %v186
  %322 = vst [vmem:[#allocation3 + $0x88] sm:$0xff] %v292
  %323 = vst [vmem:[#allocation3 + $0x90] sm:$0xff] %v190
  %324 = vst [vmem:[#allocation3 + $0x98] sm:$0xff] %v192
  %325 = vst [vmem:[#allocation3 + $0xa0] sm:$0xff] %v297
  %326 = vst [vmem:[#allocation3 + $0xa8] sm:$0xff] %v196
  %327 = vst [vmem:[#allocation3 + $0xb0] sm:$0xff] %v198
  %328 = vst [vmem:[#allocation3 + $0xb8] sm:$0xff] %v302
  %v329 = vld [vmem:[%s4] sm:$0x1]
  %v331 = vlaneseq
  %v332 = vshrl.u32 %v331, 7
  %v333 = vsub.s32 0, %v332
  %v334 = vrot.slane %v329, %v333
  %v336 = vld [vmem:[#allocation2] sm:$0xff]
  %v337 = vld [vmem:[#allocation3] sm:$0xff]
  %v338 = vld [vmem:[#allocation3 + $0x8] sm:$0xff]
  %v339 = vld [vmem:[#allocation3 + $0x10] sm:$0xff]
  %v340 = vld [vmem:[%s2] sm:$0xff]
  %v341 = vld [vmem:[%s2 + $0x8] sm:$0xff]
  %v342 = vld [vmem:[%s2 + $0x10] sm:$0xff]
  %v343 = vld [vmem:[%s2 + $0x18] sm:$0xff]
  %v344 = vld [vmem:[%s2 + $0x20] sm:$0xff]
  %v345 = vld [vmem:[%s2 + $0x28] sm:$0xff]
  %v346 = vld [vmem:[%s2 + $0x30] sm:$0xff]
  %v347 = vld [vmem:[%s2 + $0x38] sm:$0xff]
  %v348 = vld [vmem:[%s2 + $0x40] sm:$0xff]
  %v349 = vld [vmem:[%s2 + $0x48] sm:$0xff]
  %v350 = vld [vmem:[%s2 + $0x50] sm:$0xff]
  %v351 = vld [vmem:[%s2 + $0x58] sm:$0xff]
  %v352 = vld [vmem:[%s2 + $0x60] sm:$0xff]
  %v353 = vld [vmem:[%s2 + $0x68] sm:$0xff]
  %v354 = vld [vmem:[%s2 + $0x70] sm:$0xff]
  %v355 = vld [vmem:[%s2 + $0x78] sm:$0xff]
  %v356 = vld [vmem:[%s2 + $0x80] sm:$0xff]
  %v357 = vld [vmem:[%s2 + $0x88] sm:$0xff]
  %v358 = vld [vmem:[%s2 + $0x90] sm:$0xff]
  %v359 = vld [vmem:[%s2 + $0x98] sm:$0xff]
  %v360 = vld [vmem:[%s2 + $0xa0] sm:$0xff]
  %v361 = vld [vmem:[%s2 + $0xa8] sm:$0xff]
  %v362 = vld [vmem:[%s2 + $0xb0] sm:$0xff]
  %v363 = vld [vmem:[%s2 + $0xb8] sm:$0xff]
  %v364 = vld [vmem:[%s2 + $0xc0] sm:$0xff]
  %v365 = vld [vmem:[%s2 + $0xc8] sm:$0xff]
  %v366 = vld [vmem:[%s2 + $0xd0] sm:$0xff]
  %v367 = vld [vmem:[%s2 + $0xd8] sm:$0xff]
  %v368 = vld [vmem:[%s2 + $0xe0] sm:$0xff]
  %v369 = vld [vmem:[%s2 + $0xe8] sm:$0xff]
  %v370 = vld [vmem:[%s2 + $0xf0] sm:$0xff]
  %v371 = vld [vmem:[%s2 + $0xf8] sm:$0xff]
  %v372 = vld [vmem:[%s2 + $0x100] sm:$0xff]
  %v373 = vld [vmem:[%s2 + $0x108] sm:$0xff]
  %v374 = vld [vmem:[%s2 + $0x110] sm:$0xff]
  %v375 = vld [vmem:[%s2 + $0x118] sm:$0xff]
  %v376 = vld [vmem:[%s2 + $0x120] sm:$0xff]
  %v377 = vld [vmem:[%s2 + $0x128] sm:$0xff]
  %v378 = vld [vmem:[%s2 + $0x130] sm:$0xff]
  %v379 = vld [vmem:[%s2 + $0x138] sm:$0xff]
  %v380 = vld [vmem:[%s2 + $0x140] sm:$0xff]
  %v381 = vld [vmem:[%s2 + $0x148] sm:$0xff]
  %v382 = vld [vmem:[%s2 + $0x150] sm:$0xff]
  %v383 = vld [vmem:[%s2 + $0x158] sm:$0xff]
  %v384 = vld [vmem:[%s2 + $0x160] sm:$0xff]
  %v385 = vld [vmem:[%s2 + $0x168] sm:$0xff]
  %v386 = vld [vmem:[%s2 + $0x170] sm:$0xff]
  %v387 = vld [vmem:[%s2 + $0x178] sm:$0xff]
  %388 = vmatprep.subr.mxu0 %v386
  %389 = vmatpush1.msra.mxu0 %v385
  %390 = vmatprep.subr.mxu0 %v383
  %391 = vmatpush1.msra.mxu0 %v382
  %392 = vmatprep.subr.mxu0 %v380
  %393 = vmatpush1.msra.mxu0 %v379
  %394 = vmatprep.subr.mxu0 %v377
  %395 = vmatpush1.msra.mxu0 %v376
  %396 = vmatprep.subr.mxu0 %v374
  %397 = vmatpush1.msra.mxu0 %v373
  %398 = vmatprep.subr.mxu0 %v371
  %399 = vmatpush1.msra.mxu0 %v370
  %400 = vmatprep.subr.mxu0 %v368
  %401 = vmatpush1.msra.mxu0 %v367
  %402 = vmatprep.subr.mxu0 %v365
  %403 = vmatpush1.msra.mxu0 %v364
  %404 = vmatprep.subr.mxu0 %v362
  %405 = vmatpush1.msra.mxu0 %v361
  %406 = vmatprep.subr.mxu0 %v359
  %407 = vmatpush1.msra.mxu0 %v358
  %408 = vmatprep.subr.mxu0 %v356
  %409 = vmatpush1.msra.mxu0 %v355
  %410 = vmatprep.subr.mxu0 %v353
  %411 = vmatpush1.msra.mxu0 %v352
  %412 = vmatprep.subr.mxu0 %v350
  %413 = vmatpush1.msra.mxu0 %v349
  %414 = vmatprep.subr.mxu0 %v347
  %415 = vmatpush1.msra.mxu0 %v346
  %416 = vmatprep.subr.mxu0 %v344
  %417 = vmatpush1.msra.mxu0 %v343
  %418 = vmatprep.subr.mxu0 %v341
  %419 = vmatpush1.msra.mxu0 %v340
  %420 = vmatprep.subr.mxu0 0.0
  %421 = vmatpush2.msra.mxu0 0.0
  %422 = vmatprep.subr.mxu0 0.0
  %423 = vmatpush2.msra.mxu0 0.0
  %424 = vmatprep.subr.mxu0 0.0
  %425 = vmatpush2.msra.mxu0 0.0
  %426 = vmatprep.subr.mxu0 0.0
  %427 = vmatpush2.msra.mxu0 0.0
  %428 = vmatprep.subr.mxu0 0.0
  %429 = vmatpush2.msra.mxu0 0.0
  %430 = vmatprep.subr.mxu0 0.0
  %431 = vmatpush2.msra.mxu0 0.0
  %432 = vmatprep.subr.mxu0 0.0
  %433 = vmatpush2.msra.mxu0 0.0
  %434 = vmatprep.subr.mxu0 0.0
  %435 = vmatpush2.msra.mxu0 0.0
  %436 = vmatprep.subr.mxu0 0.0
  %437 = vmatpush2.msra.mxu0 0.0
  %438 = vmatprep.subr.mxu0 0.0
  %439 = vmatpush2.msra.mxu0 0.0
  %440 = vmatprep.subr.mxu0 0.0
  %441 = vmatpush2.msra.mxu0 0.0
  %442 = vmatprep.subr.mxu0 0.0
  %443 = vmatpush2.msra.mxu0 0.0
  %444 = vmatprep.subr.mxu0 0.0
  %445 = vmatpush2.msra.mxu0 0.0
  %446 = vmatprep.subr.mxu0 0.0
  %447 = vmatpush2.msra.mxu0 0.0
  %448 = vmatprep.subr.mxu0 0.0
  %449 = vmatpush2.msra.mxu0 0.0
  %450 = vmatprep.subr.mxu0 0.0
  %451 = vmatpush2.msra.mxu0 0.0
  %452 = vmatprep.mubr.f32.mxu0 0.0
  %453 = vmatmul.mubr.f32.gmra.mxu0 %v336
  %v454 = vpop.f32.mrf.mxu0
  %v455 = vadd.f32 0.0, %v454
  %v456 = vpop.f32.mrf.mxu0
  %v457 = vadd.f32 0.0, %v456
  %458 = vdwg.mxu0
  %459 = vmatprep.subr.mxu0 0.0
  %460 = vmatpush1.msra.mxu0 %v387
  %461 = vmatprep.subr.mxu0 0.0
  %462 = vmatpush1.msra.mxu0 %v384
  %463 = vmatprep.subr.mxu0 0.0
  %464 = vmatpush1.msra.mxu0 %v381
  %465 = vmatprep.subr.mxu0 0.0
  %466 = vmatpush1.msra.mxu0 %v378
  %467 = vmatprep.subr.mxu0 0.0
  %468 = vmatpush1.msra.mxu0 %v375
  %469 = vmatprep.subr.mxu0 0.0
  %470 = vmatpush1.msra.mxu0 %v372
  %471 = vmatprep.subr.mxu0 0.0
  %472 = vmatpush1.msra.mxu0 %v369
  %473 = vmatprep.subr.mxu0 0.0
  %474 = vmatpush1.msra.mxu0 %v366
  %475 = vmatprep.subr.mxu0 0.0
  %476 = vmatpush1.msra.mxu0 %v363
  %477 = vmatprep.subr.mxu0 0.0
  %478 = vmatpush1.msra.mxu0 %v360
  %479 = vmatprep.subr.mxu0 0.0
  %480 = vmatpush1.msra.mxu0 %v357
  %481 = vmatprep.subr.mxu0 0.0
  %482 = vmatpush1.msra.mxu0 %v354
  %483 = vmatprep.subr.mxu0 0.0
  %484 = vmatpush1.msra.mxu0 %v351
  %485 = vmatprep.subr.mxu0 0.0
  %486 = vmatpush1.msra.mxu0 %v348
  %487 = vmatprep.subr.mxu0 0.0
  %488 = vmatpush1.msra.mxu0 %v345
  %489 = vmatprep.subr.mxu0 0.0
  %490 = vmatpush1.msra.mxu0 %v342
  %491 = vmatprep.subr.mxu0 0.0
  %492 = vmatpush2.msra.mxu0 0.0
  %493 = vmatprep.subr.mxu0 0.0
  %494 = vmatpush2.msra.mxu0 0.0
  %495 = vmatprep.subr.mxu0 0.0
  %496 = vmatpush2.msra.mxu0 0.0
  %497 = vmatprep.subr.mxu0 0.0
  %498 = vmatpush2.msra.mxu0 0.0
  %499 = vmatprep.subr.mxu0 0.0
  %500 = vmatpush2.msra.mxu0 0.0
  %501 = vmatprep.subr.mxu0 0.0
  %502 = vmatpush2.msra.mxu0 0.0
  %503 = vmatprep.subr.mxu0 0.0
  %504 = vmatpush2.msra.mxu0 0.0
  %505 = vmatprep.subr.mxu0 0.0
  %506 = vmatpush2.msra.mxu0 0.0
  %507 = vmatprep.subr.mxu0 0.0
  %508 = vmatpush2.msra.mxu0 0.0
  %509 = vmatprep.subr.mxu0 0.0
  %510 = vmatpush2.msra.mxu0 0.0
  %511 = vmatprep.subr.mxu0 0.0
  %512 = vmatpush2.msra.mxu0 0.0
  %513 = vmatprep.subr.mxu0 0.0
  %514 = vmatpush2.msra.mxu0 0.0
  %515 = vmatprep.subr.mxu0 0.0
  %516 = vmatpush2.msra.mxu0 0.0
  %517 = vmatprep.subr.mxu0 0.0
  %518 = vmatpush2.msra.mxu0 0.0
  %519 = vmatprep.subr.mxu0 0.0
  %520 = vmatpush2.msra.mxu0 0.0
  %521 = vmatprep.subr.mxu0 0.0
  %522 = vmatpush2.msra.mxu0 0.0
  %523 = vmatprep.mubr.f32.mxu0 0.0
  %524 = vmatmul.mubr.f32.gmra.mxu0 %v336
  %v525 = vpop.f32.mrf.mxu0
  %v526 = vadd.f32 0.0, %v525
  %v527 = vpop.f32.mrf.mxu0
  %528 = vdwg.mxu0
  %v529 = vadd.f32 %v337, %v455
  %v530 = vxor.u32 %v529, 2147483648
  %v531 = vmul.f32 %v530, 1.442695
  %v532 = vpow.pop %v531
  %v533 = vadd.f32 %v532, 1.0
  %v534 = vrcp.pop %v533
  %v535 = vmul.f32 1.0, %v534
  %v536 = vadd.f32 %v338, %v457
  %v537 = vxor.u32 %v536, 2147483648
  %v538 = vmul.f32 %v537, 1.442695
  %v539 = vpow.pop %v538
  %v540 = vadd.f32 %v539, 1.0
  %v541 = vrcp.pop %v540
  %v542 = vmul.f32 1.0, %v541
  %v543 = vadd.f32 %v526, %v334
  %v544 = vmul.f32 %v535, %v543
  %v545 = vadd.f32 %v339, %v544
  %v546 = vtanh.pop %v545
  %v547 = vsub.f32 %v336, %v546
  %v548 = vmul.f32 %v542, %v547
  %v549 = vadd.f32 %v546, %v548
  %550 = vst [vmem:[%s5] sm:$0xff] %v549
  %s551 = scalar_lea.vmem [#allocation3], 24
  %v552 = vld [vmem:[%s551] sm:$0xff]
  %v553 = vld [vmem:[%s551 + $0x8] sm:$0xff]
  %v554 = vld [vmem:[%s551 + $0x10] sm:$0xff]
  %v555 = vld [vmem:[%s2] sm:$0xff]
  %v556 = vld [vmem:[%s2 + $0x8] sm:$0xff]
  %v557 = vld [vmem:[%s2 + $0x10] sm:$0xff]
  %v558 = vld [vmem:[%s2 + $0x18] sm:$0xff]
  %v559 = vld [vmem:[%s2 + $0x20] sm:$0xff]
  %v560 = vld [vmem:[%s2 + $0x28] sm:$0xff]
  %v561 = vld [vmem:[%s2 + $0x30] sm:$0xff]
  %v562 = vld [vmem:[%s2 + $0x38] sm:$0xff]
  %v563 = vld [vmem:[%s2 + $0x40] sm:$0xff]
  %v564 = vld [vmem:[%s2 + $0x48] sm:$0xff]
  %v565 = vld [vmem:[%s2 + $0x50] sm:$0xff]
  %v566 = vld [vmem:[%s2 + $0x58] sm:$0xff]
  %v567 = vld [vmem:[%s2 + $0x60] sm:$0xff]
  %v568 = vld [vmem:[%s2 + $0x68] sm:$0xff]
  %v569 = vld [vmem:[%s2 + $0x70] sm:$0xff]
  %v570 = vld [vmem:[%s2 + $0x78] sm:$0xff]
  %v571 = vld [vmem:[%s2 + $0x80] sm:$0xff]
  %v572 = vld [vmem:[%s2 + $0x88] sm:$0xff]
  %v573 = vld [vmem:[%s2 + $0x90] sm:$0xff]
  %v574 = vld [vmem:[%s2 + $0x98] sm:$0xff]
  %v575 = vld [vmem:[%s2 + $0xa0] sm:$0xff]
  %v576 = vld [vmem:[%s2 + $0xa8] sm:$0xff]
  %v577 = vld [vmem:[%s2 + $0xb0] sm:$0xff]
  %v578 = vld [vmem:[%s2 + $0xb8] sm:$0xff]
  %v579 = vld [vmem:[%s2 + $0xc0] sm:$0xff]
  %v580 = vld [vmem:[%s2 + $0xc8] sm:$0xff]
  %v581 = vld [vmem:[%s2 + $0xd0] sm:$0xff]
  %v582 = vld [vmem:[%s2 + $0xd8] sm:$0xff]
  %v583 = vld [vmem:[%s2 + $0xe0] sm:$0xff]
  %v584 = vld [vmem:[%s2 + $0xe8] sm:$0xff]
  %v585 = vld [vmem:[%s2 + $0xf0] sm:$0xff]
  %v586 = vld [vmem:[%s2 + $0xf8] sm:$0xff]
  %v587 = vld [vmem:[%s2 + $0x100] sm:$0xff]
  %v588 = vld [vmem:[%s2 + $0x108] sm:$0xff]
  %v589 = vld [vmem:[%s2 + $0x110] sm:$0xff]
  %v590 = vld [vmem:[%s2 + $0x118] sm:$0xff]
  %v591 = vld [vmem:[%s2 + $0x120] sm:$0xff]
  %v592 = vld [vmem:[%s2 + $0x128] sm:$0xff]
  %v593 = vld [vmem:[%s2 + $0x130] sm:$0xff]
  %v594 = vld [vmem:[%s2 + $0x138] sm:$0xff]
  %v595 = vld [vmem:[%s2 + $0x140] sm:$0xff]
  %v596 = vld [vmem:[%s2 + $0x148] sm:$0xff]
  %v597 = vld [vmem:[%s2 + $0x150] sm:$0xff]
  %v598 = vld [vmem:[%s2 + $0x158] sm:$0xff]
  %v599 = vld [vmem:[%s2 + $0x160] sm:$0xff]
  %v600 = vld [vmem:[%s2 + $0x168] sm:$0xff]
  %v601 = vld [vmem:[%s2 + $0x170] sm:$0xff]
  %v602 = vld [vmem:[%s2 + $0x178] sm:$0xff]
  %603 = vmatprep.subr.mxu0 %v601
  %604 = vmatpush1.msra.mxu0 %v600
  %605 = vmatprep.subr.mxu0 %v598
  %606 = vmatpush1.msra.mxu0 %v597
  %607 = vmatprep.subr.mxu0 %v595
  %608 = vmatpush1.msra.mxu0 %v594
  %609 = vmatprep.subr.mxu0 %v592
  %610 = vmatpush1.msra.mxu0 %v591
  %611 = vmatprep.subr.mxu0 %v589
  %612 = vmatpush1.msra.mxu0 %v588
  %613 = vmatprep.subr.mxu0 %v586
  %614 = vmatpush1.msra.mxu0 %v585
  %615 = vmatprep.subr.mxu0 %v583
  %616 = vmatpush1.msra.mxu0 %v582
  %617 = vmatprep.subr.mxu0 %v580
  %618 = vmatpush1.msra.mxu0 %v579
  %619 = vmatprep.subr.mxu0 %v577
  %620 = vmatpush1.msra.mxu0 %v576
  %621 = vmatprep.subr.mxu0 %v574
  %622 = vmatpush1.msra.mxu0 %v573
  %623 = vmatprep.subr.mxu0 %v571
  %624 = vmatpush1.msra.mxu0 %v570
  %625 = vmatprep.subr.mxu0 %v568
  %626 = vmatpush1.msra.mxu0 %v567
  %627 = vmatprep.subr.mxu0 %v565
  %628 = vmatpush1.msra.mxu0 %v564
  %629 = vmatprep.subr.mxu0 %v562
  %630 = vmatpush1.msra.mxu0 %v561
  %631 = vmatprep.subr.mxu0 %v559
  %632 = vmatpush1.msra.mxu0 %v558
  %633 = vmatprep.subr.mxu0 %v556
  %634 = vmatpush1.msra.mxu0 %v555
  %635 = vmatprep.subr.mxu0 0.0
  %636 = vmatpush2.msra.mxu0 0.0
  %637 = vmatprep.subr.mxu0 0.0
  %638 = vmatpush2.msra.mxu0 0.0
  %639 = vmatprep.subr.mxu0 0.0
  %640 = vmatpush2.msra.mxu0 0.0
  %641 = vmatprep.subr.mxu0 0.0
  %642 = vmatpush2.msra.mxu0 0.0
  %643 = vmatprep.subr.mxu0 0.0
  %644 = vmatpush2.msra.mxu0 0.0
  %645 = vmatprep.subr.mxu0 0.0
  %646 = vmatpush2.msra.mxu0 0.0
  %647 = vmatprep.subr.mxu0 0.0
  %648 = vmatpush2.msra.mxu0 0.0
  %649 = vmatprep.subr.mxu0 0.0
  %650 = vmatpush2.msra.mxu0 0.0
  %651 = vmatprep.subr.mxu0 0.0
  %652 = vmatpush2.msra.mxu0 0.0
  %653 = vmatprep.subr.mxu0 0.0
  %654 = vmatpush2.msra.mxu0 0.0
  %655 = vmatprep.subr.mxu0 0.0
  %656 = vmatpush2.msra.mxu0 0.0
  %657 = vmatprep.subr.mxu0 0.0
  %658 = vmatpush2.msra.mxu0 0.0
  %659 = vmatprep.subr.mxu0 0.0
  %660 = vmatpush2.msra.mxu0 0.0
  %661 = vmatprep.subr.mxu0 0.0
  %662 = vmatpush2.msra.mxu0 0.0
  %663 = vmatprep.subr.mxu0 0.0
  %664 = vmatpush2.msra.mxu0 0.0
  %665 = vmatprep.subr.mxu0 0.0
  %666 = vmatpush2.msra.mxu0 0.0
  %667 = vmatprep.mubr.f32.mxu0 0.0
  %668 = vmatmul.mubr.f32.gmra.mxu0 %v549
  %v669 = vpop.f32.mrf.mxu0
  %v670 = vadd.f32 0.0, %v669
  %v671 = vpop.f32.mrf.mxu0
  %v672 = vadd.f32 0.0, %v671
  %673 = vdwg.mxu0
  %674 = vmatprep.subr.mxu0 0.0
  %675 = vmatpush1.msra.mxu0 %v602
  %676 = vmatprep.subr.mxu0 0.0
  %677 = vmatpush1.msra.mxu0 %v599
  %678 = vmatprep.subr.mxu0 0.0
  %679 = vmatpush1.msra.mxu0 %v596
  %680 = vmatprep.subr.mxu0 0.0
  %681 = vmatpush1.msra.mxu0 %v593
  %682 = vmatprep.subr.mxu0 0.0
  %683 = vmatpush1.msra.mxu0 %v590
  %684 = vmatprep.subr.mxu0 0.0
  %685 = vmatpush1.msra.mxu0 %v587
  %686 = vmatprep.subr.mxu0 0.0
  %687 = vmatpush1.msra.mxu0 %v584
  %688 = vmatprep.subr.mxu0 0.0
  %689 = vmatpush1.msra.mxu0 %v581
  %690 = vmatprep.subr.mxu0 0.0
  %691 = vmatpush1.msra.mxu0 %v578
  %692 = vmatprep.subr.mxu0 0.0
  %693 = vmatpush1.msra.mxu0 %v575
  %694 = vmatprep.subr.mxu0 0.0
  %695 = vmatpush1.msra.mxu0 %v572
  %696 = vmatprep.subr.mxu0 0.0
  %697 = vmatpush1.msra.mxu0 %v569
  %698 = vmatprep.subr.mxu0 0.0
  %699 = vmatpush1.msra.mxu0 %v566
  %700 = vmatprep.subr.mxu0 0.0
  %701 = vmatpush1.msra.mxu0 %v563
  %702 = vmatprep.subr.mxu0 0.0
  %703 = vmatpush1.msra.mxu0 %v560
  %704 = vmatprep.subr.mxu0 0.0
  %705 = vmatpush1.msra.mxu0 %v557
  %706 = vmatprep.subr.mxu0 0.0
  %707 = vmatpush2.msra.mxu0 0.0
  %708 = vmatprep.subr.mxu0 0.0
  %709 = vmatpush2.msra.mxu0 0.0
  %710 = vmatprep.subr.mxu0 0.0
  %711 = vmatpush2.msra.mxu0 0.0
  %712 = vmatprep.subr.mxu0 0.0
  %713 = vmatpush2.msra.mxu0 0.0
  %714 = vmatprep.subr.mxu0 0.0
  %715 = vmatpush2.msra.mxu0 0.0
  %716 = vmatprep.subr.mxu0 0.0
  %717 = vmatpush2.msra.mxu0 0.0
  %718 = vmatprep.subr.mxu0 0.0
  %719 = vmatpush2.msra.mxu0 0.0
  %720 = vmatprep.subr.mxu0 0.0
  %721 = vmatpush2.msra.mxu0 0.0
  %722 = vmatprep.subr.mxu0 0.0
  %723 = vmatpush2.msra.mxu0 0.0
  %724 = vmatprep.subr.mxu0 0.0
  %725 = vmatpush2.msra.mxu0 0.0
  %726 = vmatprep.subr.mxu0 0.0
  %727 = vmatpush2.msra.mxu0 0.0
  %728 = vmatprep.subr.mxu0 0.0
  %729 = vmatpush2.msra.mxu0 0.0
  %730 = vmatprep.subr.mxu0 0.0
  %731 = vmatpush2.msra.mxu0 0.0
  %732 = vmatprep.subr.mxu0 0.0
  %733 = vmatpush2.msra.mxu0 0.0
  %734 = vmatprep.subr.mxu0 0.0
  %735 = vmatpush2.msra.mxu0 0.0
  %736 = vmatprep.subr.mxu0 0.0
  %737 = vmatpush2.msra.mxu0 0.0
  %738 = vmatprep.mubr.f32.mxu0 0.0
  %739 = vmatmul.mubr.f32.gmra.mxu0 %v549
  %v740 = vpop.f32.mrf.mxu0
  %v741 = vadd.f32 0.0, %v740
  %v742 = vpop.f32.mrf.mxu0
  %743 = vdwg.mxu0
  %v744 = vadd.f32 %v552, %v670
  %v745 = vxor.u32 %v744, 2147483648
  %v746 = vmul.f32 %v745, 1.442695
  %v747 = vpow.pop %v746
  %v748 = vadd.f32 %v747, 1.0
  %v749 = vrcp.pop %v748
  %v750 = vmul.f32 1.0, %v749
  %v751 = vadd.f32 %v553, %v672
  %v752 = vxor.u32 %v751, 2147483648
  %v753 = vmul.f32 %v752, 1.442695
  %v754 = vpow.pop %v753
  %v755 = vadd.f32 %v754, 1.0
  %v756 = vrcp.pop %v755
  %v757 = vmul.f32 1.0, %v756
  %v758 = vadd.f32 %v741, %v334
  %v759 = vmul.f32 %v750, %v758
  %v760 = vadd.f32 %v554, %v759
  %v761 = vtanh.pop %v760
  %v762 = vsub.f32 %v549, %v761
  %v763 = vmul.f32 %v757, %v762
  %v764 = vadd.f32 %v761, %v763
  %s765 = scalar_lea.vmem %s5, 8
  %766 = vst [vmem:[%s765] sm:$0xff] %v764
  %s767 = scalar_lea.vmem [#allocation3], 48
  %v768 = vld [vmem:[%s767] sm:$0xff]
  %v769 = vld [vmem:[%s767 + $0x8] sm:$0xff]
  %v770 = vld [vmem:[%s767 + $0x10] sm:$0xff]
  %v771 = vld [vmem:[%s2] sm:$0xff]
  %v772 = vld [vmem:[%s2 + $0x8] sm:$0xff]
  %v773 = vld [vmem:[%s2 + $0x10] sm:$0xff]
  %v774 = vld [vmem:[%s2 + $0x18] sm:$0xff]
  %v775 = vld [vmem:[%s2 + $0x20] sm:$0xff]
  %v776 = vld [vmem:[%s2 + $0x28] sm:$0xff]
  %v777 = vld [vmem:[%s2 + $0x30] sm:$0xff]
  %v778 = vld [vmem:[%s2 + $0x38] sm:$0xff]
  %v779 = vld [vmem:[%s2 + $0x40] sm:$0xff]
  %v780 = vld [vmem:[%s2 + $0x48] sm:$0xff]
  %v781 = vld [vmem:[%s2 + $0x50] sm:$0xff]
  %v782 = vld [vmem:[%s2 + $0x58] sm:$0xff]
  %v783 = vld [vmem:[%s2 + $0x60] sm:$0xff]
  %v784 = vld [vmem:[%s2 + $0x68] sm:$0xff]
  %v785 = vld [vmem:[%s2 + $0x70] sm:$0xff]
  %v786 = vld [vmem:[%s2 + $0x78] sm:$0xff]
  %v787 = vld [vmem:[%s2 + $0x80] sm:$0xff]
  %v788 = vld [vmem:[%s2 + $0x88] sm:$0xff]
  %v789 = vld [vmem:[%s2 + $0x90] sm:$0xff]
  %v790 = vld [vmem:[%s2 + $0x98] sm:$0xff]
  %v791 = vld [vmem:[%s2 + $0xa0] sm:$0xff]
  %v792 = vld [vmem:[%s2 + $0xa8] sm:$0xff]
  %v793 = vld [vmem:[%s2 + $0xb0] sm:$0xff]
  %v794 = vld [vmem:[%s2 + $0xb8] sm:$0xff]
  %v795 = vld [vmem:[%s2 + $0xc0] sm:$0xff]
  %v796 = vld [vmem:[%s2 + $0xc8] sm:$0xff]
  %v797 = vld [vmem:[%s2 + $0xd0] sm:$0xff]
  %v798 = vld [vmem:[%s2 + $0xd8] sm:$0xff]
  %v799 = vld [vmem:[%s2 + $0xe0] sm:$0xff]
  %v800 = vld [vmem:[%s2 + $0xe8] sm:$0xff]
  %v801 = vld [vmem:[%s2 + $0xf0] sm:$0xff]
  %v802 = vld [vmem:[%s2 + $0xf8] sm:$0xff]
  %v803 = vld [vmem:[%s2 + $0x100] sm:$0xff]
  %v804 = vld [vmem:[%s2 + $0x108] sm:$0xff]
  %v805 = vld [vmem:[%s2 + $0x110] sm:$0xff]
  %v806 = vld [vmem:[%s2 + $0x118] sm:$0xff]
  %v807 = vld [vmem:[%s2 + $0x120] sm:$0xff]
  %v808 = vld [vmem:[%s2 + $0x128] sm:$0xff]
  %v809 = vld [vmem:[%s2 + $0x130] sm:$0xff]
  %v810 = vld [vmem:[%s2 + $0x138] sm:$0xff]
  %v811 = vld [vmem:[%s2 + $0x140] sm:$0xff]
  %v812 = vld [vmem:[%s2 + $0x148] sm:$0xff]
  %v813 = vld [vmem:[%s2 + $0x150] sm:$0xff]
  %v814 = vld [vmem:[%s2 + $0x158] sm:$0xff]
  %v815 = vld [vmem:[%s2 + $0x160] sm:$0xff]
  %v816 = vld [vmem:[%s2 + $0x168] sm:$0xff]
  %v817 = vld [vmem:[%s2 + $0x170] sm:$0xff]
  %v818 = vld [vmem:[%s2 + $0x178] sm:$0xff]
  %819 = vmatprep.subr.mxu0 %v817
  %820 = vmatpush1.msra.mxu0 %v816
  %821 = vmatprep.subr.mxu0 %v814
  %822 = vmatpush1.msra.mxu0 %v813
  %823 = vmatprep.subr.mxu0 %v811
  %824 = vmatpush1.msra.mxu0 %v810
  %825 = vmatprep.subr.mxu0 %v808
  %826 = vmatpush1.msra.mxu0 %v807
  %827 = vmatprep.subr.mxu0 %v805
  %828 = vmatpush1.msra.mxu0 %v804
  %829 = vmatprep.subr.mxu0 %v802
  %830 = vmatpush1.msra.mxu0 %v801
  %831 = vmatprep.subr.mxu0 %v799
  %832 = vmatpush1.msra.mxu0 %v798
  %833 = vmatprep.subr.mxu0 %v796
  %834 = vmatpush1.msra.mxu0 %v795
  %835 = vmatprep.subr.mxu0 %v793
  %836 = vmatpush1.msra.mxu0 %v792
  %837 = vmatprep.subr.mxu0 %v790
  %838 = vmatpush1.msra.mxu0 %v789
  %839 = vmatprep.subr.mxu0 %v787
  %840 = vmatpush1.msra.mxu0 %v786
  %841 = vmatprep.subr.mxu0 %v784
  %842 = vmatpush1.msra.mxu0 %v783
  %843 = vmatprep.subr.mxu0 %v781
  %844 = vmatpush1.msra.mxu0 %v780
  %845 = vmatprep.subr.mxu0 %v778
  %846 = vmatpush1.msra.mxu0 %v777
  %847 = vmatprep.subr.mxu0 %v775
  %848 = vmatpush1.msra.mxu0 %v774
  %849 = vmatprep.subr.mxu0 %v772
  %850 = vmatpush1.msra.mxu0 %v771
  %851 = vmatprep.subr.mxu0 0.0
  %852 = vmatpush2.msra.mxu0 0.0
  %853 = vmatprep.subr.mxu0 0.0
  %854 = vmatpush2.msra.mxu0 0.0
  %855 = vmatprep.subr.mxu0 0.0
  %856 = vmatpush2.msra.mxu0 0.0
  %857 = vmatprep.subr.mxu0 0.0
  %858 = vmatpush2.msra.mxu0 0.0
  %859 = vmatprep.subr.mxu0 0.0
  %860 = vmatpush2.msra.mxu0 0.0
  %861 = vmatprep.subr.mxu0 0.0
  %862 = vmatpush2.msra.mxu0 0.0
  %863 = vmatprep.subr.mxu0 0.0
  %864 = vmatpush2.msra.mxu0 0.0
  %865 = vmatprep.subr.mxu0 0.0
  %866 = vmatpush2.msra.mxu0 0.0
  %867 = vmatprep.subr.mxu0 0.0
  %868 = vmatpush2.msra.mxu0 0.0
  %869 = vmatprep.subr.mxu0 0.0
  %870 = vmatpush2.msra.mxu0 0.0
  %871 = vmatprep.subr.mxu0 0.0
  %872 = vmatpush2.msra.mxu0 0.0
  %873 = vmatprep.subr.mxu0 0.0
  %874 = vmatpush2.msra.mxu0 0.0
  %875 = vmatprep.subr.mxu0 0.0
  %876 = vmatpush2.msra.mxu0 0.0
  %877 = vmatprep.subr.mxu0 0.0
  %878 = vmatpush2.msra.mxu0 0.0
  %879 = vmatprep.subr.mxu0 0.0
  %880 = vmatpush2.msra.mxu0 0.0
  %881 = vmatprep.subr.mxu0 0.0
  %882 = vmatpush2.msra.mxu0 0.0
  %883 = vmatprep.mubr.f32.mxu0 0.0
  %884 = vmatmul.mubr.f32.gmra.mxu0 %v764
  %v885 = vpop.f32.mrf.mxu0
  %v886 = vadd.f32 0.0, %v885
  %v887 = vpop.f32.mrf.mxu0
  %v888 = vadd.f32 0.0, %v887
  %889 = vdwg.mxu0
  %890 = vmatprep.subr.mxu0 0.0
  %891 = vmatpush1.msra.mxu0 %v818
  %892 = vmatprep.subr.mxu0 0.0
  %893 = vmatpush1.msra.mxu0 %v815
  %894 = vmatprep.subr.mxu0 0.0
  %895 = vmatpush1.msra.mxu0 %v812
  %896 = vmatprep.subr.mxu0 0.0
  %897 = vmatpush1.msra.mxu0 %v809
  %898 = vmatprep.subr.mxu0 0.0
  %899 = vmatpush1.msra.mxu0 %v806
  %900 = vmatprep.subr.mxu0 0.0
  %901 = vmatpush1.msra.mxu0 %v803
  %902 = vmatprep.subr.mxu0 0.0
  %903 = vmatpush1.msra.mxu0 %v800
  %904 = vmatprep.subr.mxu0 0.0
  %905 = vmatpush1.msra.mxu0 %v797
  %906 = vmatprep.subr.mxu0 0.0
  %907 = vmatpush1.msra.mxu0 %v794
  %908 = vmatprep.subr.mxu0 0.0
  %909 = vmatpush1.msra.mxu0 %v791
  %910 = vmatprep.subr.mxu0 0.0
  %911 = vmatpush1.msra.mxu0 %v788
  %912 = vmatprep.subr.mxu0 0.0
  %913 = vmatpush1.msra.mxu0 %v785
  %914 = vmatprep.subr.mxu0 0.0
  %915 = vmatpush1.msra.mxu0 %v782
  %916 = vmatprep.subr.mxu0 0.0
  %917 = vmatpush1.msra.mxu0 %v779
  %918 = vmatprep.subr.mxu0 0.0
  %919 = vmatpush1.msra.mxu0 %v776
  %920 = vmatprep.subr.mxu0 0.0
  %921 = vmatpush1.msra.mxu0 %v773
  %922 = vmatprep.subr.mxu0 0.0
  %923 = vmatpush2.msra.mxu0 0.0
  %924 = vmatprep.subr.mxu0 0.0
  %925 = vmatpush2.msra.mxu0 0.0
  %926 = vmatprep.subr.mxu0 0.0
  %927 = vmatpush2.msra.mxu0 0.0
  %928 = vmatprep.subr.mxu0 0.0
  %929 = vmatpush2.msra.mxu0 0.0
  %930 = vmatprep.subr.mxu0 0.0
  %931 = vmatpush2.msra.mxu0 0.0
  %932 = vmatprep.subr.mxu0 0.0
  %933 = vmatpush2.msra.mxu0 0.0
  %934 = vmatprep.subr.mxu0 0.0
  %935 = vmatpush2.msra.mxu0 0.0
  %936 = vmatprep.subr.mxu0 0.0
  %937 = vmatpush2.msra.mxu0 0.0
  %938 = vmatprep.subr.mxu0 0.0
  %939 = vmatpush2.msra.mxu0 0.0
  %940 = vmatprep.subr.mxu0 0.0
  %941 = vmatpush2.msra.mxu0 0.0
  %942 = vmatprep.subr.mxu0 0.0
  %943 = vmatpush2.msra.mxu0 0.0
  %944 = vmatprep.subr.mxu0 0.0
  %945 = vmatpush2.msra.mxu0 0.0
  %946 = vmatprep.subr.mxu0 0.0
  %947 = vmatpush2.msra.mxu0 0.0
  %948 = vmatprep.subr.mxu0 0.0
  %949 = vmatpush2.msra.mxu0 0.0
  %950 = vmatprep.subr.mxu0 0.0
  %951 = vmatpush2.msra.mxu0 0.0
  %952 = vmatprep.subr.mxu0 0.0
  %953 = vmatpush2.msra.mxu0 0.0
  %954 = vmatprep.mubr.f32.mxu0 0.0
  %955 = vmatmul.mubr.f32.gmra.mxu0 %v764
  %v956 = vpop.f32.mrf.mxu0
  %v957 = vadd.f32 0.0, %v956
  %v958 = vpop.f32.mrf.mxu0
  %959 = vdwg.mxu0
  %v960 = vadd.f32 %v768, %v886
  %v961 = vxor.u32 %v960, 2147483648
  %v962 = vmul.f32 %v961, 1.442695
  %v963 = vpow.pop %v962
  %v964 = vadd.f32 %v963, 1.0
  %v965 = vrcp.pop %v964
  %v966 = vmul.f32 1.0, %v965
  %v967 = vadd.f32 %v769, %v888
  %v968 = vxor.u32 %v967, 2147483648
  %v969 = vmul.f32 %v968, 1.442695
  %v970 = vpow.pop %v969
  %v971 = vadd.f32 %v970, 1.0
  %v972 = vrcp.pop %v971
  %v973 = vmul.f32 1.0, %v972
  %v974 = vadd.f32 %v957, %v334
  %v975 = vmul.f32 %v966, %v974
  %v976 = vadd.f32 %v770, %v975
  %v977 = vtanh.pop %v976
  %v978 = vsub.f32 %v764, %v977
  %v979 = vmul.f32 %v973, %v978
  %v980 = vadd.f32 %v977, %v979
  %s981 = scalar_lea.vmem %s5, 16
  %982 = vst [vmem:[%s981] sm:$0xff] %v980
  %s983 = scalar_lea.vmem [#allocation3], 72
  %v984 = vld [vmem:[%s983] sm:$0xff]
  %v985 = vld [vmem:[%s983 + $0x8] sm:$0xff]
  %v986 = vld [vmem:[%s983 + $0x10] sm:$0xff]
  %v987 = vld [vmem:[%s2] sm:$0xff]
  %v988 = vld [vmem:[%s2 + $0x8] sm:$0xff]
  %v989 = vld [vmem:[%s2 + $0x10] sm:$0xff]
  %v990 = vld [vmem:[%s2 + $0x18] sm:$0xff]
  %v991 = vld [vmem:[%s2 + $0x20] sm:$0xff]
  %v992 = vld [vmem:[%s2 + $0x28] sm:$0xff]
  %v993 = vld [vmem:[%s2 + $0x30] sm:$0xff]
  %v994 = vld [vmem:[%s2 + $0x38] sm:$0xff]
  %v995 = vld [vmem:[%s2 + $0x40] sm:$0xff]
  %v996 = vld [vmem:[%s2 + $0x48] sm:$0xff]
  %v997 = vld [vmem:[%s2 + $0x50] sm:$0xff]
  %v998 = vld [vmem:[%s2 + $0x58] sm:$0xff]
  %v999 = vld [vmem:[%s2 + $0x60] sm:$0xff]
  %v1000 = vld [vmem:[%s2 + $0x68] sm:$0xff]
  %v1001 = vld [vmem:[%s2 + $0x70] sm:$0xff]
  %v1002 = vld [vmem:[%s2 + $0x78] sm:$0xff]
  %v1003 = vld [vmem:[%s2 + $0x80] sm:$0xff]
  %v1004 = vld [vmem:[%s2 + $0x88] sm:$0xff]
  %v1005 = vld [vmem:[%s2 + $0x90] sm:$0xff]
  %v1006 = vld [vmem:[%s2 + $0x98] sm:$0xff]
  %v1007 = vld [vmem:[%s2 + $0xa0] sm:$0xff]
  %v1008 = vld [vmem:[%s2 + $0xa8] sm:$0xff]
  %v1009 = vld [vmem:[%s2 + $0xb0] sm:$0xff]
  %v1010 = vld [vmem:[%s2 + $0xb8] sm:$0xff]
  %v1011 = vld [vmem:[%s2 + $0xc0] sm:$0xff]
  %v1012 = vld [vmem:[%s2 + $0xc8] sm:$0xff]
  %v1013 = vld [vmem:[%s2 + $0xd0] sm:$0xff]
  %v1014 = vld [vmem:[%s2 + $0xd8] sm:$0xff]
  %v1015 = vld [vmem:[%s2 + $0xe0] sm:$0xff]
  %v1016 = vld [vmem:[%s2 + $0xe8] sm:$0xff]
  %v1017 = vld [vmem:[%s2 + $0xf0] sm:$0xff]
  %v1018 = vld [vmem:[%s2 + $0xf8] sm:$0xff]
  %v1019 = vld [vmem:[%s2 + $0x100] sm:$0xff]
  %v1020 = vld [vmem:[%s2 + $0x108] sm:$0xff]
  %v1021 = vld [vmem:[%s2 + $0x110] sm:$0xff]
  %v1022 = vld [vmem:[%s2 + $0x118] sm:$0xff]
  %v1023 = vld [vmem:[%s2 + $0x120] sm:$0xff]
  %v1024 = vld [vmem:[%s2 + $0x128] sm:$0xff]
  %v1025 = vld [vmem:[%s2 + $0x130] sm:$0xff]
  %v1026 = vld [vmem:[%s2 + $0x138] sm:$0xff]
  %v1027 = vld [vmem:[%s2 + $0x140] sm:$0xff]
  %v1028 = vld [vmem:[%s2 + $0x148] sm:$0xff]
  %v1029 = vld [vmem:[%s2 + $0x150] sm:$0xff]
  %v1030 = vld [vmem:[%s2 + $0x158] sm:$0xff]
  %v1031 = vld [vmem:[%s2 + $0x160] sm:$0xff]
  %v1032 = vld [vmem:[%s2 + $0x168] sm:$0xff]
  %v1033 = vld [vmem:[%s2 + $0x170] sm:$0xff]
  %v1034 = vld [vmem:[%s2 + $0x178] sm:$0xff]
  %1035 = vmatprep.subr.mxu0 %v1033
  %1036 = vmatpush1.msra.mxu0 %v1032
  %1037 = vmatprep.subr.mxu0 %v1030
  %1038 = vmatpush1.msra.mxu0 %v1029
  %1039 = vmatprep.subr.mxu0 %v1027
  %1040 = vmatpush1.msra.mxu0 %v1026
  %1041 = vmatprep.subr.mxu0 %v1024
  %1042 = vmatpush1.msra.mxu0 %v1023
  %1043 = vmatprep.subr.mxu0 %v1021
  %1044 = vmatpush1.msra.mxu0 %v1020
  %1045 = vmatprep.subr.mxu0 %v1018
  %1046 = vmatpush1.msra.mxu0 %v1017
  %1047 = vmatprep.subr.mxu0 %v1015
  %1048 = vmatpush1.msra.mxu0 %v1014
  %1049 = vmatprep.subr.mxu0 %v1012
  %1050 = vmatpush1.msra.mxu0 %v1011
  %1051 = vmatprep.subr.mxu0 %v1009
  %1052 = vmatpush1.msra.mxu0 %v1008
  %1053 = vmatprep.subr.mxu0 %v1006
  %1054 = vmatpush1.msra.mxu0 %v1005
  %1055 = vmatprep.subr.mxu0 %v1003
  %1056 = vmatpush1.msra.mxu0 %v1002
  %1057 = vmatprep.subr.mxu0 %v1000
  %1058 = vmatpush1.msra.mxu0 %v999
  %1059 = vmatprep.subr.mxu0 %v997
  %1060 = vmatpush1.msra.mxu0 %v996
  %1061 = vmatprep.subr.mxu0 %v994
  %1062 = vmatpush1.msra.mxu0 %v993
  %1063 = vmatprep.subr.mxu0 %v991
  %1064 = vmatpush1.msra.mxu0 %v990
  %1065 = vmatprep.subr.mxu0 %v988
  %1066 = vmatpush1.msra.mxu0 %v987
  %1067 = vmatprep.subr.mxu0 0.0
  %1068 = vmatpush2.msra.mxu0 0.0
  %1069 = vmatprep.subr.mxu0 0.0
  %1070 = vmatpush2.msra.mxu0 0.0
  %1071 = vmatprep.subr.mxu0 0.0
  %1072 = vmatpush2.msra.mxu0 0.0
  %1073 = vmatprep.subr.mxu0 0.0
  %1074 = vmatpush2.msra.mxu0 0.0
  %1075 = vmatprep.subr.mxu0 0.0
  %1076 = vmatpush2.msra.mxu0 0.0
  %1077 = vmatprep.subr.mxu0 0.0
  %1078 = vmatpush2.msra.mxu0 0.0
  %1079 = vmatprep.subr.mxu0 0.0
  %1080 = vmatpush2.msra.mxu0 0.0
  %1081 = vmatprep.subr.mxu0 0.0
  %1082 = vmatpush2.msra.mxu0 0.0
  %1083 = vmatprep.subr.mxu0 0.0
  %1084 = vmatpush2.msra.mxu0 0.0
  %1085 = vmatprep.subr.mxu0 0.0
  %1086 = vmatpush2.msra.mxu0 0.0
  %1087 = vmatprep.subr.mxu0 0.0
  %1088 = vmatpush2.msra.mxu0 0.0
  %1089 = vmatprep.subr.mxu0 0.0
  %1090 = vmatpush2.msra.mxu0 0.0
  %1091 = vmatprep.subr.mxu0 0.0
  %1092 = vmatpush2.msra.mxu0 0.0
  %1093 = vmatprep.subr.mxu0 0.0
  %1094 = vmatpush2.msra.mxu0 0.0
  %1095 = vmatprep.subr.mxu0 0.0
  %1096 = vmatpush2.msra.mxu0 0.0
  %1097 = vmatprep.subr.mxu0 0.0
  %1098 = vmatpush2.msra.mxu0 0.0
  %1099 = vmatprep.mubr.f32.mxu0 0.0
  %1100 = vmatmul.mubr.f32.gmra.mxu0 %v980
  %v1101 = vpop.f32.mrf.mxu0
  %v1102 = vadd.f32 0.0, %v1101
  %v1103 = vpop.f32.mrf.mxu0
  %v1104 = vadd.f32 0.0, %v1103
  %1105 = vdwg.mxu0
  %1106 = vmatprep.subr.mxu0 0.0
  %1107 = vmatpush1.msra.mxu0 %v1034
  %1108 = vmatprep.subr.mxu0 0.0
  %1109 = vmatpush1.msra.mxu0 %v1031
  %1110 = vmatprep.subr.mxu0 0.0
  %1111 = vmatpush1.msra.mxu0 %v1028
  %1112 = vmatprep.subr.mxu0 0.0
  %1113 = vmatpush1.msra.mxu0 %v1025
  %1114 = vmatprep.subr.mxu0 0.0
  %1115 = vmatpush1.msra.mxu0 %v1022
  %1116 = vmatprep.subr.mxu0 0.0
  %1117 = vmatpush1.msra.mxu0 %v1019
  %1118 = vmatprep.subr.mxu0 0.0
  %1119 = vmatpush1.msra.mxu0 %v1016
  %1120 = vmatprep.subr.mxu0 0.0
  %1121 = vmatpush1.msra.mxu0 %v1013
  %1122 = vmatprep.subr.mxu0 0.0
  %1123 = vmatpush1.msra.mxu0 %v1010
  %1124 = vmatprep.subr.mxu0 0.0
  %1125 = vmatpush1.msra.mxu0 %v1007
  %1126 = vmatprep.subr.mxu0 0.0
  %1127 = vmatpush1.msra.mxu0 %v1004
  %1128 = vmatprep.subr.mxu0 0.0
  %1129 = vmatpush1.msra.mxu0 %v1001
  %1130 = vmatprep.subr.mxu0 0.0
  %1131 = vmatpush1.msra.mxu0 %v998
  %1132 = vmatprep.subr.mxu0 0.0
  %1133 = vmatpush1.msra.mxu0 %v995
  %1134 = vmatprep.subr.mxu0 0.0
  %1135 = vmatpush1.msra.mxu0 %v992
  %1136 = vmatprep.subr.mxu0 0.0
  %1137 = vmatpush1.msra.mxu0 %v989
  %1138 = vmatprep.subr.mxu0 0.0
  %1139 = vmatpush2.msra.mxu0 0.0
  %1140 = vmatprep.subr.mxu0 0.0
  %1141 = vmatpush2.msra.mxu0 0.0
  %1142 = vmatprep.subr.mxu0 0.0
  %1143 = vmatpush2.msra.mxu0 0.0
  %1144 = vmatprep.subr.mxu0 0.0
  %1145 = vmatpush2.msra.mxu0 0.0
  %1146 = vmatprep.subr.mxu0 0.0
  %1147 = vmatpush2.msra.mxu0 0.0
  %1148 = vmatprep.subr.mxu0 0.0
  %1149 = vmatpush2.msra.mxu0 0.0
  %1150 = vmatprep.subr.mxu0 0.0
  %1151 = vmatpush2.msra.mxu0 0.0
  %1152 = vmatprep.subr.mxu0 0.0
  %1153 = vmatpush2.msra.mxu0 0.0
  %1154 = vmatprep.subr.mxu0 0.0
  %1155 = vmatpush2.msra.mxu0 0.0
  %1156 = vmatprep.subr.mxu0 0.0
  %1157 = vmatpush2.msra.mxu0 0.0
  %1158 = vmatprep.subr.mxu0 0.0
  %1159 = vmatpush2.msra.mxu0 0.0
  %1160 = vmatprep.subr.mxu0 0.0
  %1161 = vmatpush2.msra.mxu0 0.0
  %1162 = vmatprep.subr.mxu0 0.0
  %1163 = vmatpush2.msra.mxu0 0.0
  %1164 = vmatprep.subr.mxu0 0.0
  %1165 = vmatpush2.msra.mxu0 0.0
  %1166 = vmatprep.subr.mxu0 0.0
  %1167 = vmatpush2.msra.mxu0 0.0
  %1168 = vmatprep.subr.mxu0 0.0
  %1169 = vmatpush2.msra.mxu0 0.0
  %1170 = vmatprep.mubr.f32.mxu0 0.0
  %1171 = vmatmul.mubr.f32.gmra.mxu0 %v980
  %v1172 = vpop.f32.mrf.mxu0
  %v1173 = vadd.f32 0.0, %v1172
  %v1174 = vpop.f32.mrf.mxu0
  %1175 = vdwg.mxu0
  %v1176 = vadd.f32 %v984, %v1102
  %v1177 = vxor.u32 %v1176, 2147483648
  %v1178 = vmul.f32 %v1177, 1.442695
  %v1179 = vpow.pop %v1178
  %v1180 = vadd.f32 %v1179, 1.0
  %v1181 = vrcp.pop %v1180
  %v1182 = vmul.f32 1.0, %v1181
  %v1183 = vadd.f32 %v985, %v1104
  %v1184 = vxor.u32 %v1183, 2147483648
  %v1185 = vmul.f32 %v1184, 1.442695
  %v1186 = vpow.pop %v1185
  %v1187 = vadd.f32 %v1186, 1.0
  %v1188 = vrcp.pop %v1187
  %v1189 = vmul.f32 1.0, %v1188
  %v1190 = vadd.f32 %v1173, %v334
  %v1191 = vmul.f32 %v1182, %v1190
  %v1192 = vadd.f32 %v986, %v1191
  %v1193 = vtanh.pop %v1192
  %v1194 = vsub.f32 %v980, %v1193
  %v1195 = vmul.f32 %v1189, %v1194
  %v1196 = vadd.f32 %v1193, %v1195
  %s1197 = scalar_lea.vmem %s5, 24
  %1198 = vst [vmem:[%s1197] sm:$0xff] %v1196
  %s1199 = scalar_lea.vmem [#allocation3], 96
  %v1200 = vld [vmem:[%s1199] sm:$0xff]
  %v1201 = vld [vmem:[%s1199 + $0x8] sm:$0xff]
  %v1202 = vld [vmem:[%s1199 + $0x10] sm:$0xff]
  %v1203 = vld [vmem:[%s2] sm:$0xff]
  %v1204 = vld [vmem:[%s2 + $0x8] sm:$0xff]
  %v1205 = vld [vmem:[%s2 + $0x10] sm:$0xff]
  %v1206 = vld [vmem:[%s2 + $0x18] sm:$0xff]
  %v1207 = vld [vmem:[%s2 + $0x20] sm:$0xff]
  %v1208 = vld [vmem:[%s2 + $0x28] sm:$0xff]
  %v1209 = vld [vmem:[%s2 + $0x30] sm:$0xff]
  %v1210 = vld [vmem:[%s2 + $0x38] sm:$0xff]
  %v1211 = vld [vmem:[%s2 + $0x40] sm:$0xff]
  %v1212 = vld [vmem:[%s2 + $0x48] sm:$0xff]
  %v1213 = vld [vmem:[%s2 + $0x50] sm:$0xff]
  %v1214 = vld [vmem:[%s2 + $0x58] sm:$0xff]
  %v1215 = vld [vmem:[%s2 + $0x60] sm:$0xff]
  %v1216 = vld [vmem:[%s2 + $0x68] sm:$0xff]
  %v1217 = vld [vmem:[%s2 + $0x70] sm:$0xff]
  %v1218 = vld [vmem:[%s2 + $0x78] sm:$0xff]
  %v1219 = vld [vmem:[%s2 + $0x80] sm:$0xff]
  %v1220 = vld [vmem:[%s2 + $0x88] sm:$0xff]
  %v1221 = vld [vmem:[%s2 + $0x90] sm:$0xff]
  %v1222 = vld [vmem:[%s2 + $0x98] sm:$0xff]
  %v1223 = vld [vmem:[%s2 + $0xa0] sm:$0xff]
  %v1224 = vld [vmem:[%s2 + $0xa8] sm:$0xff]
  %v1225 = vld [vmem:[%s2 + $0xb0] sm:$0xff]
  %v1226 = vld [vmem:[%s2 + $0xb8] sm:$0xff]
  %v1227 = vld [vmem:[%s2 + $0xc0] sm:$0xff]
  %v1228 = vld [vmem:[%s2 + $0xc8] sm:$0xff]
  %v1229 = vld [vmem:[%s2 + $0xd0] sm:$0xff]
  %v1230 = vld [vmem:[%s2 + $0xd8] sm:$0xff]
  %v1231 = vld [vmem:[%s2 + $0xe0] sm:$0xff]
  %v1232 = vld [vmem:[%s2 + $0xe8] sm:$0xff]
  %v1233 = vld [vmem:[%s2 + $0xf0] sm:$0xff]
  %v1234 = vld [vmem:[%s2 + $0xf8] sm:$0xff]
  %v1235 = vld [vmem:[%s2 + $0x100] sm:$0xff]
  %v1236 = vld [vmem:[%s2 + $0x108] sm:$0xff]
  %v1237 = vld [vmem:[%s2 + $0x110] sm:$0xff]
  %v1238 = vld [vmem:[%s2 + $0x118] sm:$0xff]
  %v1239 = vld [vmem:[%s2 + $0x120] sm:$0xff]
  %v1240 = vld [vmem:[%s2 + $0x128] sm:$0xff]
  %v1241 = vld [vmem:[%s2 + $0x130] sm:$0xff]
  %v1242 = vld [vmem:[%s2 + $0x138] sm:$0xff]
  %v1243 = vld [vmem:[%s2 + $0x140] sm:$0xff]
  %v1244 = vld [vmem:[%s2 + $0x148] sm:$0xff]
  %v1245 = vld [vmem:[%s2 + $0x150] sm:$0xff]
  %v1246 = vld [vmem:[%s2 + $0x158] sm:$0xff]
  %v1247 = vld [vmem:[%s2 + $0x160] sm:$0xff]
  %v1248 = vld [vmem:[%s2 + $0x168] sm:$0xff]
  %v1249 = vld [vmem:[%s2 + $0x170] sm:$0xff]
  %v1250 = vld [vmem:[%s2 + $0x178] sm:$0xff]
  %1251 = vmatprep.subr.mxu0 %v1249
  %1252 = vmatpush1.msra.mxu0 %v1248
  %1253 = vmatprep.subr.mxu0 %v1246
  %1254 = vmatpush1.msra.mxu0 %v1245
  %1255 = vmatprep.subr.mxu0 %v1243
  %1256 = vmatpush1.msra.mxu0 %v1242
  %1257 = vmatprep.subr.mxu0 %v1240
  %1258 = vmatpush1.msra.mxu0 %v1239
  %1259 = vmatprep.subr.mxu0 %v1237
  %1260 = vmatpush1.msra.mxu0 %v1236
  %1261 = vmatprep.subr.mxu0 %v1234
  %1262 = vmatpush1.msra.mxu0 %v1233
  %1263 = vmatprep.subr.mxu0 %v1231
  %1264 = vmatpush1.msra.mxu0 %v1230
  %1265 = vmatprep.subr.mxu0 %v1228
  %1266 = vmatpush1.msra.mxu0 %v1227
  %1267 = vmatprep.subr.mxu0 %v1225
  %1268 = vmatpush1.msra.mxu0 %v1224
  %1269 = vmatprep.subr.mxu0 %v1222
  %1270 = vmatpush1.msra.mxu0 %v1221
  %1271 = vmatprep.subr.mxu0 %v1219
  %1272 = vmatpush1.msra.mxu0 %v1218
  %1273 = vmatprep.subr.mxu0 %v1216
  %1274 = vmatpush1.msra.mxu0 %v1215
  %1275 = vmatprep.subr.mxu0 %v1213
  %1276 = vmatpush1.msra.mxu0 %v1212
  %1277 = vmatprep.subr.mxu0 %v1210
  %1278 = vmatpush1.msra.mxu0 %v1209
  %1279 = vmatprep.subr.mxu0 %v1207
  %1280 = vmatpush1.msra.mxu0 %v1206
  %1281 = vmatprep.subr.mxu0 %v1204
  %1282 = vmatpush1.msra.mxu0 %v1203
  %1283 = vmatprep.subr.mxu0 0.0
  %1284 = vmatpush2.msra.mxu0 0.0
  %1285 = vmatprep.subr.mxu0 0.0
  %1286 = vmatpush2.msra.mxu0 0.0
  %1287 = vmatprep.subr.mxu0 0.0
  %1288 = vmatpush2.msra.mxu0 0.0
  %1289 = vmatprep.subr.mxu0 0.0
  %1290 = vmatpush2.msra.mxu0 0.0
  %1291 = vmatprep.subr.mxu0 0.0
  %1292 = vmatpush2.msra.mxu0 0.0
  %1293 = vmatprep.subr.mxu0 0.0
  %1294 = vmatpush2.msra.mxu0 0.0
  %1295 = vmatprep.subr.mxu0 0.0
  %1296 = vmatpush2.msra.mxu0 0.0
  %1297 = vmatprep.subr.mxu0 0.0
  %1298 = vmatpush2.msra.mxu0 0.0
  %1299 = vmatprep.subr.mxu0 0.0
  %1300 = vmatpush2.msra.mxu0 0.0
  %1301 = vmatprep.subr.mxu0 0.0
  %1302 = vmatpush2.msra.mxu0 0.0
  %1303 = vmatprep.subr.mxu0 0.0
  %1304 = vmatpush2.msra.mxu0 0.0
  %1305 = vmatprep.subr.mxu0 0.0
  %1306 = vmatpush2.msra.mxu0 0.0
  %1307 = vmatprep.subr.mxu0 0.0
  %1308 = vmatpush2.msra.mxu0 0.0
  %1309 = vmatprep.subr.mxu0 0.0
  %1310 = vmatpush2.msra.mxu0 0.0
  %1311 = vmatprep.subr.mxu0 0.0
  %1312 = vmatpush2.msra.mxu0 0.0
  %1313 = vmatprep.subr.mxu0 0.0
  %1314 = vmatpush2.msra.mxu0 0.0
  %1315 = vmatprep.mubr.f32.mxu0 0.0
  %1316 = vmatmul.mubr.f32.gmra.mxu0 %v1196
  %v1317 = vpop.f32.mrf.mxu0
  %v1318 = vadd.f32 0.0, %v1317
  %v1319 = vpop.f32.mrf.mxu0
  %v1320 = vadd.f32 0.0, %v1319
  %1321 = vdwg.mxu0
  %1322 = vmatprep.subr.mxu0 0.0
  %1323 = vmatpush1.msra.mxu0 %v1250
  %1324 = vmatprep.subr.mxu0 0.0
  %1325 = vmatpush1.msra.mxu0 %v1247
  %1326 = vmatprep.subr.mxu0 0.0
  %1327 = vmatpush1.msra.mxu0 %v1244
  %1328 = vmatprep.subr.mxu0 0.0
  %1329 = vmatpush1.msra.mxu0 %v1241
  %1330 = vmatprep.subr.mxu0 0.0
  %1331 = vmatpush1.msra.mxu0 %v1238
  %1332 = vmatprep.subr.mxu0 0.0
  %1333 = vmatpush1.msra.mxu0 %v1235
  %1334 = vmatprep.subr.mxu0 0.0
  %1335 = vmatpush1.msra.mxu0 %v1232
  %1336 = vmatprep.subr.mxu0 0.0
  %1337 = vmatpush1.msra.mxu0 %v1229
  %1338 = vmatprep.subr.mxu0 0.0
  %1339 = vmatpush1.msra.mxu0 %v1226
  %1340 = vmatprep.subr.mxu0 0.0
  %1341 = vmatpush1.msra.mxu0 %v1223
  %1342 = vmatprep.subr.mxu0 0.0
  %1343 = vmatpush1.msra.mxu0 %v1220
  %1344 = vmatprep.subr.mxu0 0.0
  %1345 = vmatpush1.msra.mxu0 %v1217
  %1346 = vmatprep.subr.mxu0 0.0
  %1347 = vmatpush1.msra.mxu0 %v1214
  %1348 = vmatprep.subr.mxu0 0.0
  %1349 = vmatpush1.msra.mxu0 %v1211
  %1350 = vmatprep.subr.mxu0 0.0
  %1351 = vmatpush1.msra.mxu0 %v1208
  %1352 = vmatprep.subr.mxu0 0.0
  %1353 = vmatpush1.msra.mxu0 %v1205
  %1354 = vmatprep.subr.mxu0 0.0
  %1355 = vmatpush2.msra.mxu0 0.0
  %1356 = vmatprep.subr.mxu0 0.0
  %1357 = vmatpush2.msra.mxu0 0.0
  %1358 = vmatprep.subr.mxu0 0.0
  %1359 = vmatpush2.msra.mxu0 0.0
  %1360 = vmatprep.subr.mxu0 0.0
  %1361 = vmatpush2.msra.mxu0 0.0
  %1362 = vmatprep.subr.mxu0 0.0
  %1363 = vmatpush2.msra.mxu0 0.0
  %1364 = vmatprep.subr.mxu0 0.0
  %1365 = vmatpush2.msra.mxu0 0.0
  %1366 = vmatprep.subr.mxu0 0.0
  %1367 = vmatpush2.msra.mxu0 0.0
  %1368 = vmatprep.subr.mxu0 0.0
  %1369 = vmatpush2.msra.mxu0 0.0
  %1370 = vmatprep.subr.mxu0 0.0
  %1371 = vmatpush2.msra.mxu0 0.0
  %1372 = vmatprep.subr.mxu0 0.0
  %1373 = vmatpush2.msra.mxu0 0.0
  %1374 = vmatprep.subr.mxu0 0.0
  %1375 = vmatpush2.msra.mxu0 0.0
  %1376 = vmatprep.subr.mxu0 0.0
  %1377 = vmatpush2.msra.mxu0 0.0
  %1378 = vmatprep.subr.mxu0 0.0
  %1379 = vmatpush2.msra.mxu0 0.0
  %1380 = vmatprep.subr.mxu0 0.0
  %1381 = vmatpush2.msra.mxu0 0.0
  %1382 = vmatprep.subr.mxu0 0.0
  %1383 = vmatpush2.msra.mxu0 0.0
  %1384 = vmatprep.subr.mxu0 0.0
  %1385 = vmatpush2.msra.mxu0 0.0
  %1386 = vmatprep.mubr.f32.mxu0 0.0
  %1387 = vmatmul.mubr.f32.gmra.mxu0 %v1196
  %v1388 = vpop.f32.mrf.mxu0
  %v1389 = vadd.f32 0.0, %v1388
  %v1390 = vpop.f32.mrf.mxu0
  %1391 = vdwg.mxu0
  %v1392 = vadd.f32 %v1200, %v1318
  %v1393 = vxor.u32 %v1392, 2147483648
  %v1394 = vmul.f32 %v1393, 1.442695
  %v1395 = vpow.pop %v1394
  %v1396 = vadd.f32 %v1395, 1.0
  %v1397 = vrcp.pop %v1396
  %v1398 = vmul.f32 1.0, %v1397
  %v1399 = vadd.f32 %v1201, %v1320
  %v1400 = vxor.u32 %v1399, 2147483648
  %v1401 = vmul.f32 %v1400, 1.442695
  %v1402 = vpow.pop %v1401
  %v1403 = vadd.f32 %v1402, 1.0
  %v1404 = vrcp.pop %v1403
  %v1405 = vmul.f32 1.0, %v1404
  %v1406 = vadd.f32 %v1389, %v334
  %v1407 = vmul.f32 %v1398, %v1406
  %v1408 = vadd.f32 %v1202, %v1407
  %v1409 = vtanh.pop %v1408
  %v1410 = vsub.f32 %v1196, %v1409
  %v1411 = vmul.f32 %v1405, %v1410
  %v1412 = vadd.f32 %v1409, %v1411
  %s1413 = scalar_lea.vmem %s5, 32
  %1414 = vst [vmem:[%s1413] sm:$0xff] %v1412
  %s1415 = scalar_lea.vmem [#allocation3], 120
  %v1416 = vld [vmem:[%s1415] sm:$0xff]
  %v1417 = vld [vmem:[%s1415 + $0x8] sm:$0xff]
  %v1418 = vld [vmem:[%s1415 + $0x10] sm:$0xff]
  %v1419 = vld [vmem:[%s2] sm:$0xff]
  %v1420 = vld [vmem:[%s2 + $0x8] sm:$0xff]
  %v1421 = vld [vmem:[%s2 + $0x10] sm:$0xff]
  %v1422 = vld [vmem:[%s2 + $0x18] sm:$0xff]
  %v1423 = vld [vmem:[%s2 + $0x20] sm:$0xff]
  %v1424 = vld [vmem:[%s2 + $0x28] sm:$0xff]
  %v1425 = vld [vmem:[%s2 + $0x30] sm:$0xff]
  %v1426 = vld [vmem:[%s2 + $0x38] sm:$0xff]
  %v1427 = vld [vmem:[%s2 + $0x40] sm:$0xff]
  %v1428 = vld [vmem:[%s2 + $0x48] sm:$0xff]
  %v1429 = vld [vmem:[%s2 + $0x50] sm:$0xff]
  %v1430 = vld [vmem:[%s2 + $0x58] sm:$0xff]
  %v1431 = vld [vmem:[%s2 + $0x60] sm:$0xff]
  %v1432 = vld [vmem:[%s2 + $0x68] sm:$0xff]
  %v1433 = vld [vmem:[%s2 + $0x70] sm:$0xff]
  %v1434 = vld [vmem:[%s2 + $0x78] sm:$0xff]
  %v1435 = vld [vmem:[%s2 + $0x80] sm:$0xff]
  %v1436 = vld [vmem:[%s2 + $0x88] sm:$0xff]
  %v1437 = vld [vmem:[%s2 + $0x90] sm:$0xff]
  %v1438 = vld [vmem:[%s2 + $0x98] sm:$0xff]
  %v1439 = vld [vmem:[%s2 + $0xa0] sm:$0xff]
  %v1440 = vld [vmem:[%s2 + $0xa8] sm:$0xff]
  %v1441 = vld [vmem:[%s2 + $0xb0] sm:$0xff]
  %v1442 = vld [vmem:[%s2 + $0xb8] sm:$0xff]
  %v1443 = vld [vmem:[%s2 + $0xc0] sm:$0xff]
  %v1444 = vld [vmem:[%s2 + $0xc8] sm:$0xff]
  %v1445 = vld [vmem:[%s2 + $0xd0] sm:$0xff]
  %v1446 = vld [vmem:[%s2 + $0xd8] sm:$0xff]
  %v1447 = vld [vmem:[%s2 + $0xe0] sm:$0xff]
  %v1448 = vld [vmem:[%s2 + $0xe8] sm:$0xff]
  %v1449 = vld [vmem:[%s2 + $0xf0] sm:$0xff]
  %v1450 = vld [vmem:[%s2 + $0xf8] sm:$0xff]
  %v1451 = vld [vmem:[%s2 + $0x100] sm:$0xff]
  %v1452 = vld [vmem:[%s2 + $0x108] sm:$0xff]
  %v1453 = vld [vmem:[%s2 + $0x110] sm:$0xff]
  %v1454 = vld [vmem:[%s2 + $0x118] sm:$0xff]
  %v1455 = vld [vmem:[%s2 + $0x120] sm:$0xff]
  %v1456 = vld [vmem:[%s2 + $0x128] sm:$0xff]
  %v1457 = vld [vmem:[%s2 + $0x130] sm:$0xff]
  %v1458 = vld [vmem:[%s2 + $0x138] sm:$0xff]
  %v1459 = vld [vmem:[%s2 + $0x140] sm:$0xff]
  %v1460 = vld [vmem:[%s2 + $0x148] sm:$0xff]
  %v1461 = vld [vmem:[%s2 + $0x150] sm:$0xff]
  %v1462 = vld [vmem:[%s2 + $0x158] sm:$0xff]
  %v1463 = vld [vmem:[%s2 + $0x160] sm:$0xff]
  %v1464 = vld [vmem:[%s2 + $0x168] sm:$0xff]
  %v1465 = vld [vmem:[%s2 + $0x170] sm:$0xff]
  %v1466 = vld [vmem:[%s2 + $0x178] sm:$0xff]
  %1467 = vmatprep.subr.mxu0 %v1465
  %1468 = vmatpush1.msra.mxu0 %v1464
  %1469 = vmatprep.subr.mxu0 %v1462
  %1470 = vmatpush1.msra.mxu0 %v1461
  %1471 = vmatprep.subr.mxu0 %v1459
  %1472 = vmatpush1.msra.mxu0 %v1458
  %1473 = vmatprep.subr.mxu0 %v1456
  %1474 = vmatpush1.msra.mxu0 %v1455
  %1475 = vmatprep.subr.mxu0 %v1453
  %1476 = vmatpush1.msra.mxu0 %v1452
  %1477 = vmatprep.subr.mxu0 %v1450
  %1478 = vmatpush1.msra.mxu0 %v1449
  %1479 = vmatprep.subr.mxu0 %v1447
  %1480 = vmatpush1.msra.mxu0 %v1446
  %1481 = vmatprep.subr.mxu0 %v1444
  %1482 = vmatpush1.msra.mxu0 %v1443
  %1483 = vmatprep.subr.mxu0 %v1441
  %1484 = vmatpush1.msra.mxu0 %v1440
  %1485 = vmatprep.subr.mxu0 %v1438
  %1486 = vmatpush1.msra.mxu0 %v1437
  %1487 = vmatprep.subr.mxu0 %v1435
  %1488 = vmatpush1.msra.mxu0 %v1434
  %1489 = vmatprep.subr.mxu0 %v1432
  %1490 = vmatpush1.msra.mxu0 %v1431
  %1491 = vmatprep.subr.mxu0 %v1429
  %1492 = vmatpush1.msra.mxu0 %v1428
  %1493 = vmatprep.subr.mxu0 %v1426
  %1494 = vmatpush1.msra.mxu0 %v1425
  %1495 = vmatprep.subr.mxu0 %v1423
  %1496 = vmatpush1.msra.mxu0 %v1422
  %1497 = vmatprep.subr.mxu0 %v1420
  %1498 = vmatpush1.msra.mxu0 %v1419
  %1499 = vmatprep.subr.mxu0 0.0
  %1500 = vmatpush2.msra.mxu0 0.0
  %1501 = vmatprep.subr.mxu0 0.0
  %1502 = vmatpush2.msra.mxu0 0.0
  %1503 = vmatprep.subr.mxu0 0.0
  %1504 = vmatpush2.msra.mxu0 0.0
  %1505 = vmatprep.subr.mxu0 0.0
  %1506 = vmatpush2.msra.mxu0 0.0
  %1507 = vmatprep.subr.mxu0 0.0
  %1508 = vmatpush2.msra.mxu0 0.0
  %1509 = vmatprep.subr.mxu0 0.0
  %1510 = vmatpush2.msra.mxu0 0.0
  %1511 = vmatprep.subr.mxu0 0.0
  %1512 = vmatpush2.msra.mxu0 0.0
  %1513 = vmatprep.subr.mxu0 0.0
  %1514 = vmatpush2.msra.mxu0 0.0
  %1515 = vmatprep.subr.mxu0 0.0
  %1516 = vmatpush2.msra.mxu0 0.0
  %1517 = vmatprep.subr.mxu0 0.0
  %1518 = vmatpush2.msra.mxu0 0.0
  %1519 = vmatprep.subr.mxu0 0.0
  %1520 = vmatpush2.msra.mxu0 0.0
  %1521 = vmatprep.subr.mxu0 0.0
  %1522 = vmatpush2.msra.mxu0 0.0
  %1523 = vmatprep.subr.mxu0 0.0
  %1524 = vmatpush2.msra.mxu0 0.0
  %1525 = vmatprep.subr.mxu0 0.0
  %1526 = vmatpush2.msra.mxu0 0.0
  %1527 = vmatprep.subr.mxu0 0.0
  %1528 = vmatpush2.msra.mxu0 0.0
  %1529 = vmatprep.subr.mxu0 0.0
  %1530 = vmatpush2.msra.mxu0 0.0
  %1531 = vmatprep.mubr.f32.mxu0 0.0
  %1532 = vmatmul.mubr.f32.gmra.mxu0 %v1412
  %v1533 = vpop.f32.mrf.mxu0
  %v1534 = vadd.f32 0.0, %v1533
  %v1535 = vpop.f32.mrf.mxu0
  %v1536 = vadd.f32 0.0, %v1535
  %1537 = vdwg.mxu0
  %1538 = vmatprep.subr.mxu0 0.0
  %1539 = vmatpush1.msra.mxu0 %v1466
  %1540 = vmatprep.subr.mxu0 0.0
  %1541 = vmatpush1.msra.mxu0 %v1463
  %1542 = vmatprep.subr.mxu0 0.0
  %1543 = vmatpush1.msra.mxu0 %v1460
  %1544 = vmatprep.subr.mxu0 0.0
  %1545 = vmatpush1.msra.mxu0 %v1457
  %1546 = vmatprep.subr.mxu0 0.0
  %1547 = vmatpush1.msra.mxu0 %v1454
  %1548 = vmatprep.subr.mxu0 0.0
  %1549 = vmatpush1.msra.mxu0 %v1451
  %1550 = vmatprep.subr.mxu0 0.0
  %1551 = vmatpush1.msra.mxu0 %v1448
  %1552 = vmatprep.subr.mxu0 0.0
  %1553 = vmatpush1.msra.mxu0 %v1445
  %1554 = vmatprep.subr.mxu0 0.0
  %1555 = vmatpush1.msra.mxu0 %v1442
  %1556 = vmatprep.subr.mxu0 0.0
  %1557 = vmatpush1.msra.mxu0 %v1439
  %1558 = vmatprep.subr.mxu0 0.0
  %1559 = vmatpush1.msra.mxu0 %v1436
  %1560 = vmatprep.subr.mxu0 0.0
  %1561 = vmatpush1.msra.mxu0 %v1433
  %1562 = vmatprep.subr.mxu0 0.0
  %1563 = vmatpush1.msra.mxu0 %v1430
  %1564 = vmatprep.subr.mxu0 0.0
  %1565 = vmatpush1.msra.mxu0 %v1427
  %1566 = vmatprep.subr.mxu0 0.0
  %1567 = vmatpush1.msra.mxu0 %v1424
  %1568 = vmatprep.subr.mxu0 0.0
  %1569 = vmatpush1.msra.mxu0 %v1421
  %1570 = vmatprep.subr.mxu0 0.0
  %1571 = vmatpush2.msra.mxu0 0.0
  %1572 = vmatprep.subr.mxu0 0.0
  %1573 = vmatpush2.msra.mxu0 0.0
  %1574 = vmatprep.subr.mxu0 0.0
  %1575 = vmatpush2.msra.mxu0 0.0
  %1576 = vmatprep.subr.mxu0 0.0
  %1577 = vmatpush2.msra.mxu0 0.0
  %1578 = vmatprep.subr.mxu0 0.0
  %1579 = vmatpush2.msra.mxu0 0.0
  %1580 = vmatprep.subr.mxu0 0.0
  %1581 = vmatpush2.msra.mxu0 0.0
  %1582 = vmatprep.subr.mxu0 0.0
  %1583 = vmatpush2.msra.mxu0 0.0
  %1584 = vmatprep.subr.mxu0 0.0
  %1585 = vmatpush2.msra.mxu0 0.0
  %1586 = vmatprep.subr.mxu0 0.0
  %1587 = vmatpush2.msra.mxu0 0.0
  %1588 = vmatprep.subr.mxu0 0.0
  %1589 = vmatpush2.msra.mxu0 0.0
  %1590 = vmatprep.subr.mxu0 0.0
  %1591 = vmatpush2.msra.mxu0 0.0
  %1592 = vmatprep.subr.mxu0 0.0
  %1593 = vmatpush2.msra.mxu0 0.0
  %1594 = vmatprep.subr.mxu0 0.0
  %1595 = vmatpush2.msra.mxu0 0.0
  %1596 = vmatprep.subr.mxu0 0.0
  %1597 = vmatpush2.msra.mxu0 0.0
  %1598 = vmatprep.subr.mxu0 0.0
  %1599 = vmatpush2.msra.mxu0 0.0
  %1600 = vmatprep.subr.mxu0 0.0
  %1601 = vmatpush2.msra.mxu0 0.0
  %1602 = vmatprep.mubr.f32.mxu0 0.0
  %1603 = vmatmul.mubr.f32.gmra.mxu0 %v1412
  %v1604 = vpop.f32.mrf.mxu0
  %v1605 = vadd.f32 0.0, %v1604
  %v1606 = vpop.f32.mrf.mxu0
  %1607 = vdwg.mxu0
  %v1608 = vadd.f32 %v1416, %v1534
  %v1609 = vxor.u32 %v1608, 2147483648
  %v1610 = vmul.f32 %v1609, 1.442695
  %v1611 = vpow.pop %v1610
  %v1612 = vadd.f32 %v1611, 1.0
  %v1613 = vrcp.pop %v1612
  %v1614 = vmul.f32 1.0, %v1613
  %v1615 = vadd.f32 %v1417, %v1536
  %v1616 = vxor.u32 %v1615, 2147483648
  %v1617 = vmul.f32 %v1616, 1.442695
  %v1618 = vpow.pop %v1617
  %v1619 = vadd.f32 %v1618, 1.0
  %v1620 = vrcp.pop %v1619
  %v1621 = vmul.f32 1.0, %v1620
  %v1622 = vadd.f32 %v1605, %v334
  %v1623 = vmul.f32 %v1614, %v1622
  %v1624 = vadd.f32 %v1418, %v1623
  %v1625 = vtanh.pop %v1624
  %v1626 = vsub.f32 %v1412, %v1625
  %v1627 = vmul.f32 %v1621, %v1626
  %v1628 = vadd.f32 %v1625, %v1627
  %s1629 = scalar_lea.vmem %s5, 40
  %1630 = vst [vmem:[%s1629] sm:$0xff] %v1628
  %s1631 = scalar_lea.vmem [#allocation3], 144
  %v1632 = vld [vmem:[%s1631] sm:$0xff]
  %v1633 = vld [vmem:[%s1631 + $0x8] sm:$0xff]
  %v1634 = vld [vmem:[%s1631 + $0x10] sm:$0xff]
  %v1635 = vld [vmem:[%s2] sm:$0xff]
  %v1636 = vld [vmem:[%s2 + $0x8] sm:$0xff]
  %v1637 = vld [vmem:[%s2 + $0x10] sm:$0xff]
  %v1638 = vld [vmem:[%s2 + $0x18] sm:$0xff]
  %v1639 = vld [vmem:[%s2 + $0x20] sm:$0xff]
  %v1640 = vld [vmem:[%s2 + $0x28] sm:$0xff]
  %v1641 = vld [vmem:[%s2 + $0x30] sm:$0xff]
  %v1642 = vld [vmem:[%s2 + $0x38] sm:$0xff]
  %v1643 = vld [vmem:[%s2 + $0x40] sm:$0xff]
  %v1644 = vld [vmem:[%s2 + $0x48] sm:$0xff]
  %v1645 = vld [vmem:[%s2 + $0x50] sm:$0xff]
  %v1646 = vld [vmem:[%s2 + $0x58] sm:$0xff]
  %v1647 = vld [vmem:[%s2 + $0x60] sm:$0xff]
  %v1648 = vld [vmem:[%s2 + $0x68] sm:$0xff]
  %v1649 = vld [vmem:[%s2 + $0x70] sm:$0xff]
  %v1650 = vld [vmem:[%s2 + $0x78] sm:$0xff]
  %v1651 = vld [vmem:[%s2 + $0x80] sm:$0xff]
  %v1652 = vld [vmem:[%s2 + $0x88] sm:$0xff]
  %v1653 = vld [vmem:[%s2 + $0x90] sm:$0xff]
  %v1654 = vld [vmem:[%s2 + $0x98] sm:$0xff]
  %v1655 = vld [vmem:[%s2 + $0xa0] sm:$0xff]
  %v1656 = vld [vmem:[%s2 + $0xa8] sm:$0xff]
  %v1657 = vld [vmem:[%s2 + $0xb0] sm:$0xff]
  %v1658 = vld [vmem:[%s2 + $0xb8] sm:$0xff]
  %v1659 = vld [vmem:[%s2 + $0xc0] sm:$0xff]
  %v1660 = vld [vmem:[%s2 + $0xc8] sm:$0xff]
  %v1661 = vld [vmem:[%s2 + $0xd0] sm:$0xff]
  %v1662 = vld [vmem:[%s2 + $0xd8] sm:$0xff]
  %v1663 = vld [vmem:[%s2 + $0xe0] sm:$0xff]
  %v1664 = vld [vmem:[%s2 + $0xe8] sm:$0xff]
  %v1665 = vld [vmem:[%s2 + $0xf0] sm:$0xff]
  %v1666 = vld [vmem:[%s2 + $0xf8] sm:$0xff]
  %v1667 = vld [vmem:[%s2 + $0x100] sm:$0xff]
  %v1668 = vld [vmem:[%s2 + $0x108] sm:$0xff]
  %v1669 = vld [vmem:[%s2 + $0x110] sm:$0xff]
  %v1670 = vld [vmem:[%s2 + $0x118] sm:$0xff]
  %v1671 = vld [vmem:[%s2 + $0x120] sm:$0xff]
  %v1672 = vld [vmem:[%s2 + $0x128] sm:$0xff]
  %v1673 = vld [vmem:[%s2 + $0x130] sm:$0xff]
  %v1674 = vld [vmem:[%s2 + $0x138] sm:$0xff]
  %v1675 = vld [vmem:[%s2 + $0x140] sm:$0xff]
  %v1676 = vld [vmem:[%s2 + $0x148] sm:$0xff]
  %v1677 = vld [vmem:[%s2 + $0x150] sm:$0xff]
  %v1678 = vld [vmem:[%s2 + $0x158] sm:$0xff]
  %v1679 = vld [vmem:[%s2 + $0x160] sm:$0xff]
  %v1680 = vld [vmem:[%s2 + $0x168] sm:$0xff]
  %v1681 = vld [vmem:[%s2 + $0x170] sm:$0xff]
  %v1682 = vld [vmem:[%s2 + $0x178] sm:$0xff]
  %1683 = vmatprep.subr.mxu0 %v1681
  %1684 = vmatpush1.msra.mxu0 %v1680
  %1685 = vmatprep.subr.mxu0 %v1678
  %1686 = vmatpush1.msra.mxu0 %v1677
  %1687 = vmatprep.subr.mxu0 %v1675
  %1688 = vmatpush1.msra.mxu0 %v1674
  %1689 = vmatprep.subr.mxu0 %v1672
  %1690 = vmatpush1.msra.mxu0 %v1671
  %1691 = vmatprep.subr.mxu0 %v1669
  %1692 = vmatpush1.msra.mxu0 %v1668
  %1693 = vmatprep.subr.mxu0 %v1666
  %1694 = vmatpush1.msra.mxu0 %v1665
  %1695 = vmatprep.subr.mxu0 %v1663
  %1696 = vmatpush1.msra.mxu0 %v1662
  %1697 = vmatprep.subr.mxu0 %v1660
  %1698 = vmatpush1.msra.mxu0 %v1659
  %1699 = vmatprep.subr.mxu0 %v1657
  %1700 = vmatpush1.msra.mxu0 %v1656
  %1701 = vmatprep.subr.mxu0 %v1654
  %1702 = vmatpush1.msra.mxu0 %v1653
  %1703 = vmatprep.subr.mxu0 %v1651
  %1704 = vmatpush1.msra.mxu0 %v1650
  %1705 = vmatprep.subr.mxu0 %v1648
  %1706 = vmatpush1.msra.mxu0 %v1647
  %1707 = vmatprep.subr.mxu0 %v1645
  %1708 = vmatpush1.msra.mxu0 %v1644
  %1709 = vmatprep.subr.mxu0 %v1642
  %1710 = vmatpush1.msra.mxu0 %v1641
  %1711 = vmatprep.subr.mxu0 %v1639
  %1712 = vmatpush1.msra.mxu0 %v1638
  %1713 = vmatprep.subr.mxu0 %v1636
  %1714 = vmatpush1.msra.mxu0 %v1635
  %1715 = vmatprep.subr.mxu0 0.0
  %1716 = vmatpush2.msra.mxu0 0.0
  %1717 = vmatprep.subr.mxu0 0.0
  %1718 = vmatpush2.msra.mxu0 0.0
  %1719 = vmatprep.subr.mxu0 0.0
  %1720 = vmatpush2.msra.mxu0 0.0
  %1721 = vmatprep.subr.mxu0 0.0
  %1722 = vmatpush2.msra.mxu0 0.0
  %1723 = vmatprep.subr.mxu0 0.0
  %1724 = vmatpush2.msra.mxu0 0.0
  %1725 = vmatprep.subr.mxu0 0.0
  %1726 = vmatpush2.msra.mxu0 0.0
  %1727 = vmatprep.subr.mxu0 0.0
  %1728 = vmatpush2.msra.mxu0 0.0
  %1729 = vmatprep.subr.mxu0 0.0
  %1730 = vmatpush2.msra.mxu0 0.0
  %1731 = vmatprep.subr.mxu0 0.0
  %1732 = vmatpush2.msra.mxu0 0.0
  %1733 = vmatprep.subr.mxu0 0.0
  %1734 = vmatpush2.msra.mxu0 0.0
  %1735 = vmatprep.subr.mxu0 0.0
  %1736 = vmatpush2.msra.mxu0 0.0
  %1737 = vmatprep.subr.mxu0 0.0
  %1738 = vmatpush2.msra.mxu0 0.0
  %1739 = vmatprep.subr.mxu0 0.0
  %1740 = vmatpush2.msra.mxu0 0.0
  %1741 = vmatprep.subr.mxu0 0.0
  %1742 = vmatpush2.msra.mxu0 0.0
  %1743 = vmatprep.subr.mxu0 0.0
  %1744 = vmatpush2.msra.mxu0 0.0
  %1745 = vmatprep.subr.mxu0 0.0
  %1746 = vmatpush2.msra.mxu0 0.0
  %1747 = vmatprep.mubr.f32.mxu0 0.0
  %1748 = vmatmul.mubr.f32.gmra.mxu0 %v1628
  %v1749 = vpop.f32.mrf.mxu0
  %v1750 = vadd.f32 0.0, %v1749
  %v1751 = vpop.f32.mrf.mxu0
  %v1752 = vadd.f32 0.0, %v1751
  %1753 = vdwg.mxu0
  %1754 = vmatprep.subr.mxu0 0.0
  %1755 = vmatpush1.msra.mxu0 %v1682
  %1756 = vmatprep.subr.mxu0 0.0
  %1757 = vmatpush1.msra.mxu0 %v1679
  %1758 = vmatprep.subr.mxu0 0.0
  %1759 = vmatpush1.msra.mxu0 %v1676
  %1760 = vmatprep.subr.mxu0 0.0
  %1761 = vmatpush1.msra.mxu0 %v1673
  %1762 = vmatprep.subr.mxu0 0.0
  %1763 = vmatpush1.msra.mxu0 %v1670
  %1764 = vmatprep.subr.mxu0 0.0
  %1765 = vmatpush1.msra.mxu0 %v1667
  %1766 = vmatprep.subr.mxu0 0.0
  %1767 = vmatpush1.msra.mxu0 %v1664
  %1768 = vmatprep.subr.mxu0 0.0
  %1769 = vmatpush1.msra.mxu0 %v1661
  %1770 = vmatprep.subr.mxu0 0.0
  %1771 = vmatpush1.msra.mxu0 %v1658
  %1772 = vmatprep.subr.mxu0 0.0
  %1773 = vmatpush1.msra.mxu0 %v1655
  %1774 = vmatprep.subr.mxu0 0.0
  %1775 = vmatpush1.msra.mxu0 %v1652
  %1776 = vmatprep.subr.mxu0 0.0
  %1777 = vmatpush1.msra.mxu0 %v1649
  %1778 = vmatprep.subr.mxu0 0.0
  %1779 = vmatpush1.msra.mxu0 %v1646
  %1780 = vmatprep.subr.mxu0 0.0
  %1781 = vmatpush1.msra.mxu0 %v1643
  %1782 = vmatprep.subr.mxu0 0.0
  %1783 = vmatpush1.msra.mxu0 %v1640
  %1784 = vmatprep.subr.mxu0 0.0
  %1785 = vmatpush1.msra.mxu0 %v1637
  %1786 = vmatprep.subr.mxu0 0.0
  %1787 = vmatpush2.msra.mxu0 0.0
  %1788 = vmatprep.subr.mxu0 0.0
  %1789 = vmatpush2.msra.mxu0 0.0
  %1790 = vmatprep.subr.mxu0 0.0
  %1791 = vmatpush2.msra.mxu0 0.0
  %1792 = vmatprep.subr.mxu0 0.0
  %1793 = vmatpush2.msra.mxu0 0.0
  %1794 = vmatprep.subr.mxu0 0.0
  %1795 = vmatpush2.msra.mxu0 0.0
  %1796 = vmatprep.subr.mxu0 0.0
  %1797 = vmatpush2.msra.mxu0 0.0
  %1798 = vmatprep.subr.mxu0 0.0
  %1799 = vmatpush2.msra.mxu0 0.0
  %1800 = vmatprep.subr.mxu0 0.0
  %1801 = vmatpush2.msra.mxu0 0.0
  %1802 = vmatprep.subr.mxu0 0.0
  %1803 = vmatpush2.msra.mxu0 0.0
  %1804 = vmatprep.subr.mxu0 0.0
  %1805 = vmatpush2.msra.mxu0 0.0
  %1806 = vmatprep.subr.mxu0 0.0
  %1807 = vmatpush2.msra.mxu0 0.0
  %1808 = vmatprep.subr.mxu0 0.0
  %1809 = vmatpush2.msra.mxu0 0.0
  %1810 = vmatprep.subr.mxu0 0.0
  %1811 = vmatpush2.msra.mxu0 0.0
  %1812 = vmatprep.subr.mxu0 0.0
  %1813 = vmatpush2.msra.mxu0 0.0
  %1814 = vmatprep.subr.mxu0 0.0
  %1815 = vmatpush2.msra.mxu0 0.0
  %1816 = vmatprep.subr.mxu0 0.0
  %1817 = vmatpush2.msra.mxu0 0.0
  %1818 = vmatprep.mubr.f32.mxu0 0.0
  %1819 = vmatmul.mubr.f32.gmra.mxu0 %v1628
  %v1820 = vpop.f32.mrf.mxu0
  %v1821 = vadd.f32 0.0, %v1820
  %v1822 = vpop.f32.mrf.mxu0
  %1823 = vdwg.mxu0
  %v1824 = vadd.f32 %v1632, %v1750
  %v1825 = vxor.u32 %v1824, 2147483648
  %v1826 = vmul.f32 %v1825, 1.442695
  %v1827 = vpow.pop %v1826
  %v1828 = vadd.f32 %v1827, 1.0
  %v1829 = vrcp.pop %v1828
  %v1830 = vmul.f32 1.0, %v1829
  %v1831 = vadd.f32 %v1633, %v1752
  %v1832 = vxor.u32 %v1831, 2147483648
  %v1833 = vmul.f32 %v1832, 1.442695
  %v1834 = vpow.pop %v1833
  %v1835 = vadd.f32 %v1834, 1.0
  %v1836 = vrcp.pop %v1835
  %v1837 = vmul.f32 1.0, %v1836
  %v1838 = vadd.f32 %v1821, %v334
  %v1839 = vmul.f32 %v1830, %v1838
  %v1840 = vadd.f32 %v1634, %v1839
  %v1841 = vtanh.pop %v1840
  %v1842 = vsub.f32 %v1628, %v1841
  %v1843 = vmul.f32 %v1837, %v1842
  %v1844 = vadd.f32 %v1841, %v1843
  %s1845 = scalar_lea.vmem %s5, 48
  %1846 = vst [vmem:[%s1845] sm:$0xff] %v1844
  %s1847 = scalar_lea.vmem [#allocation3], 168
  %v1848 = vld [vmem:[%s1847] sm:$0xff]
  %v1849 = vld [vmem:[%s1847 + $0x8] sm:$0xff]
  %v1850 = vld [vmem:[%s1847 + $0x10] sm:$0xff]
  %v1851 = vld [vmem:[%s2] sm:$0xff]
  %v1852 = vld [vmem:[%s2 + $0x8] sm:$0xff]
  %v1853 = vld [vmem:[%s2 + $0x10] sm:$0xff]
  %v1854 = vld [vmem:[%s2 + $0x18] sm:$0xff]
  %v1855 = vld [vmem:[%s2 + $0x20] sm:$0xff]
  %v1856 = vld [vmem:[%s2 + $0x28] sm:$0xff]
  %v1857 = vld [vmem:[%s2 + $0x30] sm:$0xff]
  %v1858 = vld [vmem:[%s2 + $0x38] sm:$0xff]
  %v1859 = vld [vmem:[%s2 + $0x40] sm:$0xff]
  %v1860 = vld [vmem:[%s2 + $0x48] sm:$0xff]
  %v1861 = vld [vmem:[%s2 + $0x50] sm:$0xff]
  %v1862 = vld [vmem:[%s2 + $0x58] sm:$0xff]
  %v1863 = vld [vmem:[%s2 + $0x60] sm:$0xff]
  %v1864 = vld [vmem:[%s2 + $0x68] sm:$0xff]
  %v1865 = vld [vmem:[%s2 + $0x70] sm:$0xff]
  %v1866 = vld [vmem:[%s2 + $0x78] sm:$0xff]
  %v1867 = vld [vmem:[%s2 + $0x80] sm:$0xff]
  %v1868 = vld [vmem:[%s2 + $0x88] sm:$0xff]
  %v1869 = vld [vmem:[%s2 + $0x90] sm:$0xff]
  %v1870 = vld [vmem:[%s2 + $0x98] sm:$0xff]
  %v1871 = vld [vmem:[%s2 + $0xa0] sm:$0xff]
  %v1872 = vld [vmem:[%s2 + $0xa8] sm:$0xff]
  %v1873 = vld [vmem:[%s2 + $0xb0] sm:$0xff]
  %v1874 = vld [vmem:[%s2 + $0xb8] sm:$0xff]
  %v1875 = vld [vmem:[%s2 + $0xc0] sm:$0xff]
  %v1876 = vld [vmem:[%s2 + $0xc8] sm:$0xff]
  %v1877 = vld [vmem:[%s2 + $0xd0] sm:$0xff]
  %v1878 = vld [vmem:[%s2 + $0xd8] sm:$0xff]
  %v1879 = vld [vmem:[%s2 + $0xe0] sm:$0xff]
  %v1880 = vld [vmem:[%s2 + $0xe8] sm:$0xff]
  %v1881 = vld [vmem:[%s2 + $0xf0] sm:$0xff]
  %v1882 = vld [vmem:[%s2 + $0xf8] sm:$0xff]
  %v1883 = vld [vmem:[%s2 + $0x100] sm:$0xff]
  %v1884 = vld [vmem:[%s2 + $0x108] sm:$0xff]
  %v1885 = vld [vmem:[%s2 + $0x110] sm:$0xff]
  %v1886 = vld [vmem:[%s2 + $0x118] sm:$0xff]
  %v1887 = vld [vmem:[%s2 + $0x120] sm:$0xff]
  %v1888 = vld [vmem:[%s2 + $0x128] sm:$0xff]
  %v1889 = vld [vmem:[%s2 + $0x130] sm:$0xff]
  %v1890 = vld [vmem:[%s2 + $0x138] sm:$0xff]
  %v1891 = vld [vmem:[%s2 + $0x140] sm:$0xff]
  %v1892 = vld [vmem:[%s2 + $0x148] sm:$0xff]
  %v1893 = vld [vmem:[%s2 + $0x150] sm:$0xff]
  %v1894 = vld [vmem:[%s2 + $0x158] sm:$0xff]
  %v1895 = vld [vmem:[%s2 + $0x160] sm:$0xff]
  %v1896 = vld [vmem:[%s2 + $0x168] sm:$0xff]
  %v1897 = vld [vmem:[%s2 + $0x170] sm:$0xff]
  %v1898 = vld [vmem:[%s2 + $0x178] sm:$0xff]
  %1899 = vmatprep.subr.mxu0 %v1897
  %1900 = vmatpush1.msra.mxu0 %v1896
  %1901 = vmatprep.subr.mxu0 %v1894
  %1902 = vmatpush1.msra.mxu0 %v1893
  %1903 = vmatprep.subr.mxu0 %v1891
  %1904 = vmatpush1.msra.mxu0 %v1890
  %1905 = vmatprep.subr.mxu0 %v1888
  %1906 = vmatpush1.msra.mxu0 %v1887
  %1907 = vmatprep.subr.mxu0 %v1885
  %1908 = vmatpush1.msra.mxu0 %v1884
  %1909 = vmatprep.subr.mxu0 %v1882
  %1910 = vmatpush1.msra.mxu0 %v1881
  %1911 = vmatprep.subr.mxu0 %v1879
  %1912 = vmatpush1.msra.mxu0 %v1878
  %1913 = vmatprep.subr.mxu0 %v1876
  %1914 = vmatpush1.msra.mxu0 %v1875
  %1915 = vmatprep.subr.mxu0 %v1873
  %1916 = vmatpush1.msra.mxu0 %v1872
  %1917 = vmatprep.subr.mxu0 %v1870
  %1918 = vmatpush1.msra.mxu0 %v1869
  %1919 = vmatprep.subr.mxu0 %v1867
  %1920 = vmatpush1.msra.mxu0 %v1866
  %1921 = vmatprep.subr.mxu0 %v1864
  %1922 = vmatpush1.msra.mxu0 %v1863
  %1923 = vmatprep.subr.mxu0 %v1861
  %1924 = vmatpush1.msra.mxu0 %v1860
  %1925 = vmatprep.subr.mxu0 %v1858
  %1926 = vmatpush1.msra.mxu0 %v1857
  %1927 = vmatprep.subr.mxu0 %v1855
  %1928 = vmatpush1.msra.mxu0 %v1854
  %1929 = vmatprep.subr.mxu0 %v1852
  %1930 = vmatpush1.msra.mxu0 %v1851
  %1931 = vmatprep.subr.mxu0 0.0
  %1932 = vmatpush2.msra.mxu0 0.0
  %1933 = vmatprep.subr.mxu0 0.0
  %1934 = vmatpush2.msra.mxu0 0.0
  %1935 = vmatprep.subr.mxu0 0.0
  %1936 = vmatpush2.msra.mxu0 0.0
  %1937 = vmatprep.subr.mxu0 0.0
  %1938 = vmatpush2.msra.mxu0 0.0
  %1939 = vmatprep.subr.mxu0 0.0
  %1940 = vmatpush2.msra.mxu0 0.0
  %1941 = vmatprep.subr.mxu0 0.0
  %1942 = vmatpush2.msra.mxu0 0.0
  %1943 = vmatprep.subr.mxu0 0.0
  %1944 = vmatpush2.msra.mxu0 0.0
  %1945 = vmatprep.subr.mxu0 0.0
  %1946 = vmatpush2.msra.mxu0 0.0
  %1947 = vmatprep.subr.mxu0 0.0
  %1948 = vmatpush2.msra.mxu0 0.0
  %1949 = vmatprep.subr.mxu0 0.0
  %1950 = vmatpush2.msra.mxu0 0.0
  %1951 = vmatprep.subr.mxu0 0.0
  %1952 = vmatpush2.msra.mxu0 0.0
  %1953 = vmatprep.subr.mxu0 0.0
  %1954 = vmatpush2.msra.mxu0 0.0
  %1955 = vmatprep.subr.mxu0 0.0
  %1956 = vmatpush2.msra.mxu0 0.0
  %1957 = vmatprep.subr.mxu0 0.0
  %1958 = vmatpush2.msra.mxu0 0.0
  %1959 = vmatprep.subr.mxu0 0.0
  %1960 = vmatpush2.msra.mxu0 0.0
  %1961 = vmatprep.subr.mxu0 0.0
  %1962 = vmatpush2.msra.mxu0 0.0
  %1963 = vmatprep.mubr.f32.mxu0 0.0
  %1964 = vmatmul.mubr.f32.gmra.mxu0 %v1844
  %v1965 = vpop.f32.mrf.mxu0
  %v1966 = vadd.f32 0.0, %v1965
  %v1967 = vpop.f32.mrf.mxu0
  %v1968 = vadd.f32 0.0, %v1967
  %1969 = vdwg.mxu0
  %1970 = vmatprep.subr.mxu0 0.0
  %1971 = vmatpush1.msra.mxu0 %v1898
  %1972 = vmatprep.subr.mxu0 0.0
  %1973 = vmatpush1.msra.mxu0 %v1895
  %1974 = vmatprep.subr.mxu0 0.0
  %1975 = vmatpush1.msra.mxu0 %v1892
  %1976 = vmatprep.subr.mxu0 0.0
  %1977 = vmatpush1.msra.mxu0 %v1889
  %1978 = vmatprep.subr.mxu0 0.0
  %1979 = vmatpush1.msra.mxu0 %v1886
  %1980 = vmatprep.subr.mxu0 0.0
  %1981 = vmatpush1.msra.mxu0 %v1883
  %1982 = vmatprep.subr.mxu0 0.0
  %1983 = vmatpush1.msra.mxu0 %v1880
  %1984 = vmatprep.subr.mxu0 0.0
  %1985 = vmatpush1.msra.mxu0 %v1877
  %1986 = vmatprep.subr.mxu0 0.0
  %1987 = vmatpush1.msra.mxu0 %v1874
  %1988 = vmatprep.subr.mxu0 0.0
  %1989 = vmatpush1.msra.mxu0 %v1871
  %1990 = vmatprep.subr.mxu0 0.0
  %1991 = vmatpush1.msra.mxu0 %v1868
  %1992 = vmatprep.subr.mxu0 0.0
  %1993 = vmatpush1.msra.mxu0 %v1865
  %1994 = vmatprep.subr.mxu0 0.0
  %1995 = vmatpush1.msra.mxu0 %v1862
  %1996 = vmatprep.subr.mxu0 0.0
  %1997 = vmatpush1.msra.mxu0 %v1859
  %1998 = vmatprep.subr.mxu0 0.0
  %1999 = vmatpush1.msra.mxu0 %v1856
  %2000 = vmatprep.subr.mxu0 0.0
  %2001 = vmatpush1.msra.mxu0 %v1853
  %2002 = vmatprep.subr.mxu0 0.0
  %2003 = vmatpush2.msra.mxu0 0.0
  %2004 = vmatprep.subr.mxu0 0.0
  %2005 = vmatpush2.msra.mxu0 0.0
  %2006 = vmatprep.subr.mxu0 0.0
  %2007 = vmatpush2.msra.mxu0 0.0
  %2008 = vmatprep.subr.mxu0 0.0
  %2009 = vmatpush2.msra.mxu0 0.0
  %2010 = vmatprep.subr.mxu0 0.0
  %2011 = vmatpush2.msra.mxu0 0.0
  %2012 = vmatprep.subr.mxu0 0.0
  %2013 = vmatpush2.msra.mxu0 0.0
  %2014 = vmatprep.subr.mxu0 0.0
  %2015 = vmatpush2.msra.mxu0 0.0
  %2016 = vmatprep.subr.mxu0 0.0
  %2017 = vmatpush2.msra.mxu0 0.0
  %2018 = vmatprep.subr.mxu0 0.0
  %2019 = vmatpush2.msra.mxu0 0.0
  %2020 = vmatprep.subr.mxu0 0.0
  %2021 = vmatpush2.msra.mxu0 0.0
  %2022 = vmatprep.subr.mxu0 0.0
  %2023 = vmatpush2.msra.mxu0 0.0
  %2024 = vmatprep.subr.mxu0 0.0
  %2025 = vmatpush2.msra.mxu0 0.0
  %2026 = vmatprep.subr.mxu0 0.0
  %2027 = vmatpush2.msra.mxu0 0.0
  %2028 = vmatprep.subr.mxu0 0.0
  %2029 = vmatpush2.msra.mxu0 0.0
  %2030 = vmatprep.subr.mxu0 0.0
  %2031 = vmatpush2.msra.mxu0 0.0
  %2032 = vmatprep.subr.mxu0 0.0
  %2033 = vmatpush2.msra.mxu0 0.0
  %2034 = vmatprep.mubr.f32.mxu0 0.0
  %2035 = vmatmul.mubr.f32.gmra.mxu0 %v1844
  %v2036 = vpop.f32.mrf.mxu0
  %v2037 = vadd.f32 0.0, %v2036
  %v2038 = vpop.f32.mrf.mxu0
  %2039 = vdwg.mxu0
  %v2040 = vadd.f32 %v1848, %v1966
  %v2041 = vxor.u32 %v2040, 2147483648
  %v2042 = vmul.f32 %v2041, 1.442695
  %v2043 = vpow.pop %v2042
  %v2044 = vadd.f32 %v2043, 1.0
  %v2045 = vrcp.pop %v2044
  %v2046 = vmul.f32 1.0, %v2045
  %v2047 = vadd.f32 %v1849, %v1968
  %v2048 = vxor.u32 %v2047, 2147483648
  %v2049 = vmul.f32 %v2048, 1.442695
  %v2050 = vpow.pop %v2049
  %v2051 = vadd.f32 %v2050, 1.0
  %v2052 = vrcp.pop %v2051
  %v2053 = vmul.f32 1.0, %v2052
  %v2054 = vadd.f32 %v2037, %v334
  %v2055 = vmul.f32 %v2046, %v2054
  %v2056 = vadd.f32 %v1850, %v2055
  %v2057 = vtanh.pop %v2056
  %v2058 = vsub.f32 %v1844, %v2057
  %v2059 = vmul.f32 %v2053, %v2058
  %v2060 = vadd.f32 %v2057, %v2059
  %s2061 = scalar_lea.vmem %s5, 56
  %2062 = vst [vmem:[%s2061] sm:$0xff] %v2060
  %2063 = vst [vmem:[#allocation2] sm:$0xff] %v2060
  // Predicated region
  $region26: #{gru_forward.2} parent=0 // pred_check
    _
  $region27: #{gru_forward.2} parent=0 // pred_check_branch
    %2065 = sbr.rel (0) target = $region29
  $region28: #{gru_forward.2} parent=0 // pred_region
    _
  $region29: #{gru_forward.2} parent=0 // pred_fallthru
    _
  // Predicated region
  $region30: #{gru_forward.2} parent=0 // pred_check
    _
  $region31: #{gru_forward.2} parent=0 // pred_check_branch
    %2067 = sbr.rel (0) target = $region33
  $region32: #{gru_forward.2} parent=0 // pred_region
    _
  $region33: #{gru_forward.2} parent=0 // pred_fallthru
    _

// kernel: gru_forward.3
$region0: #{gru_forward.3}
  #allocation0 [shape = 'u32[]', space=smem, size = 0x4, offset = 0x4, fixed_abs, tag = 'smem constant byte address 0x4 - core index']
  #allocation1 [shape = 'u32[144,128]{1,0:T(1,128)}', space=vmem, size = 0x12000, scoped, tag = 'internal scratch']
  #allocation2 [shape = 'f32[8,128]{1,0:T(8,128)}', space=vmem, size = 0x1000, scoped, tag = 'scratch operand']
  #allocation3 [shape = 'f32[8,8,384]{2,1,0:T(8,128)}', space=vmem, size = 0x18000, scoped, tag = 'scratch operand']
  %s0 = inlined_call_operand.vmem [shape: f32[8,8,128], index: 0, kind: input, shape index: {}]
  %s1 = inlined_call_operand.vmem [shape: f32[128,384], index: 1, kind: input, shape index: {}]
  %s2 = inlined_call_operand.vmem [shape: f32[128,384], index: 2, kind: input, shape index: {}]
  %s3 = inlined_call_operand.vmem [shape: f32[1,384], index: 3, kind: input, shape index: {}]
  %s4 = inlined_call_operand.vmem [shape: f32[1,128], index: 4, kind: input, shape index: {}]
  %s5 = inlined_call_operand.vmem [shape: f32[128,4], index: 5, kind: input, shape index: {}]
  %s6 = inlined_call_operand.vmem [shape: f32[1,4], index: 6, kind: input, shape index: {}]
  %s7 = inlined_call_operand.vmem [shape: f32[8,4], index: 7, kind: output, shape index: {}]
  %s8 = sld [smem:[#allocation0]]
  $region46: #{gru_forward.3} parent=0
    _
  %s10 = ssub.s32 1, %s8
  %s11 = scalar_select 0, %s10, %s8
  // Predicated region
  $region2: #{gru_forward.3} parent=0 // pred_check
    _
  $region3: #{gru_forward.3} parent=0 // pred_check_branch
    %13 = sbr.rel (0) target = $region5
  $region4: #{gru_forward.3} parent=0 // pred_region
    _
  $region5: #{gru_forward.3} parent=0 // pred_fallthru
    _
  // Predicated region
  $region6: #{gru_forward.3} parent=0 // pred_check
    _
  $region7: #{gru_forward.3} parent=0 // pred_check_branch
    %15 = sbr.rel (0) target = $region9
  $region8: #{gru_forward.3} parent=0 // pred_region
    _
  $region9: #{gru_forward.3} parent=0 // pred_fallthru
    _
  // Predicated region
  $region10: #{gru_forward.3} parent=0 // pred_check
    _
  $region11: #{gru_forward.3} parent=0 // pred_check_branch
    %17 = sbr.rel (0) target = $region13
  $region12: #{gru_forward.3} parent=0 // pred_region
    _
  $region13: #{gru_forward.3} parent=0 // pred_fallthru
    _
  // Predicated region
  $region14: #{gru_forward.3} parent=0 // pred_check
    _
  $region15: #{gru_forward.3} parent=0 // pred_check_branch
    %19 = sbr.rel (0) target = $region17
  $region16: #{gru_forward.3} parent=0 // pred_region
    _
  $region17: #{gru_forward.3} parent=0 // pred_fallthru
    _
  // Predicated region
  $region18: #{gru_forward.3} parent=0 // pred_check
    _
  $region19: #{gru_forward.3} parent=0 // pred_check_branch
    %21 = sbr.rel (0) target = $region21
  $region20: #{gru_forward.3} parent=0 // pred_region
    _
  $region21: #{gru_forward.3} parent=0 // pred_fallthru
    _
  // Predicated region
  $region22: #{gru_forward.3} parent=0 // pred_check
    _
  $region23: #{gru_forward.3} parent=0 // pred_check_branch
    %23 = sbr.rel (0) target = $region25
  $region24: #{gru_forward.3} parent=0 // pred_region
    _
  $region25: #{gru_forward.3} parent=0 // pred_fallthru
    _
  // Predicated region
  $region26: #{gru_forward.3} parent=0 // pred_check
    _
  $region27: #{gru_forward.3} parent=0 // pred_check_branch
    %25 = sbr.rel (0) target = $region29
  $region28: #{gru_forward.3} parent=0 // pred_region
    _
  $region29: #{gru_forward.3} parent=0 // pred_fallthru
    _
  %p26 = scmp.eq.s32.totalorder 0, 0
  // Predicated region
  $region30: #{gru_forward.3} parent=0 // pred_check
    %p27 = pneg %p26
  $region31: #{gru_forward.3} parent=0 // pred_check_branch
    %29 = sbr.rel (%p27) target = $region33
  $region32: #{gru_forward.3} parent=0 // pred_region
    %30 = vst [vmem:[#allocation2] sm:$0xff] 0.0
  $region33: #{gru_forward.3} parent=0 // pred_fallthru
    _
  %v31 = vld [vmem:[%s0] sm:$0xff]
  %v32 = vld [vmem:[%s0 + $0x8] sm:$0xff]
  %v33 = vld [vmem:[%s0 + $0x10] sm:$0xff]
  %v34 = vld [vmem:[%s0 + $0x18] sm:$0xff]
  %v35 = vld [vmem:[%s0 + $0x20] sm:$0xff]
  %v36 = vld [vmem:[%s0 + $0x28] sm:$0xff]
  %v37 = vld [vmem:[%s0 + $0x30] sm:$0xff]
  %v38 = vld [vmem:[%s0 + $0x38] sm:$0xff]
  %v39 = vld [vmem:[%s1] sm:$0xff]
  %v40 = vld [vmem:[%s1 + $0x8] sm:$0xff]
  %v41 = vld [vmem:[%s1 + $0x10] sm:$0xff]
  %v42 = vld [vmem:[%s1 + $0x18] sm:$0xff]
  %v43 = vld [vmem:[%s1 + $0x20] sm:$0xff]
  %v44 = vld [vmem:[%s1 + $0x28] sm:$0xff]
  %v45 = vld [vmem:[%s1 + $0x30] sm:$0xff]
  %v46 = vld [vmem:[%s1 + $0x38] sm:$0xff]
  %v47 = vld [vmem:[%s1 + $0x40] sm:$0xff]
  %v48 = vld [vmem:[%s1 + $0x48] sm:$0xff]
  %v49 = vld [vmem:[%s1 + $0x50] sm:$0xff]
  %v50 = vld [vmem:[%s1 + $0x58] sm:$0xff]
  %v51 = vld [vmem:[%s1 + $0x60] sm:$0xff]
  %v52 = vld [vmem:[%s1 + $0x68] sm:$0xff]
  %v53 = vld [vmem:[%s1 + $0x70] sm:$0xff]
  %v54 = vld [vmem:[%s1 + $0x78] sm:$0xff]
  %v55 = vld [vmem:[%s1 + $0x80] sm:$0xff]
  %v56 = vld [vmem:[%s1 + $0x88] sm:$0xff]
  %v57 = vld [vmem:[%s1 + $0x90] sm:$0xff]
  %v58 = vld [vmem:[%s1 + $0x98] sm:$0xff]
  %v59 = vld [vmem:[%s1 + $0xa0] sm:$0xff]
  %v60 = vld [vmem:[%s1 + $0xa8] sm:$0xff]
  %v61 = vld [vmem:[%s1 + $0xb0] sm:$0xff]
  %v62 = vld [vmem:[%s1 + $0xb8] sm:$0xff]
  %v63 = vld [vmem:[%s1 + $0xc0] sm:$0xff]
  %v64 = vld [vmem:[%s1 + $0xc8] sm:$0xff]
  %v65 = vld [vmem:[%s1 + $0xd0] sm:$0xff]
  %v66 = vld [vmem:[%s1 + $0xd8] sm:$0xff]
  %v67 = vld [vmem:[%s1 + $0xe0] sm:$0xff]
  %v68 = vld [vmem:[%s1 + $0xe8] sm:$0xff]
  %v69 = vld [vmem:[%s1 + $0xf0] sm:$0xff]
  %v70 = vld [vmem:[%s1 + $0xf8] sm:$0xff]
  %v71 = vld [vmem:[%s1 + $0x100] sm:$0xff]
  %v72 = vld [vmem:[%s1 + $0x108] sm:$0xff]
  %v73 = vld [vmem:[%s1 + $0x110] sm:$0xff]
  %v74 = vld [vmem:[%s1 + $0x118] sm:$0xff]
  %v75 = vld [vmem:[%s1 + $0x120] sm:$0xff]
  %v76 = vld [vmem:[%s1 + $0x128] sm:$0xff]
  %v77 = vld [vmem:[%s1 + $0x130] sm:$0xff]
  %v78 = vld [vmem:[%s1 + $0x138] sm:$0xff]
  %v79 = vld [vmem:[%s1 + $0x140] sm:$0xff]
  %v80 = vld [vmem:[%s1 + $0x148] sm:$0xff]
  %v81 = vld [vmem:[%s1 + $0x150] sm:$0xff]
  %v82 = vld [vmem:[%s1 + $0x158] sm:$0xff]
  %v83 = vld [vmem:[%s1 + $0x160] sm:$0xff]
  %v84 = vld [vmem:[%s1 + $0x168] sm:$0xff]
  %v85 = vld [vmem:[%s1 + $0x170] sm:$0xff]
  %v86 = vld [vmem:[%s1 + $0x178] sm:$0xff]
  %v87 = vld [vmem:[%s3] sm:$0x7]
  %v89 = vlaneseq
  %v90 = vshrl.u32 %v89, 7
  %v91 = vsub.s32 0, %v90
  %v92 = vrot.slane %v87, %v91
  %v93 = vlaneseq
  %v94 = vshrl.u32 %v93, 7
  %v95 = vsub.s32 1, %v94
  %v96 = vrot.slane %v87, %v95
  %v97 = vlaneseq
  %v98 = vshrl.u32 %v97, 7
  %v99 = vsub.s32 2, %v98
  %v100 = vrot.slane %v87, %v99
  %104 = vmatprep.subr.mxu0 %v85
  %105 = vmatpush1.msra.mxu0 %v84
  %106 = vmatprep.subr.mxu0 %v82
  %107 = vmatpush1.msra.mxu0 %v81
  %108 = vmatprep.subr.mxu0 %v79
  %109 = vmatpush1.msra.mxu0 %v78
  %110 = vmatprep.subr.mxu0 %v76
  %111 = vmatpush1.msra.mxu0 %v75
  %112 = vmatprep.subr.mxu0 %v73
  %113 = vmatpush1.msra.mxu0 %v72
  %114 = vmatprep.subr.mxu0 %v70
  %115 = vmatpush1.msra.mxu0 %v69
  %116 = vmatprep.subr.mxu0 %v67
  %117 = vmatpush1.msra.mxu0 %v66
  %118 = vmatprep.subr.mxu0 %v64
  %119 = vmatpush1.msra.mxu0 %v63
  %120 = vmatprep.subr.mxu0 %v61
  %121 = vmatpush1.msra.mxu0 %v60
  %122 = vmatprep.subr.mxu0 %v58
  %123 = vmatpush1.msra.mxu0 %v57
  %124 = vmatprep.subr.mxu0 %v55
  %125 = vmatpush1.msra.mxu0 %v54
  %126 = vmatprep.subr.mxu0 %v52
  %127 = vmatpush1.msra.mxu0 %v51
  %128 = vmatprep.subr.mxu0 %v49
  %129 = vmatpush1.msra.mxu0 %v48
  %130 = vmatprep.subr.mxu0 %v46
  %131 = vmatpush1.msra.mxu0 %v45
  %132 = vmatprep.subr.mxu0 %v43
  %133 = vmatpush1.msra.mxu0 %v42
  %134 = vmatprep.subr.mxu0 %v40
  %135 = vmatpush1.msra.mxu0 %v39
  %136 = vmatprep.subr.mxu0 0.0
  %137 = vmatpush2.msra.mxu0 0.0
  %138 = vmatprep.subr.mxu0 0.0
  %139 = vmatpush2.msra.mxu0 0.0
  %140 = vmatprep.subr.mxu0 0.0
  %141 = vmatpush2.msra.mxu0 0.0
  %142 = vmatprep.subr.mxu0 0.0
  %143 = vmatpush2.msra.mxu0 0.0
  %144 = vmatprep.subr.mxu0 0.0
  %145 = vmatpush2.msra.mxu0 0.0
  %146 = vmatprep.subr.mxu0 0.0
  %147 = vmatpush2.msra.mxu0 0.0
  %148 = vmatprep.subr.mxu0 0.0
  %149 = vmatpush2.msra.mxu0 0.0
  %150 = vmatprep.subr.mxu0 0.0
  %151 = vmatpush2.msra.mxu0 0.0
  %152 = vmatprep.subr.mxu0 0.0
  %153 = vmatpush2.msra.mxu0 0.0
  %154 = vmatprep.subr.mxu0 0.0
  %155 = vmatpush2.msra.mxu0 0.0
  %156 = vmatprep.subr.mxu0 0.0
  %157 = vmatpush2.msra.mxu0 0.0
  %158 = vmatprep.subr.mxu0 0.0
  %159 = vmatpush2.msra.mxu0 0.0
  %160 = vmatprep.subr.mxu0 0.0
  %161 = vmatpush2.msra.mxu0 0.0
  %162 = vmatprep.subr.mxu0 0.0
  %163 = vmatpush2.msra.mxu0 0.0
  %164 = vmatprep.subr.mxu0 0.0
  %165 = vmatpush2.msra.mxu0 0.0
  %166 = vmatprep.subr.mxu0 0.0
  %167 = vmatpush2.msra.mxu0 0.0
  %168 = vmatprep.mubr.f32.mxu0 0.0
  %169 = vmatmul.mubr.f32.gmra.mxu0 %v31
  %v170 = vpop.f32.mrf.mxu0
  %v171 = vadd.f32 %v92, %v170
  %v172 = vpop.f32.mrf.mxu0
  %v173 = vadd.f32 %v96, %v172
  %174 = vmatprep.mubr.f32.mxu0 0.0
  %175 = vmatmul.mubr.f32.gmra.mxu0 %v32
  %v176 = vpop.f32.mrf.mxu0
  %v177 = vadd.f32 %v92, %v176
  %v178 = vpop.f32.mrf.mxu0
  %v179 = vadd.f32 %v96, %v178
  %180 = vmatprep.mubr.f32.mxu0 0.0
  %181 = vmatmul.mubr.f32.gmra.mxu0 %v33
  %v182 = vpop.f32.mrf.mxu0
  %v183 = vadd.f32 %v92, %v182
  %v184 = vpop.f32.mrf.mxu0
  %v185 = vadd.f32 %v96, %v184
  %186 = vmatprep.mubr.f32.mxu0 0.0
  %187 = vmatmul.mubr.f32.gmra.mxu0 %v34
  %v188 = vpop.f32.mrf.mxu0
  %v189 = vadd.f32 %v92, %v188
  %v190 = vpop.f32.mrf.mxu0
  %v191 = vadd.f32 %v96, %v190
  %192 = vmatprep.mubr.f32.mxu0 0.0
  %193 = vmatmul.mubr.f32.gmra.mxu0 %v35
  %v194 = vpop.f32.mrf.mxu0
  %v195 = vadd.f32 %v92, %v194
  %v196 = vpop.f32.mrf.mxu0
  %v197 = vadd.f32 %v96, %v196
  %198 = vmatprep.mubr.f32.mxu0 0.0
  %199 = vmatmul.mubr.f32.gmra.mxu0 %v36
  %v200 = vpop.f32.mrf.mxu0
  %v201 = vadd.f32 %v92, %v200
  %v202 = vpop.f32.mrf.mxu0
  %v203 = vadd.f32 %v96, %v202
  %204 = vmatprep.mubr.f32.mxu0 0.0
  %205 = vmatmul.mubr.f32.gmra.mxu0 %v37
  %v206 = vpop.f32.mrf.mxu0
  %v207 = vadd.f32 %v92, %v206
  %v208 = vpop.f32.mrf.mxu0
  %v209 = vadd.f32 %v96, %v208
  %210 = vmatprep.mubr.f32.mxu0 0.0
  %211 = vmatmul.mubr.f32.gmra.mxu0 %v38
  %v212 = vpop.f32.mrf.mxu0
  %v213 = vadd.f32 %v92, %v212
  %v214 = vpop.f32.mrf.mxu0
  %v215 = vadd.f32 %v96, %v214
  %216 = vdwg.mxu0
  %217 = vmatprep.subr.mxu0 0.0
  %218 = vmatpush1.msra.mxu0 %v86
  %219 = vmatprep.subr.mxu0 0.0
  %220 = vmatpush1.msra.mxu0 %v83
  %221 = vmatprep.subr.mxu0 0.0
  %222 = vmatpush1.msra.mxu0 %v80
  %223 = vmatprep.subr.mxu0 0.0
  %224 = vmatpush1.msra.mxu0 %v77
  %225 = vmatprep.subr.mxu0 0.0
  %226 = vmatpush1.msra.mxu0 %v74
  %227 = vmatprep.subr.mxu0 0.0
  %228 = vmatpush1.msra.mxu0 %v71
  %229 = vmatprep.subr.mxu0 0.0
  %230 = vmatpush1.msra.mxu0 %v68
  %231 = vmatprep.subr.mxu0 0.0
  %232 = vmatpush1.msra.mxu0 %v65
  %233 = vmatprep.subr.mxu0 0.0
  %234 = vmatpush1.msra.mxu0 %v62
  %235 = vmatprep.subr.mxu0 0.0
  %236 = vmatpush1.msra.mxu0 %v59
  %237 = vmatprep.subr.mxu0 0.0
  %238 = vmatpush1.msra.mxu0 %v56
  %239 = vmatprep.subr.mxu0 0.0
  %240 = vmatpush1.msra.mxu0 %v53
  %241 = vmatprep.subr.mxu0 0.0
  %242 = vmatpush1.msra.mxu0 %v50
  %243 = vmatprep.subr.mxu0 0.0
  %244 = vmatpush1.msra.mxu0 %v47
  %245 = vmatprep.subr.mxu0 0.0
  %246 = vmatpush1.msra.mxu0 %v44
  %247 = vmatprep.subr.mxu0 0.0
  %248 = vmatpush1.msra.mxu0 %v41
  %249 = vmatprep.subr.mxu0 0.0
  %250 = vmatpush2.msra.mxu0 0.0
  %251 = vmatprep.subr.mxu0 0.0
  %252 = vmatpush2.msra.mxu0 0.0
  %253 = vmatprep.subr.mxu0 0.0
  %254 = vmatpush2.msra.mxu0 0.0
  %255 = vmatprep.subr.mxu0 0.0
  %256 = vmatpush2.msra.mxu0 0.0
  %257 = vmatprep.subr.mxu0 0.0
  %258 = vmatpush2.msra.mxu0 0.0
  %259 = vmatprep.subr.mxu0 0.0
  %260 = vmatpush2.msra.mxu0 0.0
  %261 = vmatprep.subr.mxu0 0.0
  %262 = vmatpush2.msra.mxu0 0.0
  %263 = vmatprep.subr.mxu0 0.0
  %264 = vmatpush2.msra.mxu0 0.0
  %265 = vmatprep.subr.mxu0 0.0
  %266 = vmatpush2.msra.mxu0 0.0
  %267 = vmatprep.subr.mxu0 0.0
  %268 = vmatpush2.msra.mxu0 0.0
  %269 = vmatprep.subr.mxu0 0.0
  %270 = vmatpush2.msra.mxu0 0.0
  %271 = vmatprep.subr.mxu0 0.0
  %272 = vmatpush2.msra.mxu0 0.0
  %273 = vmatprep.subr.mxu0 0.0
  %274 = vmatpush2.msra.mxu0 0.0
  %275 = vmatprep.subr.mxu0 0.0
  %276 = vmatpush2.msra.mxu0 0.0
  %277 = vmatprep.subr.mxu0 0.0
  %278 = vmatpush2.msra.mxu0 0.0
  %279 = vmatprep.subr.mxu0 0.0
  %280 = vmatpush2.msra.mxu0 0.0
  %281 = vmatprep.mubr.f32.mxu0 0.0
  %282 = vmatmul.mubr.f32.gmra.mxu0 %v31
  %v283 = vpop.f32.mrf.mxu0
  %v284 = vadd.f32 %v100, %v283
  %v285 = vpop.f32.mrf.mxu0
  %286 = vmatprep.mubr.f32.mxu0 0.0
  %287 = vmatmul.mubr.f32.gmra.mxu0 %v32
  %v288 = vpop.f32.mrf.mxu0
  %v289 = vadd.f32 %v100, %v288
  %v290 = vpop.f32.mrf.mxu0
  %291 = vmatprep.mubr.f32.mxu0 0.0
  %292 = vmatmul.mubr.f32.gmra.mxu0 %v33
  %v293 = vpop.f32.mrf.mxu0
  %v294 = vadd.f32 %v100, %v293
  %v295 = vpop.f32.mrf.mxu0
  %296 = vmatprep.mubr.f32.mxu0 0.0
  %297 = vmatmul.mubr.f32.gmra.mxu0 %v34
  %v298 = vpop.f32.mrf.mxu0
  %v299 = vadd.f32 %v100, %v298
  %v300 = vpop.f32.mrf.mxu0
  %301 = vmatprep.mubr.f32.mxu0 0.0
  %302 = vmatmul.mubr.f32.gmra.mxu0 %v35
  %v303 = vpop.f32.mrf.mxu0
  %v304 = vadd.f32 %v100, %v303
  %v305 = vpop.f32.mrf.mxu0
  %306 = vmatprep.mubr.f32.mxu0 0.0
  %307 = vmatmul.mubr.f32.gmra.mxu0 %v36
  %v308 = vpop.f32.mrf.mxu0
  %v309 = vadd.f32 %v100, %v308
  %v310 = vpop.f32.mrf.mxu0
  %311 = vmatprep.mubr.f32.mxu0 0.0
  %312 = vmatmul.mubr.f32.gmra.mxu0 %v37
  %v313 = vpop.f32.mrf.mxu0
  %v314 = vadd.f32 %v100, %v313
  %v315 = vpop.f32.mrf.mxu0
  %316 = vmatprep.mubr.f32.mxu0 0.0
  %317 = vmatmul.mubr.f32.gmra.mxu0 %v38
  %v318 = vpop.f32.mrf.mxu0
  %v319 = vadd.f32 %v100, %v318
  %v320 = vpop.f32.mrf.mxu0
  %321 = vdwg.mxu0
  %322 = vst [vmem:[#allocation3] sm:$0xff] %v171
  %323 = vst [vmem:[#allocation3 + $0x8] sm:$0xff] %v173
  %324 = vst [vmem:[#allocation3 + $0x10] sm:$0xff] %v284
  %325 = vst [vmem:[#allocation3 + $0x18] sm:$0xff] %v177
  %326 = vst [vmem:[#allocation3 + $0x20] sm:$0xff] %v179
  %327 = vst [vmem:[#allocation3 + $0x28] sm:$0xff] %v289
  %328 = vst [vmem:[#allocation3 + $0x30] sm:$0xff] %v183
  %329 = vst [vmem:[#allocation3 + $0x38] sm:$0xff] %v185
  %330 = vst [vmem:[#allocation3 + $0x40] sm:$0xff] %v294
  %331 = vst [vmem:[#allocation3 + $0x48] sm:$0xff] %v189
  %332 = vst [vmem:[#allocation3 + $0x50] sm:$0xff] %v191
  %333 = vst [vmem:[#allocation3 + $0x58] sm:$0xff] %v299
  %334 = vst [vmem:[#allocation3 + $0x60] sm:$0xff] %v195
  %335 = vst [vmem:[#allocation3 + $0x68] sm:$0xff] %v197
  %336 = vst [vmem:[#allocation3 + $0x70] sm:$0xff] %v304
  %337 = vst [vmem:[#allocation3 + $0x78] sm:$0xff] %v201
  %338 = vst [vmem:[#allocation3 + $0x80] sm:$0xff] %v203
  %339 = vst [vmem:[#allocation3 + $0x88] sm:$0xff] %v309
  %340 = vst [vmem:[#allocation3 + $0x90] sm:$0xff] %v207
  %341 = vst [vmem:[#allocation3 + $0x98] sm:$0xff] %v209
  %342 = vst [vmem:[#allocation3 + $0xa0] sm:$0xff] %v314
  %343 = vst [vmem:[#allocation3 + $0xa8] sm:$0xff] %v213
  %344 = vst [vmem:[#allocation3 + $0xb0] sm:$0xff] %v215
  %345 = vst [vmem:[#allocation3 + $0xb8] sm:$0xff] %v319
  %v346 = vld [vmem:[%s4] sm:$0x1]
  %v348 = vlaneseq
  %v349 = vshrl.u32 %v348, 7
  %v350 = vsub.s32 0, %v349
  %v351 = vrot.slane %v346, %v350
  %v353 = vld [vmem:[#allocation2] sm:$0xff]
  %v354 = vld [vmem:[#allocation3] sm:$0xff]
  %v355 = vld [vmem:[#allocation3 + $0x8] sm:$0xff]
  %v356 = vld [vmem:[#allocation3 + $0x10] sm:$0xff]
  %v357 = vld [vmem:[%s2] sm:$0xff]
  %v358 = vld [vmem:[%s2 + $0x8] sm:$0xff]
  %v359 = vld [vmem:[%s2 + $0x10] sm:$0xff]
  %v360 = vld [vmem:[%s2 + $0x18] sm:$0xff]
  %v361 = vld [vmem:[%s2 + $0x20] sm:$0xff]
  %v362 = vld [vmem:[%s2 + $0x28] sm:$0xff]
  %v363 = vld [vmem:[%s2 + $0x30] sm:$0xff]
  %v364 = vld [vmem:[%s2 + $0x38] sm:$0xff]
  %v365 = vld [vmem:[%s2 + $0x40] sm:$0xff]
  %v366 = vld [vmem:[%s2 + $0x48] sm:$0xff]
  %v367 = vld [vmem:[%s2 + $0x50] sm:$0xff]
  %v368 = vld [vmem:[%s2 + $0x58] sm:$0xff]
  %v369 = vld [vmem:[%s2 + $0x60] sm:$0xff]
  %v370 = vld [vmem:[%s2 + $0x68] sm:$0xff]
  %v371 = vld [vmem:[%s2 + $0x70] sm:$0xff]
  %v372 = vld [vmem:[%s2 + $0x78] sm:$0xff]
  %v373 = vld [vmem:[%s2 + $0x80] sm:$0xff]
  %v374 = vld [vmem:[%s2 + $0x88] sm:$0xff]
  %v375 = vld [vmem:[%s2 + $0x90] sm:$0xff]
  %v376 = vld [vmem:[%s2 + $0x98] sm:$0xff]
  %v377 = vld [vmem:[%s2 + $0xa0] sm:$0xff]
  %v378 = vld [vmem:[%s2 + $0xa8] sm:$0xff]
  %v379 = vld [vmem:[%s2 + $0xb0] sm:$0xff]
  %v380 = vld [vmem:[%s2 + $0xb8] sm:$0xff]
  %v381 = vld [vmem:[%s2 + $0xc0] sm:$0xff]
  %v382 = vld [vmem:[%s2 + $0xc8] sm:$0xff]
  %v383 = vld [vmem:[%s2 + $0xd0] sm:$0xff]
  %v384 = vld [vmem:[%s2 + $0xd8] sm:$0xff]
  %v385 = vld [vmem:[%s2 + $0xe0] sm:$0xff]
  %v386 = vld [vmem:[%s2 + $0xe8] sm:$0xff]
  %v387 = vld [vmem:[%s2 + $0xf0] sm:$0xff]
  %v388 = vld [vmem:[%s2 + $0xf8] sm:$0xff]
  %v389 = vld [vmem:[%s2 + $0x100] sm:$0xff]
  %v390 = vld [vmem:[%s2 + $0x108] sm:$0xff]
  %v391 = vld [vmem:[%s2 + $0x110] sm:$0xff]
  %v392 = vld [vmem:[%s2 + $0x118] sm:$0xff]
  %v393 = vld [vmem:[%s2 + $0x120] sm:$0xff]
  %v394 = vld [vmem:[%s2 + $0x128] sm:$0xff]
  %v395 = vld [vmem:[%s2 + $0x130] sm:$0xff]
  %v396 = vld [vmem:[%s2 + $0x138] sm:$0xff]
  %v397 = vld [vmem:[%s2 + $0x140] sm:$0xff]
  %v398 = vld [vmem:[%s2 + $0x148] sm:$0xff]
  %v399 = vld [vmem:[%s2 + $0x150] sm:$0xff]
  %v400 = vld [vmem:[%s2 + $0x158] sm:$0xff]
  %v401 = vld [vmem:[%s2 + $0x160] sm:$0xff]
  %v402 = vld [vmem:[%s2 + $0x168] sm:$0xff]
  %v403 = vld [vmem:[%s2 + $0x170] sm:$0xff]
  %v404 = vld [vmem:[%s2 + $0x178] sm:$0xff]
  %405 = vmatprep.subr.mxu0 %v403
  %406 = vmatpush1.msra.mxu0 %v402
  %407 = vmatprep.subr.mxu0 %v400
  %408 = vmatpush1.msra.mxu0 %v399
  %409 = vmatprep.subr.mxu0 %v397
  %410 = vmatpush1.msra.mxu0 %v396
  %411 = vmatprep.subr.mxu0 %v394
  %412 = vmatpush1.msra.mxu0 %v393
  %413 = vmatprep.subr.mxu0 %v391
  %414 = vmatpush1.msra.mxu0 %v390
  %415 = vmatprep.subr.mxu0 %v388
  %416 = vmatpush1.msra.mxu0 %v387
  %417 = vmatprep.subr.mxu0 %v385
  %418 = vmatpush1.msra.mxu0 %v384
  %419 = vmatprep.subr.mxu0 %v382
  %420 = vmatpush1.msra.mxu0 %v381
  %421 = vmatprep.subr.mxu0 %v379
  %422 = vmatpush1.msra.mxu0 %v378
  %423 = vmatprep.subr.mxu0 %v376
  %424 = vmatpush1.msra.mxu0 %v375
  %425 = vmatprep.subr.mxu0 %v373
  %426 = vmatpush1.msra.mxu0 %v372
  %427 = vmatprep.subr.mxu0 %v370
  %428 = vmatpush1.msra.mxu0 %v369
  %429 = vmatprep.subr.mxu0 %v367
  %430 = vmatpush1.msra.mxu0 %v366
  %431 = vmatprep.subr.mxu0 %v364
  %432 = vmatpush1.msra.mxu0 %v363
  %433 = vmatprep.subr.mxu0 %v361
  %434 = vmatpush1.msra.mxu0 %v360
  %435 = vmatprep.subr.mxu0 %v358
  %436 = vmatpush1.msra.mxu0 %v357
  %437 = vmatprep.subr.mxu0 0.0
  %438 = vmatpush2.msra.mxu0 0.0
  %439 = vmatprep.subr.mxu0 0.0
  %440 = vmatpush2.msra.mxu0 0.0
  %441 = vmatprep.subr.mxu0 0.0
  %442 = vmatpush2.msra.mxu0 0.0
  %443 = vmatprep.subr.mxu0 0.0
  %444 = vmatpush2.msra.mxu0 0.0
  %445 = vmatprep.subr.mxu0 0.0
  %446 = vmatpush2.msra.mxu0 0.0
  %447 = vmatprep.subr.mxu0 0.0
  %448 = vmatpush2.msra.mxu0 0.0
  %449 = vmatprep.subr.mxu0 0.0
  %450 = vmatpush2.msra.mxu0 0.0
  %451 = vmatprep.subr.mxu0 0.0
  %452 = vmatpush2.msra.mxu0 0.0
  %453 = vmatprep.subr.mxu0 0.0
  %454 = vmatpush2.msra.mxu0 0.0
  %455 = vmatprep.subr.mxu0 0.0
  %456 = vmatpush2.msra.mxu0 0.0
  %457 = vmatprep.subr.mxu0 0.0
  %458 = vmatpush2.msra.mxu0 0.0
  %459 = vmatprep.subr.mxu0 0.0
  %460 = vmatpush2.msra.mxu0 0.0
  %461 = vmatprep.subr.mxu0 0.0
  %462 = vmatpush2.msra.mxu0 0.0
  %463 = vmatprep.subr.mxu0 0.0
  %464 = vmatpush2.msra.mxu0 0.0
  %465 = vmatprep.subr.mxu0 0.0
  %466 = vmatpush2.msra.mxu0 0.0
  %467 = vmatprep.subr.mxu0 0.0
  %468 = vmatpush2.msra.mxu0 0.0
  %469 = vmatprep.mubr.f32.mxu0 0.0
  %470 = vmatmul.mubr.f32.gmra.mxu0 %v353
  %v471 = vpop.f32.mrf.mxu0
  %v472 = vadd.f32 0.0, %v471
  %v473 = vpop.f32.mrf.mxu0
  %v474 = vadd.f32 0.0, %v473
  %475 = vdwg.mxu0
  %476 = vmatprep.subr.mxu0 0.0
  %477 = vmatpush1.msra.mxu0 %v404
  %478 = vmatprep.subr.mxu0 0.0
  %479 = vmatpush1.msra.mxu0 %v401
  %480 = vmatprep.subr.mxu0 0.0
  %481 = vmatpush1.msra.mxu0 %v398
  %482 = vmatprep.subr.mxu0 0.0
  %483 = vmatpush1.msra.mxu0 %v395
  %484 = vmatprep.subr.mxu0 0.0
  %485 = vmatpush1.msra.mxu0 %v392
  %486 = vmatprep.subr.mxu0 0.0
  %487 = vmatpush1.msra.mxu0 %v389
  %488 = vmatprep.subr.mxu0 0.0
  %489 = vmatpush1.msra.mxu0 %v386
  %490 = vmatprep.subr.mxu0 0.0
  %491 = vmatpush1.msra.mxu0 %v383
  %492 = vmatprep.subr.mxu0 0.0
  %493 = vmatpush1.msra.mxu0 %v380
  %494 = vmatprep.subr.mxu0 0.0
  %495 = vmatpush1.msra.mxu0 %v377
  %496 = vmatprep.subr.mxu0 0.0
  %497 = vmatpush1.msra.mxu0 %v374
  %498 = vmatprep.subr.mxu0 0.0
  %499 = vmatpush1.msra.mxu0 %v371
  %500 = vmatprep.subr.mxu0 0.0
  %501 = vmatpush1.msra.mxu0 %v368
  %502 = vmatprep.subr.mxu0 0.0
  %503 = vmatpush1.msra.mxu0 %v365
  %504 = vmatprep.subr.mxu0 0.0
  %505 = vmatpush1.msra.mxu0 %v362
  %506 = vmatprep.subr.mxu0 0.0
  %507 = vmatpush1.msra.mxu0 %v359
  %508 = vmatprep.subr.mxu0 0.0
  %509 = vmatpush2.msra.mxu0 0.0
  %510 = vmatprep.subr.mxu0 0.0
  %511 = vmatpush2.msra.mxu0 0.0
  %512 = vmatprep.subr.mxu0 0.0
  %513 = vmatpush2.msra.mxu0 0.0
  %514 = vmatprep.subr.mxu0 0.0
  %515 = vmatpush2.msra.mxu0 0.0
  %516 = vmatprep.subr.mxu0 0.0
  %517 = vmatpush2.msra.mxu0 0.0
  %518 = vmatprep.subr.mxu0 0.0
  %519 = vmatpush2.msra.mxu0 0.0
  %520 = vmatprep.subr.mxu0 0.0
  %521 = vmatpush2.msra.mxu0 0.0
  %522 = vmatprep.subr.mxu0 0.0
  %523 = vmatpush2.msra.mxu0 0.0
  %524 = vmatprep.subr.mxu0 0.0
  %525 = vmatpush2.msra.mxu0 0.0
  %526 = vmatprep.subr.mxu0 0.0
  %527 = vmatpush2.msra.mxu0 0.0
  %528 = vmatprep.subr.mxu0 0.0
  %529 = vmatpush2.msra.mxu0 0.0
  %530 = vmatprep.subr.mxu0 0.0
  %531 = vmatpush2.msra.mxu0 0.0
  %532 = vmatprep.subr.mxu0 0.0
  %533 = vmatpush2.msra.mxu0 0.0
  %534 = vmatprep.subr.mxu0 0.0
  %535 = vmatpush2.msra.mxu0 0.0
  %536 = vmatprep.subr.mxu0 0.0
  %537 = vmatpush2.msra.mxu0 0.0
  %538 = vmatprep.subr.mxu0 0.0
  %539 = vmatpush2.msra.mxu0 0.0
  %540 = vmatprep.mubr.f32.mxu0 0.0
  %541 = vmatmul.mubr.f32.gmra.mxu0 %v353
  %v542 = vpop.f32.mrf.mxu0
  %v543 = vadd.f32 0.0, %v542
  %v544 = vpop.f32.mrf.mxu0
  %545 = vdwg.mxu0
  %v546 = vadd.f32 %v354, %v472
  %v547 = vxor.u32 %v546, 2147483648
  %v548 = vmul.f32 %v547, 1.442695
  %v549 = vpow.pop %v548
  %v550 = vadd.f32 %v549, 1.0
  %v551 = vrcp.pop %v550
  %v552 = vmul.f32 1.0, %v551
  %v553 = vadd.f32 %v355, %v474
  %v554 = vxor.u32 %v553, 2147483648
  %v555 = vmul.f32 %v554, 1.442695
  %v556 = vpow.pop %v555
  %v557 = vadd.f32 %v556, 1.0
  %v558 = vrcp.pop %v557
  %v559 = vmul.f32 1.0, %v558
  %v560 = vadd.f32 %v543, %v351
  %v561 = vmul.f32 %v552, %v560
  %v562 = vadd.f32 %v356, %v561
  %v563 = vtanh.pop %v562
  %v564 = vsub.f32 %v353, %v563
  %v565 = vmul.f32 %v559, %v564
  %v566 = vadd.f32 %v563, %v565
  %s567 = scalar_lea.vmem [#allocation3], 24
  %v568 = vld [vmem:[%s567] sm:$0xff]
  %v569 = vld [vmem:[%s567 + $0x8] sm:$0xff]
  %v570 = vld [vmem:[%s567 + $0x10] sm:$0xff]
  %571 = vmatprep.subr.mxu0 %v403
  %572 = vmatpush1.msra.mxu0 %v402
  %573 = vmatprep.subr.mxu0 %v400
  %574 = vmatpush1.msra.mxu0 %v399
  %575 = vmatprep.subr.mxu0 %v397
  %576 = vmatpush1.msra.mxu0 %v396
  %577 = vmatprep.subr.mxu0 %v394
  %578 = vmatpush1.msra.mxu0 %v393
  %579 = vmatprep.subr.mxu0 %v391
  %580 = vmatpush1.msra.mxu0 %v390
  %581 = vmatprep.subr.mxu0 %v388
  %582 = vmatpush1.msra.mxu0 %v387
  %583 = vmatprep.subr.mxu0 %v385
  %584 = vmatpush1.msra.mxu0 %v384
  %585 = vmatprep.subr.mxu0 %v382
  %586 = vmatpush1.msra.mxu0 %v381
  %587 = vmatprep.subr.mxu0 %v379
  %588 = vmatpush1.msra.mxu0 %v378
  %589 = vmatprep.subr.mxu0 %v376
  %590 = vmatpush1.msra.mxu0 %v375
  %591 = vmatprep.subr.mxu0 %v373
  %592 = vmatpush1.msra.mxu0 %v372
  %593 = vmatprep.subr.mxu0 %v370
  %594 = vmatpush1.msra.mxu0 %v369
  %595 = vmatprep.subr.mxu0 %v367
  %596 = vmatpush1.msra.mxu0 %v366
  %597 = vmatprep.subr.mxu0 %v364
  %598 = vmatpush1.msra.mxu0 %v363
  %599 = vmatprep.subr.mxu0 %v361
  %600 = vmatpush1.msra.mxu0 %v360
  %601 = vmatprep.subr.mxu0 %v358
  %602 = vmatpush1.msra.mxu0 %v357
  %603 = vmatprep.subr.mxu0 0.0
  %604 = vmatpush2.msra.mxu0 0.0
  %605 = vmatprep.subr.mxu0 0.0
  %606 = vmatpush2.msra.mxu0 0.0
  %607 = vmatprep.subr.mxu0 0.0
  %608 = vmatpush2.msra.mxu0 0.0
  %609 = vmatprep.subr.mxu0 0.0
  %610 = vmatpush2.msra.mxu0 0.0
  %611 = vmatprep.subr.mxu0 0.0
  %612 = vmatpush2.msra.mxu0 0.0
  %613 = vmatprep.subr.mxu0 0.0
  %614 = vmatpush2.msra.mxu0 0.0
  %615 = vmatprep.subr.mxu0 0.0
  %616 = vmatpush2.msra.mxu0 0.0
  %617 = vmatprep.subr.mxu0 0.0
  %618 = vmatpush2.msra.mxu0 0.0
  %619 = vmatprep.subr.mxu0 0.0
  %620 = vmatpush2.msra.mxu0 0.0
  %621 = vmatprep.subr.mxu0 0.0
  %622 = vmatpush2.msra.mxu0 0.0
  %623 = vmatprep.subr.mxu0 0.0
  %624 = vmatpush2.msra.mxu0 0.0
  %625 = vmatprep.subr.mxu0 0.0
  %626 = vmatpush2.msra.mxu0 0.0
  %627 = vmatprep.subr.mxu0 0.0
  %628 = vmatpush2.msra.mxu0 0.0
  %629 = vmatprep.subr.mxu0 0.0
  %630 = vmatpush2.msra.mxu0 0.0
  %631 = vmatprep.subr.mxu0 0.0
  %632 = vmatpush2.msra.mxu0 0.0
  %633 = vmatprep.subr.mxu0 0.0
  %634 = vmatpush2.msra.mxu0 0.0
  %635 = vmatprep.mubr.f32.mxu0 0.0
  %636 = vmatmul.mubr.f32.gmra.mxu0 %v566
  %v637 = vpop.f32.mrf.mxu0
  %v638 = vadd.f32 0.0, %v637
  %v639 = vpop.f32.mrf.mxu0
  %v640 = vadd.f32 0.0, %v639
  %641 = vdwg.mxu0
  %642 = vmatprep.subr.mxu0 0.0
  %643 = vmatpush1.msra.mxu0 %v404
  %644 = vmatprep.subr.mxu0 0.0
  %645 = vmatpush1.msra.mxu0 %v401
  %646 = vmatprep.subr.mxu0 0.0
  %647 = vmatpush1.msra.mxu0 %v398
  %648 = vmatprep.subr.mxu0 0.0
  %649 = vmatpush1.msra.mxu0 %v395
  %650 = vmatprep.subr.mxu0 0.0
  %651 = vmatpush1.msra.mxu0 %v392
  %652 = vmatprep.subr.mxu0 0.0
  %653 = vmatpush1.msra.mxu0 %v389
  %654 = vmatprep.subr.mxu0 0.0
  %655 = vmatpush1.msra.mxu0 %v386
  %656 = vmatprep.subr.mxu0 0.0
  %657 = vmatpush1.msra.mxu0 %v383
  %658 = vmatprep.subr.mxu0 0.0
  %659 = vmatpush1.msra.mxu0 %v380
  %660 = vmatprep.subr.mxu0 0.0
  %661 = vmatpush1.msra.mxu0 %v377
  %662 = vmatprep.subr.mxu0 0.0
  %663 = vmatpush1.msra.mxu0 %v374
  %664 = vmatprep.subr.mxu0 0.0
  %665 = vmatpush1.msra.mxu0 %v371
  %666 = vmatprep.subr.mxu0 0.0
  %667 = vmatpush1.msra.mxu0 %v368
  %668 = vmatprep.subr.mxu0 0.0
  %669 = vmatpush1.msra.mxu0 %v365
  %670 = vmatprep.subr.mxu0 0.0
  %671 = vmatpush1.msra.mxu0 %v362
  %672 = vmatprep.subr.mxu0 0.0
  %673 = vmatpush1.msra.mxu0 %v359
  %674 = vmatprep.subr.mxu0 0.0
  %675 = vmatpush2.msra.mxu0 0.0
  %676 = vmatprep.subr.mxu0 0.0
  %677 = vmatpush2.msra.mxu0 0.0
  %678 = vmatprep.subr.mxu0 0.0
  %679 = vmatpush2.msra.mxu0 0.0
  %680 = vmatprep.subr.mxu0 0.0
  %681 = vmatpush2.msra.mxu0 0.0
  %682 = vmatprep.subr.mxu0 0.0
  %683 = vmatpush2.msra.mxu0 0.0
  %684 = vmatprep.subr.mxu0 0.0
  %685 = vmatpush2.msra.mxu0 0.0
  %686 = vmatprep.subr.mxu0 0.0
  %687 = vmatpush2.msra.mxu0 0.0
  %688 = vmatprep.subr.mxu0 0.0
  %689 = vmatpush2.msra.mxu0 0.0
  %690 = vmatprep.subr.mxu0 0.0
  %691 = vmatpush2.msra.mxu0 0.0
  %692 = vmatprep.subr.mxu0 0.0
  %693 = vmatpush2.msra.mxu0 0.0
  %694 = vmatprep.subr.mxu0 0.0
  %695 = vmatpush2.msra.mxu0 0.0
  %696 = vmatprep.subr.mxu0 0.0
  %697 = vmatpush2.msra.mxu0 0.0
  %698 = vmatprep.subr.mxu0 0.0
  %699 = vmatpush2.msra.mxu0 0.0
  %700 = vmatprep.subr.mxu0 0.0
  %701 = vmatpush2.msra.mxu0 0.0
  %702 = vmatprep.subr.mxu0 0.0
  %703 = vmatpush2.msra.mxu0 0.0
  %704 = vmatprep.subr.mxu0 0.0
  %705 = vmatpush2.msra.mxu0 0.0
  %706 = vmatprep.mubr.f32.mxu0 0.0
  %707 = vmatmul.mubr.f32.gmra.mxu0 %v566
  %v708 = vpop.f32.mrf.mxu0
  %v709 = vadd.f32 0.0, %v708
  %v710 = vpop.f32.mrf.mxu0
  %711 = vdwg.mxu0
  %v712 = vadd.f32 %v568, %v638
  %v713 = vxor.u32 %v712, 2147483648
  %v714 = vmul.f32 %v713, 1.442695
  %v715 = vpow.pop %v714
  %v716 = vadd.f32 %v715, 1.0
  %v717 = vrcp.pop %v716
  %v718 = vmul.f32 1.0, %v717
  %v719 = vadd.f32 %v569, %v640
  %v720 = vxor.u32 %v719, 2147483648
  %v721 = vmul.f32 %v720, 1.442695
  %v722 = vpow.pop %v721
  %v723 = vadd.f32 %v722, 1.0
  %v724 = vrcp.pop %v723
  %v725 = vmul.f32 1.0, %v724
  %v726 = vadd.f32 %v709, %v351
  %v727 = vmul.f32 %v718, %v726
  %v728 = vadd.f32 %v570, %v727
  %v729 = vtanh.pop %v728
  %v730 = vsub.f32 %v566, %v729
  %v731 = vmul.f32 %v725, %v730
  %v732 = vadd.f32 %v729, %v731
  %s733 = scalar_lea.vmem [#allocation3], 48
  %v734 = vld [vmem:[%s733] sm:$0xff]
  %v735 = vld [vmem:[%s733 + $0x8] sm:$0xff]
  %v736 = vld [vmem:[%s733 + $0x10] sm:$0xff]
  %737 = vmatprep.subr.mxu0 %v403
  %738 = vmatpush1.msra.mxu0 %v402
  %739 = vmatprep.subr.mxu0 %v400
  %740 = vmatpush1.msra.mxu0 %v399
  %741 = vmatprep.subr.mxu0 %v397
  %742 = vmatpush1.msra.mxu0 %v396
  %743 = vmatprep.subr.mxu0 %v394
  %744 = vmatpush1.msra.mxu0 %v393
  %745 = vmatprep.subr.mxu0 %v391
  %746 = vmatpush1.msra.mxu0 %v390
  %747 = vmatprep.subr.mxu0 %v388
  %748 = vmatpush1.msra.mxu0 %v387
  %749 = vmatprep.subr.mxu0 %v385
  %750 = vmatpush1.msra.mxu0 %v384
  %751 = vmatprep.subr.mxu0 %v382
  %752 = vmatpush1.msra.mxu0 %v381
  %753 = vmatprep.subr.mxu0 %v379
  %754 = vmatpush1.msra.mxu0 %v378
  %755 = vmatprep.subr.mxu0 %v376
  %756 = vmatpush1.msra.mxu0 %v375
  %757 = vmatprep.subr.mxu0 %v373
  %758 = vmatpush1.msra.mxu0 %v372
  %759 = vmatprep.subr.mxu0 %v370
  %760 = vmatpush1.msra.mxu0 %v369
  %761 = vmatprep.subr.mxu0 %v367
  %762 = vmatpush1.msra.mxu0 %v366
  %763 = vmatprep.subr.mxu0 %v364
  %764 = vmatpush1.msra.mxu0 %v363
  %765 = vmatprep.subr.mxu0 %v361
  %766 = vmatpush1.msra.mxu0 %v360
  %767 = vmatprep.subr.mxu0 %v358
  %768 = vmatpush1.msra.mxu0 %v357
  %769 = vmatprep.subr.mxu0 0.0
  %770 = vmatpush2.msra.mxu0 0.0
  %771 = vmatprep.subr.mxu0 0.0
  %772 = vmatpush2.msra.mxu0 0.0
  %773 = vmatprep.subr.mxu0 0.0
  %774 = vmatpush2.msra.mxu0 0.0
  %775 = vmatprep.subr.mxu0 0.0
  %776 = vmatpush2.msra.mxu0 0.0
  %777 = vmatprep.subr.mxu0 0.0
  %778 = vmatpush2.msra.mxu0 0.0
  %779 = vmatprep.subr.mxu0 0.0
  %780 = vmatpush2.msra.mxu0 0.0
  %781 = vmatprep.subr.mxu0 0.0
  %782 = vmatpush2.msra.mxu0 0.0
  %783 = vmatprep.subr.mxu0 0.0
  %784 = vmatpush2.msra.mxu0 0.0
  %785 = vmatprep.subr.mxu0 0.0
  %786 = vmatpush2.msra.mxu0 0.0
  %787 = vmatprep.subr.mxu0 0.0
  %788 = vmatpush2.msra.mxu0 0.0
  %789 = vmatprep.subr.mxu0 0.0
  %790 = vmatpush2.msra.mxu0 0.0
  %791 = vmatprep.subr.mxu0 0.0
  %792 = vmatpush2.msra.mxu0 0.0
  %793 = vmatprep.subr.mxu0 0.0
  %794 = vmatpush2.msra.mxu0 0.0
  %795 = vmatprep.subr.mxu0 0.0
  %796 = vmatpush2.msra.mxu0 0.0
  %797 = vmatprep.subr.mxu0 0.0
  %798 = vmatpush2.msra.mxu0 0.0
  %799 = vmatprep.subr.mxu0 0.0
  %800 = vmatpush2.msra.mxu0 0.0
  %801 = vmatprep.mubr.f32.mxu0 0.0
  %802 = vmatmul.mubr.f32.gmra.mxu0 %v732
  %v803 = vpop.f32.mrf.mxu0
  %v804 = vadd.f32 0.0, %v803
  %v805 = vpop.f32.mrf.mxu0
  %v806 = vadd.f32 0.0, %v805
  %807 = vdwg.mxu0
  %808 = vmatprep.subr.mxu0 0.0
  %809 = vmatpush1.msra.mxu0 %v404
  %810 = vmatprep.subr.mxu0 0.0
  %811 = vmatpush1.msra.mxu0 %v401
  %812 = vmatprep.subr.mxu0 0.0
  %813 = vmatpush1.msra.mxu0 %v398
  %814 = vmatprep.subr.mxu0 0.0
  %815 = vmatpush1.msra.mxu0 %v395
  %816 = vmatprep.subr.mxu0 0.0
  %817 = vmatpush1.msra.mxu0 %v392
  %818 = vmatprep.subr.mxu0 0.0
  %819 = vmatpush1.msra.mxu0 %v389
  %820 = vmatprep.subr.mxu0 0.0
  %821 = vmatpush1.msra.mxu0 %v386
  %822 = vmatprep.subr.mxu0 0.0
  %823 = vmatpush1.msra.mxu0 %v383
  %824 = vmatprep.subr.mxu0 0.0
  %825 = vmatpush1.msra.mxu0 %v380
  %826 = vmatprep.subr.mxu0 0.0
  %827 = vmatpush1.msra.mxu0 %v377
  %828 = vmatprep.subr.mxu0 0.0
  %829 = vmatpush1.msra.mxu0 %v374
  %830 = vmatprep.subr.mxu0 0.0
  %831 = vmatpush1.msra.mxu0 %v371
  %832 = vmatprep.subr.mxu0 0.0
  %833 = vmatpush1.msra.mxu0 %v368
  %834 = vmatprep.subr.mxu0 0.0
  %835 = vmatpush1.msra.mxu0 %v365
  %836 = vmatprep.subr.mxu0 0.0
  %837 = vmatpush1.msra.mxu0 %v362
  %838 = vmatprep.subr.mxu0 0.0
  %839 = vmatpush1.msra.mxu0 %v359
  %840 = vmatprep.subr.mxu0 0.0
  %841 = vmatpush2.msra.mxu0 0.0
  %842 = vmatprep.subr.mxu0 0.0
  %843 = vmatpush2.msra.mxu0 0.0
  %844 = vmatprep.subr.mxu0 0.0
  %845 = vmatpush2.msra.mxu0 0.0
  %846 = vmatprep.subr.mxu0 0.0
  %847 = vmatpush2.msra.mxu0 0.0
  %848 = vmatprep.subr.mxu0 0.0
  %849 = vmatpush2.msra.mxu0 0.0
  %850 = vmatprep.subr.mxu0 0.0
  %851 = vmatpush2.msra.mxu0 0.0
  %852 = vmatprep.subr.mxu0 0.0
  %853 = vmatpush2.msra.mxu0 0.0
  %854 = vmatprep.subr.mxu0 0.0
  %855 = vmatpush2.msra.mxu0 0.0
  %856 = vmatprep.subr.mxu0 0.0
  %857 = vmatpush2.msra.mxu0 0.0
  %858 = vmatprep.subr.mxu0 0.0
  %859 = vmatpush2.msra.mxu0 0.0
  %860 = vmatprep.subr.mxu0 0.0
  %861 = vmatpush2.msra.mxu0 0.0
  %862 = vmatprep.subr.mxu0 0.0
  %863 = vmatpush2.msra.mxu0 0.0
  %864 = vmatprep.subr.mxu0 0.0
  %865 = vmatpush2.msra.mxu0 0.0
  %866 = vmatprep.subr.mxu0 0.0
  %867 = vmatpush2.msra.mxu0 0.0
  %868 = vmatprep.subr.mxu0 0.0
  %869 = vmatpush2.msra.mxu0 0.0
  %870 = vmatprep.subr.mxu0 0.0
  %871 = vmatpush2.msra.mxu0 0.0
  %872 = vmatprep.mubr.f32.mxu0 0.0
  %873 = vmatmul.mubr.f32.gmra.mxu0 %v732
  %v874 = vpop.f32.mrf.mxu0
  %v875 = vadd.f32 0.0, %v874
  %v876 = vpop.f32.mrf.mxu0
  %877 = vdwg.mxu0
  %v878 = vadd.f32 %v734, %v804
  %v879 = vxor.u32 %v878, 2147483648
  %v880 = vmul.f32 %v879, 1.442695
  %v881 = vpow.pop %v880
  %v882 = vadd.f32 %v881, 1.0
  %v883 = vrcp.pop %v882
  %v884 = vmul.f32 1.0, %v883
  %v885 = vadd.f32 %v735, %v806
  %v886 = vxor.u32 %v885, 2147483648
  %v887 = vmul.f32 %v886, 1.442695
  %v888 = vpow.pop %v887
  %v889 = vadd.f32 %v888, 1.0
  %v890 = vrcp.pop %v889
  %v891 = vmul.f32 1.0, %v890
  %v892 = vadd.f32 %v875, %v351
  %v893 = vmul.f32 %v884, %v892
  %v894 = vadd.f32 %v736, %v893
  %v895 = vtanh.pop %v894
  %v896 = vsub.f32 %v732, %v895
  %v897 = vmul.f32 %v891, %v896
  %v898 = vadd.f32 %v895, %v897
  %s899 = scalar_lea.vmem [#allocation3], 72
  %v900 = vld [vmem:[%s899] sm:$0xff]
  %v901 = vld [vmem:[%s899 + $0x8] sm:$0xff]
  %v902 = vld [vmem:[%s899 + $0x10] sm:$0xff]
  %903 = vmatprep.subr.mxu0 %v403
  %904 = vmatpush1.msra.mxu0 %v402
  %905 = vmatprep.subr.mxu0 %v400
  %906 = vmatpush1.msra.mxu0 %v399
  %907 = vmatprep.subr.mxu0 %v397
  %908 = vmatpush1.msra.mxu0 %v396
  %909 = vmatprep.subr.mxu0 %v394
  %910 = vmatpush1.msra.mxu0 %v393
  %911 = vmatprep.subr.mxu0 %v391
  %912 = vmatpush1.msra.mxu0 %v390
  %913 = vmatprep.subr.mxu0 %v388
  %914 = vmatpush1.msra.mxu0 %v387
  %915 = vmatprep.subr.mxu0 %v385
  %916 = vmatpush1.msra.mxu0 %v384
  %917 = vmatprep.subr.mxu0 %v382
  %918 = vmatpush1.msra.mxu0 %v381
  %919 = vmatprep.subr.mxu0 %v379
  %920 = vmatpush1.msra.mxu0 %v378
  %921 = vmatprep.subr.mxu0 %v376
  %922 = vmatpush1.msra.mxu0 %v375
  %923 = vmatprep.subr.mxu0 %v373
  %924 = vmatpush1.msra.mxu0 %v372
  %925 = vmatprep.subr.mxu0 %v370
  %926 = vmatpush1.msra.mxu0 %v369
  %927 = vmatprep.subr.mxu0 %v367
  %928 = vmatpush1.msra.mxu0 %v366
  %929 = vmatprep.subr.mxu0 %v364
  %930 = vmatpush1.msra.mxu0 %v363
  %931 = vmatprep.subr.mxu0 %v361
  %932 = vmatpush1.msra.mxu0 %v360
  %933 = vmatprep.subr.mxu0 %v358
  %934 = vmatpush1.msra.mxu0 %v357
  %935 = vmatprep.subr.mxu0 0.0
  %936 = vmatpush2.msra.mxu0 0.0
  %937 = vmatprep.subr.mxu0 0.0
  %938 = vmatpush2.msra.mxu0 0.0
  %939 = vmatprep.subr.mxu0 0.0
  %940 = vmatpush2.msra.mxu0 0.0
  %941 = vmatprep.subr.mxu0 0.0
  %942 = vmatpush2.msra.mxu0 0.0
  %943 = vmatprep.subr.mxu0 0.0
  %944 = vmatpush2.msra.mxu0 0.0
  %945 = vmatprep.subr.mxu0 0.0
  %946 = vmatpush2.msra.mxu0 0.0
  %947 = vmatprep.subr.mxu0 0.0
  %948 = vmatpush2.msra.mxu0 0.0
  %949 = vmatprep.subr.mxu0 0.0
  %950 = vmatpush2.msra.mxu0 0.0
  %951 = vmatprep.subr.mxu0 0.0
  %952 = vmatpush2.msra.mxu0 0.0
  %953 = vmatprep.subr.mxu0 0.0
  %954 = vmatpush2.msra.mxu0 0.0
  %955 = vmatprep.subr.mxu0 0.0
  %956 = vmatpush2.msra.mxu0 0.0
  %957 = vmatprep.subr.mxu0 0.0
  %958 = vmatpush2.msra.mxu0 0.0
  %959 = vmatprep.subr.mxu0 0.0
  %960 = vmatpush2.msra.mxu0 0.0
  %961 = vmatprep.subr.mxu0 0.0
  %962 = vmatpush2.msra.mxu0 0.0
  %963 = vmatprep.subr.mxu0 0.0
  %964 = vmatpush2.msra.mxu0 0.0
  %965 = vmatprep.subr.mxu0 0.0
  %966 = vmatpush2.msra.mxu0 0.0
  %967 = vmatprep.mubr.f32.mxu0 0.0
  %968 = vmatmul.mubr.f32.gmra.mxu0 %v898
  %v969 = vpop.f32.mrf.mxu0
  %v970 = vadd.f32 0.0, %v969
  %v971 = vpop.f32.mrf.mxu0
  %v972 = vadd.f32 0.0, %v971
  %973 = vdwg.mxu0
  %974 = vmatprep.subr.mxu0 0.0
  %975 = vmatpush1.msra.mxu0 %v404
  %976 = vmatprep.subr.mxu0 0.0
  %977 = vmatpush1.msra.mxu0 %v401
  %978 = vmatprep.subr.mxu0 0.0
  %979 = vmatpush1.msra.mxu0 %v398
  %980 = vmatprep.subr.mxu0 0.0
  %981 = vmatpush1.msra.mxu0 %v395
  %982 = vmatprep.subr.mxu0 0.0
  %983 = vmatpush1.msra.mxu0 %v392
  %984 = vmatprep.subr.mxu0 0.0
  %985 = vmatpush1.msra.mxu0 %v389
  %986 = vmatprep.subr.mxu0 0.0
  %987 = vmatpush1.msra.mxu0 %v386
  %988 = vmatprep.subr.mxu0 0.0
  %989 = vmatpush1.msra.mxu0 %v383
  %990 = vmatprep.subr.mxu0 0.0
  %991 = vmatpush1.msra.mxu0 %v380
  %992 = vmatprep.subr.mxu0 0.0
  %993 = vmatpush1.msra.mxu0 %v377
  %994 = vmatprep.subr.mxu0 0.0
  %995 = vmatpush1.msra.mxu0 %v374
  %996 = vmatprep.subr.mxu0 0.0
  %997 = vmatpush1.msra.mxu0 %v371
  %998 = vmatprep.subr.mxu0 0.0
  %999 = vmatpush1.msra.mxu0 %v368
  %1000 = vmatprep.subr.mxu0 0.0
  %1001 = vmatpush1.msra.mxu0 %v365
  %1002 = vmatprep.subr.mxu0 0.0
  %1003 = vmatpush1.msra.mxu0 %v362
  %1004 = vmatprep.subr.mxu0 0.0
  %1005 = vmatpush1.msra.mxu0 %v359
  %1006 = vmatprep.subr.mxu0 0.0
  %1007 = vmatpush2.msra.mxu0 0.0
  %1008 = vmatprep.subr.mxu0 0.0
  %1009 = vmatpush2.msra.mxu0 0.0
  %1010 = vmatprep.subr.mxu0 0.0
  %1011 = vmatpush2.msra.mxu0 0.0
  %1012 = vmatprep.subr.mxu0 0.0
  %1013 = vmatpush2.msra.mxu0 0.0
  %1014 = vmatprep.subr.mxu0 0.0
  %1015 = vmatpush2.msra.mxu0 0.0
  %1016 = vmatprep.subr.mxu0 0.0
  %1017 = vmatpush2.msra.mxu0 0.0
  %1018 = vmatprep.subr.mxu0 0.0
  %1019 = vmatpush2.msra.mxu0 0.0
  %1020 = vmatprep.subr.mxu0 0.0
  %1021 = vmatpush2.msra.mxu0 0.0
  %1022 = vmatprep.subr.mxu0 0.0
  %1023 = vmatpush2.msra.mxu0 0.0
  %1024 = vmatprep.subr.mxu0 0.0
  %1025 = vmatpush2.msra.mxu0 0.0
  %1026 = vmatprep.subr.mxu0 0.0
  %1027 = vmatpush2.msra.mxu0 0.0
  %1028 = vmatprep.subr.mxu0 0.0
  %1029 = vmatpush2.msra.mxu0 0.0
  %1030 = vmatprep.subr.mxu0 0.0
  %1031 = vmatpush2.msra.mxu0 0.0
  %1032 = vmatprep.subr.mxu0 0.0
  %1033 = vmatpush2.msra.mxu0 0.0
  %1034 = vmatprep.subr.mxu0 0.0
  %1035 = vmatpush2.msra.mxu0 0.0
  %1036 = vmatprep.subr.mxu0 0.0
  %1037 = vmatpush2.msra.mxu0 0.0
  %1038 = vmatprep.mubr.f32.mxu0 0.0
  %1039 = vmatmul.mubr.f32.gmra.mxu0 %v898
  %v1040 = vpop.f32.mrf.mxu0
  %v1041 = vadd.f32 0.0, %v1040
  %v1042 = vpop.f32.mrf.mxu0
  %1043 = vdwg.mxu0
  %v1044 = vadd.f32 %v900, %v970
  %v1045 = vxor.u32 %v1044, 2147483648
  %v1046 = vmul.f32 %v1045, 1.442695
  %v1047 = vpow.pop %v1046
  %v1048 = vadd.f32 %v1047, 1.0
  %v1049 = vrcp.pop %v1048
  %v1050 = vmul.f32 1.0, %v1049
  %v1051 = vadd.f32 %v901, %v972
  %v1052 = vxor.u32 %v1051, 2147483648
  %v1053 = vmul.f32 %v1052, 1.442695
  %v1054 = vpow.pop %v1053
  %v1055 = vadd.f32 %v1054, 1.0
  %v1056 = vrcp.pop %v1055
  %v1057 = vmul.f32 1.0, %v1056
  %v1058 = vadd.f32 %v1041, %v351
  %v1059 = vmul.f32 %v1050, %v1058
  %v1060 = vadd.f32 %v902, %v1059
  %v1061 = vtanh.pop %v1060
  %v1062 = vsub.f32 %v898, %v1061
  %v1063 = vmul.f32 %v1057, %v1062
  %v1064 = vadd.f32 %v1061, %v1063
  %s1065 = scalar_lea.vmem [#allocation3], 96
  %v1066 = vld [vmem:[%s1065] sm:$0xff]
  %v1067 = vld [vmem:[%s1065 + $0x8] sm:$0xff]
  %v1068 = vld [vmem:[%s1065 + $0x10] sm:$0xff]
  %1069 = vmatprep.subr.mxu0 %v403
  %1070 = vmatpush1.msra.mxu0 %v402
  %1071 = vmatprep.subr.mxu0 %v400
  %1072 = vmatpush1.msra.mxu0 %v399
  %1073 = vmatprep.subr.mxu0 %v397
  %1074 = vmatpush1.msra.mxu0 %v396
  %1075 = vmatprep.subr.mxu0 %v394
  %1076 = vmatpush1.msra.mxu0 %v393
  %1077 = vmatprep.subr.mxu0 %v391
  %1078 = vmatpush1.msra.mxu0 %v390
  %1079 = vmatprep.subr.mxu0 %v388
  %1080 = vmatpush1.msra.mxu0 %v387
  %1081 = vmatprep.subr.mxu0 %v385
  %1082 = vmatpush1.msra.mxu0 %v384
  %1083 = vmatprep.subr.mxu0 %v382
  %1084 = vmatpush1.msra.mxu0 %v381
  %1085 = vmatprep.subr.mxu0 %v379
  %1086 = vmatpush1.msra.mxu0 %v378
  %1087 = vmatprep.subr.mxu0 %v376
  %1088 = vmatpush1.msra.mxu0 %v375
  %1089 = vmatprep.subr.mxu0 %v373
  %1090 = vmatpush1.msra.mxu0 %v372
  %1091 = vmatprep.subr.mxu0 %v370
  %1092 = vmatpush1.msra.mxu0 %v369
  %1093 = vmatprep.subr.mxu0 %v367
  %1094 = vmatpush1.msra.mxu0 %v366
  %1095 = vmatprep.subr.mxu0 %v364
  %1096 = vmatpush1.msra.mxu0 %v363
  %1097 = vmatprep.subr.mxu0 %v361
  %1098 = vmatpush1.msra.mxu0 %v360
  %1099 = vmatprep.subr.mxu0 %v358
  %1100 = vmatpush1.msra.mxu0 %v357
  %1101 = vmatprep.subr.mxu0 0.0
  %1102 = vmatpush2.msra.mxu0 0.0
  %1103 = vmatprep.subr.mxu0 0.0
  %1104 = vmatpush2.msra.mxu0 0.0
  %1105 = vmatprep.subr.mxu0 0.0
  %1106 = vmatpush2.msra.mxu0 0.0
  %1107 = vmatprep.subr.mxu0 0.0
  %1108 = vmatpush2.msra.mxu0 0.0
  %1109 = vmatprep.subr.mxu0 0.0
  %1110 = vmatpush2.msra.mxu0 0.0
  %1111 = vmatprep.subr.mxu0 0.0
  %1112 = vmatpush2.msra.mxu0 0.0
  %1113 = vmatprep.subr.mxu0 0.0
  %1114 = vmatpush2.msra.mxu0 0.0
  %1115 = vmatprep.subr.mxu0 0.0
  %1116 = vmatpush2.msra.mxu0 0.0
  %1117 = vmatprep.subr.mxu0 0.0
  %1118 = vmatpush2.msra.mxu0 0.0
  %1119 = vmatprep.subr.mxu0 0.0
  %1120 = vmatpush2.msra.mxu0 0.0
  %1121 = vmatprep.subr.mxu0 0.0
  %1122 = vmatpush2.msra.mxu0 0.0
  %1123 = vmatprep.subr.mxu0 0.0
  %1124 = vmatpush2.msra.mxu0 0.0
  %1125 = vmatprep.subr.mxu0 0.0
  %1126 = vmatpush2.msra.mxu0 0.0
  %1127 = vmatprep.subr.mxu0 0.0
  %1128 = vmatpush2.msra.mxu0 0.0
  %1129 = vmatprep.subr.mxu0 0.0
  %1130 = vmatpush2.msra.mxu0 0.0
  %1131 = vmatprep.subr.mxu0 0.0
  %1132 = vmatpush2.msra.mxu0 0.0
  %1133 = vmatprep.mubr.f32.mxu0 0.0
  %1134 = vmatmul.mubr.f32.gmra.mxu0 %v1064
  %v1135 = vpop.f32.mrf.mxu0
  %v1136 = vadd.f32 0.0, %v1135
  %v1137 = vpop.f32.mrf.mxu0
  %v1138 = vadd.f32 0.0, %v1137
  %1139 = vdwg.mxu0
  %1140 = vmatprep.subr.mxu0 0.0
  %1141 = vmatpush1.msra.mxu0 %v404
  %1142 = vmatprep.subr.mxu0 0.0
  %1143 = vmatpush1.msra.mxu0 %v401
  %1144 = vmatprep.subr.mxu0 0.0
  %1145 = vmatpush1.msra.mxu0 %v398
  %1146 = vmatprep.subr.mxu0 0.0
  %1147 = vmatpush1.msra.mxu0 %v395
  %1148 = vmatprep.subr.mxu0 0.0
  %1149 = vmatpush1.msra.mxu0 %v392
  %1150 = vmatprep.subr.mxu0 0.0
  %1151 = vmatpush1.msra.mxu0 %v389
  %1152 = vmatprep.subr.mxu0 0.0
  %1153 = vmatpush1.msra.mxu0 %v386
  %1154 = vmatprep.subr.mxu0 0.0
  %1155 = vmatpush1.msra.mxu0 %v383
  %1156 = vmatprep.subr.mxu0 0.0
  %1157 = vmatpush1.msra.mxu0 %v380
  %1158 = vmatprep.subr.mxu0 0.0
  %1159 = vmatpush1.msra.mxu0 %v377
  %1160 = vmatprep.subr.mxu0 0.0
  %1161 = vmatpush1.msra.mxu0 %v374
  %1162 = vmatprep.subr.mxu0 0.0
  %1163 = vmatpush1.msra.mxu0 %v371
  %1164 = vmatprep.subr.mxu0 0.0
  %1165 = vmatpush1.msra.mxu0 %v368
  %1166 = vmatprep.subr.mxu0 0.0
  %1167 = vmatpush1.msra.mxu0 %v365
  %1168 = vmatprep.subr.mxu0 0.0
  %1169 = vmatpush1.msra.mxu0 %v362
  %1170 = vmatprep.subr.mxu0 0.0
  %1171 = vmatpush1.msra.mxu0 %v359
  %1172 = vmatprep.subr.mxu0 0.0
  %1173 = vmatpush2.msra.mxu0 0.0
  %1174 = vmatprep.subr.mxu0 0.0
  %1175 = vmatpush2.msra.mxu0 0.0
  %1176 = vmatprep.subr.mxu0 0.0
  %1177 = vmatpush2.msra.mxu0 0.0
  %1178 = vmatprep.subr.mxu0 0.0
  %1179 = vmatpush2.msra.mxu0 0.0
  %1180 = vmatprep.subr.mxu0 0.0
  %1181 = vmatpush2.msra.mxu0 0.0
  %1182 = vmatprep.subr.mxu0 0.0
  %1183 = vmatpush2.msra.mxu0 0.0
  %1184 = vmatprep.subr.mxu0 0.0
  %1185 = vmatpush2.msra.mxu0 0.0
  %1186 = vmatprep.subr.mxu0 0.0
  %1187 = vmatpush2.msra.mxu0 0.0
  %1188 = vmatprep.subr.mxu0 0.0
  %1189 = vmatpush2.msra.mxu0 0.0
  %1190 = vmatprep.subr.mxu0 0.0
  %1191 = vmatpush2.msra.mxu0 0.0
  %1192 = vmatprep.subr.mxu0 0.0
  %1193 = vmatpush2.msra.mxu0 0.0
  %1194 = vmatprep.subr.mxu0 0.0
  %1195 = vmatpush2.msra.mxu0 0.0
  %1196 = vmatprep.subr.mxu0 0.0
  %1197 = vmatpush2.msra.mxu0 0.0
  %1198 = vmatprep.subr.mxu0 0.0
  %1199 = vmatpush2.msra.mxu0 0.0
  %1200 = vmatprep.subr.mxu0 0.0
  %1201 = vmatpush2.msra.mxu0 0.0
  %1202 = vmatprep.subr.mxu0 0.0
  %1203 = vmatpush2.msra.mxu0 0.0
  %1204 = vmatprep.mubr.f32.mxu0 0.0
  %1205 = vmatmul.mubr.f32.gmra.mxu0 %v1064
  %v1206 = vpop.f32.mrf.mxu0
  %v1207 = vadd.f32 0.0, %v1206
  %v1208 = vpop.f32.mrf.mxu0
  %1209 = vdwg.mxu0
  %v1210 = vadd.f32 %v1066, %v1136
  %v1211 = vxor.u32 %v1210, 2147483648
  %v1212 = vmul.f32 %v1211, 1.442695
  %v1213 = vpow.pop %v1212
  %v1214 = vadd.f32 %v1213, 1.0
  %v1215 = vrcp.pop %v1214
  %v1216 = vmul.f32 1.0, %v1215
  %v1217 = vadd.f32 %v1067, %v1138
  %v1218 = vxor.u32 %v1217, 2147483648
  %v1219 = vmul.f32 %v1218, 1.442695
  %v1220 = vpow.pop %v1219
  %v1221 = vadd.f32 %v1220, 1.0
  %v1222 = vrcp.pop %v1221
  %v1223 = vmul.f32 1.0, %v1222
  %v1224 = vadd.f32 %v1207, %v351
  %v1225 = vmul.f32 %v1216, %v1224
  %v1226 = vadd.f32 %v1068, %v1225
  %v1227 = vtanh.pop %v1226
  %v1228 = vsub.f32 %v1064, %v1227
  %v1229 = vmul.f32 %v1223, %v1228
  %v1230 = vadd.f32 %v1227, %v1229
  %s1231 = scalar_lea.vmem [#allocation3], 120
  %v1232 = vld [vmem:[%s1231] sm:$0xff]
  %v1233 = vld [vmem:[%s1231 + $0x8] sm:$0xff]
  %v1234 = vld [vmem:[%s1231 + $0x10] sm:$0xff]
  %1235 = vmatprep.subr.mxu0 %v403
  %1236 = vmatpush1.msra.mxu0 %v402
  %1237 = vmatprep.subr.mxu0 %v400
  %1238 = vmatpush1.msra.mxu0 %v399
  %1239 = vmatprep.subr.mxu0 %v397
  %1240 = vmatpush1.msra.mxu0 %v396
  %1241 = vmatprep.subr.mxu0 %v394
  %1242 = vmatpush1.msra.mxu0 %v393
  %1243 = vmatprep.subr.mxu0 %v391
  %1244 = vmatpush1.msra.mxu0 %v390
  %1245 = vmatprep.subr.mxu0 %v388
  %1246 = vmatpush1.msra.mxu0 %v387
  %1247 = vmatprep.subr.mxu0 %v385
  %1248 = vmatpush1.msra.mxu0 %v384
  %1249 = vmatprep.subr.mxu0 %v382
  %1250 = vmatpush1.msra.mxu0 %v381
  %1251 = vmatprep.subr.mxu0 %v379
  %1252 = vmatpush1.msra.mxu0 %v378
  %1253 = vmatprep.subr.mxu0 %v376
  %1254 = vmatpush1.msra.mxu0 %v375
  %1255 = vmatprep.subr.mxu0 %v373
  %1256 = vmatpush1.msra.mxu0 %v372
  %1257 = vmatprep.subr.mxu0 %v370
  %1258 = vmatpush1.msra.mxu0 %v369
  %1259 = vmatprep.subr.mxu0 %v367
  %1260 = vmatpush1.msra.mxu0 %v366
  %1261 = vmatprep.subr.mxu0 %v364
  %1262 = vmatpush1.msra.mxu0 %v363
  %1263 = vmatprep.subr.mxu0 %v361
  %1264 = vmatpush1.msra.mxu0 %v360
  %1265 = vmatprep.subr.mxu0 %v358
  %1266 = vmatpush1.msra.mxu0 %v357
  %1267 = vmatprep.subr.mxu0 0.0
  %1268 = vmatpush2.msra.mxu0 0.0
  %1269 = vmatprep.subr.mxu0 0.0
  %1270 = vmatpush2.msra.mxu0 0.0
  %1271 = vmatprep.subr.mxu0 0.0
  %1272 = vmatpush2.msra.mxu0 0.0
  %1273 = vmatprep.subr.mxu0 0.0
  %1274 = vmatpush2.msra.mxu0 0.0
  %1275 = vmatprep.subr.mxu0 0.0
  %1276 = vmatpush2.msra.mxu0 0.0
  %1277 = vmatprep.subr.mxu0 0.0
  %1278 = vmatpush2.msra.mxu0 0.0
  %1279 = vmatprep.subr.mxu0 0.0
  %1280 = vmatpush2.msra.mxu0 0.0
  %1281 = vmatprep.subr.mxu0 0.0
  %1282 = vmatpush2.msra.mxu0 0.0
  %1283 = vmatprep.subr.mxu0 0.0
  %1284 = vmatpush2.msra.mxu0 0.0
  %1285 = vmatprep.subr.mxu0 0.0
  %1286 = vmatpush2.msra.mxu0 0.0
  %1287 = vmatprep.subr.mxu0 0.0
  %1288 = vmatpush2.msra.mxu0 0.0
  %1289 = vmatprep.subr.mxu0 0.0
  %1290 = vmatpush2.msra.mxu0 0.0
  %1291 = vmatprep.subr.mxu0 0.0
  %1292 = vmatpush2.msra.mxu0 0.0
  %1293 = vmatprep.subr.mxu0 0.0
  %1294 = vmatpush2.msra.mxu0 0.0
  %1295 = vmatprep.subr.mxu0 0.0
  %1296 = vmatpush2.msra.mxu0 0.0
  %1297 = vmatprep.subr.mxu0 0.0
  %1298 = vmatpush2.msra.mxu0 0.0
  %1299 = vmatprep.mubr.f32.mxu0 0.0
  %1300 = vmatmul.mubr.f32.gmra.mxu0 %v1230
  %v1301 = vpop.f32.mrf.mxu0
  %v1302 = vadd.f32 0.0, %v1301
  %v1303 = vpop.f32.mrf.mxu0
  %v1304 = vadd.f32 0.0, %v1303
  %1305 = vdwg.mxu0
  %1306 = vmatprep.subr.mxu0 0.0
  %1307 = vmatpush1.msra.mxu0 %v404
  %1308 = vmatprep.subr.mxu0 0.0
  %1309 = vmatpush1.msra.mxu0 %v401
  %1310 = vmatprep.subr.mxu0 0.0
  %1311 = vmatpush1.msra.mxu0 %v398
  %1312 = vmatprep.subr.mxu0 0.0
  %1313 = vmatpush1.msra.mxu0 %v395
  %1314 = vmatprep.subr.mxu0 0.0
  %1315 = vmatpush1.msra.mxu0 %v392
  %1316 = vmatprep.subr.mxu0 0.0
  %1317 = vmatpush1.msra.mxu0 %v389
  %1318 = vmatprep.subr.mxu0 0.0
  %1319 = vmatpush1.msra.mxu0 %v386
  %1320 = vmatprep.subr.mxu0 0.0
  %1321 = vmatpush1.msra.mxu0 %v383
  %1322 = vmatprep.subr.mxu0 0.0
  %1323 = vmatpush1.msra.mxu0 %v380
  %1324 = vmatprep.subr.mxu0 0.0
  %1325 = vmatpush1.msra.mxu0 %v377
  %1326 = vmatprep.subr.mxu0 0.0
  %1327 = vmatpush1.msra.mxu0 %v374
  %1328 = vmatprep.subr.mxu0 0.0
  %1329 = vmatpush1.msra.mxu0 %v371
  %1330 = vmatprep.subr.mxu0 0.0
  %1331 = vmatpush1.msra.mxu0 %v368
  %1332 = vmatprep.subr.mxu0 0.0
  %1333 = vmatpush1.msra.mxu0 %v365
  %1334 = vmatprep.subr.mxu0 0.0
  %1335 = vmatpush1.msra.mxu0 %v362
  %1336 = vmatprep.subr.mxu0 0.0
  %1337 = vmatpush1.msra.mxu0 %v359
  %1338 = vmatprep.subr.mxu0 0.0
  %1339 = vmatpush2.msra.mxu0 0.0
  %1340 = vmatprep.subr.mxu0 0.0
  %1341 = vmatpush2.msra.mxu0 0.0
  %1342 = vmatprep.subr.mxu0 0.0
  %1343 = vmatpush2.msra.mxu0 0.0
  %1344 = vmatprep.subr.mxu0 0.0
  %1345 = vmatpush2.msra.mxu0 0.0
  %1346 = vmatprep.subr.mxu0 0.0
  %1347 = vmatpush2.msra.mxu0 0.0
  %1348 = vmatprep.subr.mxu0 0.0
  %1349 = vmatpush2.msra.mxu0 0.0
  %1350 = vmatprep.subr.mxu0 0.0
  %1351 = vmatpush2.msra.mxu0 0.0
  %1352 = vmatprep.subr.mxu0 0.0
  %1353 = vmatpush2.msra.mxu0 0.0
  %1354 = vmatprep.subr.mxu0 0.0
  %1355 = vmatpush2.msra.mxu0 0.0
  %1356 = vmatprep.subr.mxu0 0.0
  %1357 = vmatpush2.msra.mxu0 0.0
  %1358 = vmatprep.subr.mxu0 0.0
  %1359 = vmatpush2.msra.mxu0 0.0
  %1360 = vmatprep.subr.mxu0 0.0
  %1361 = vmatpush2.msra.mxu0 0.0
  %1362 = vmatprep.subr.mxu0 0.0
  %1363 = vmatpush2.msra.mxu0 0.0
  %1364 = vmatprep.subr.mxu0 0.0
  %1365 = vmatpush2.msra.mxu0 0.0
  %1366 = vmatprep.subr.mxu0 0.0
  %1367 = vmatpush2.msra.mxu0 0.0
  %1368 = vmatprep.subr.mxu0 0.0
  %1369 = vmatpush2.msra.mxu0 0.0
  %1370 = vmatprep.mubr.f32.mxu0 0.0
  %1371 = vmatmul.mubr.f32.gmra.mxu0 %v1230
  %v1372 = vpop.f32.mrf.mxu0
  %v1373 = vadd.f32 0.0, %v1372
  %v1374 = vpop.f32.mrf.mxu0
  %1375 = vdwg.mxu0
  %v1376 = vadd.f32 %v1232, %v1302
  %v1377 = vxor.u32 %v1376, 2147483648
  %v1378 = vmul.f32 %v1377, 1.442695
  %v1379 = vpow.pop %v1378
  %v1380 = vadd.f32 %v1379, 1.0
  %v1381 = vrcp.pop %v1380
  %v1382 = vmul.f32 1.0, %v1381
  %v1383 = vadd.f32 %v1233, %v1304
  %v1384 = vxor.u32 %v1383, 2147483648
  %v1385 = vmul.f32 %v1384, 1.442695
  %v1386 = vpow.pop %v1385
  %v1387 = vadd.f32 %v1386, 1.0
  %v1388 = vrcp.pop %v1387
  %v1389 = vmul.f32 1.0, %v1388
  %v1390 = vadd.f32 %v1373, %v351
  %v1391 = vmul.f32 %v1382, %v1390
  %v1392 = vadd.f32 %v1234, %v1391
  %v1393 = vtanh.pop %v1392
  %v1394 = vsub.f32 %v1230, %v1393
  %v1395 = vmul.f32 %v1389, %v1394
  %v1396 = vadd.f32 %v1393, %v1395
  %s1397 = scalar_lea.vmem [#allocation3], 144
  %v1398 = vld [vmem:[%s1397] sm:$0xff]
  %v1399 = vld [vmem:[%s1397 + $0x8] sm:$0xff]
  %v1400 = vld [vmem:[%s1397 + $0x10] sm:$0xff]
  %1401 = vmatprep.subr.mxu0 %v403
  %1402 = vmatpush1.msra.mxu0 %v402
  %1403 = vmatprep.subr.mxu0 %v400
  %1404 = vmatpush1.msra.mxu0 %v399
  %1405 = vmatprep.subr.mxu0 %v397
  %1406 = vmatpush1.msra.mxu0 %v396
  %1407 = vmatprep.subr.mxu0 %v394
  %1408 = vmatpush1.msra.mxu0 %v393
  %1409 = vmatprep.subr.mxu0 %v391
  %1410 = vmatpush1.msra.mxu0 %v390
  %1411 = vmatprep.subr.mxu0 %v388
  %1412 = vmatpush1.msra.mxu0 %v387
  %1413 = vmatprep.subr.mxu0 %v385
  %1414 = vmatpush1.msra.mxu0 %v384
  %1415 = vmatprep.subr.mxu0 %v382
  %1416 = vmatpush1.msra.mxu0 %v381
  %1417 = vmatprep.subr.mxu0 %v379
  %1418 = vmatpush1.msra.mxu0 %v378
  %1419 = vmatprep.subr.mxu0 %v376
  %1420 = vmatpush1.msra.mxu0 %v375
  %1421 = vmatprep.subr.mxu0 %v373
  %1422 = vmatpush1.msra.mxu0 %v372
  %1423 = vmatprep.subr.mxu0 %v370
  %1424 = vmatpush1.msra.mxu0 %v369
  %1425 = vmatprep.subr.mxu0 %v367
  %1426 = vmatpush1.msra.mxu0 %v366
  %1427 = vmatprep.subr.mxu0 %v364
  %1428 = vmatpush1.msra.mxu0 %v363
  %1429 = vmatprep.subr.mxu0 %v361
  %1430 = vmatpush1.msra.mxu0 %v360
  %1431 = vmatprep.subr.mxu0 %v358
  %1432 = vmatpush1.msra.mxu0 %v357
  %1433 = vmatprep.subr.mxu0 0.0
  %1434 = vmatpush2.msra.mxu0 0.0
  %1435 = vmatprep.subr.mxu0 0.0
  %1436 = vmatpush2.msra.mxu0 0.0
  %1437 = vmatprep.subr.mxu0 0.0
  %1438 = vmatpush2.msra.mxu0 0.0
  %1439 = vmatprep.subr.mxu0 0.0
  %1440 = vmatpush2.msra.mxu0 0.0
  %1441 = vmatprep.subr.mxu0 0.0
  %1442 = vmatpush2.msra.mxu0 0.0
  %1443 = vmatprep.subr.mxu0 0.0
  %1444 = vmatpush2.msra.mxu0 0.0
  %1445 = vmatprep.subr.mxu0 0.0
  %1446 = vmatpush2.msra.mxu0 0.0
  %1447 = vmatprep.subr.mxu0 0.0
  %1448 = vmatpush2.msra.mxu0 0.0
  %1449 = vmatprep.subr.mxu0 0.0
  %1450 = vmatpush2.msra.mxu0 0.0
  %1451 = vmatprep.subr.mxu0 0.0
  %1452 = vmatpush2.msra.mxu0 0.0
  %1453 = vmatprep.subr.mxu0 0.0
  %1454 = vmatpush2.msra.mxu0 0.0
  %1455 = vmatprep.subr.mxu0 0.0
  %1456 = vmatpush2.msra.mxu0 0.0
  %1457 = vmatprep.subr.mxu0 0.0
  %1458 = vmatpush2.msra.mxu0 0.0
  %1459 = vmatprep.subr.mxu0 0.0
  %1460 = vmatpush2.msra.mxu0 0.0
  %1461 = vmatprep.subr.mxu0 0.0
  %1462 = vmatpush2.msra.mxu0 0.0
  %1463 = vmatprep.subr.mxu0 0.0
  %1464 = vmatpush2.msra.mxu0 0.0
  %1465 = vmatprep.mubr.f32.mxu0 0.0
  %1466 = vmatmul.mubr.f32.gmra.mxu0 %v1396
  %v1467 = vpop.f32.mrf.mxu0
  %v1468 = vadd.f32 0.0, %v1467
  %v1469 = vpop.f32.mrf.mxu0
  %v1470 = vadd.f32 0.0, %v1469
  %1471 = vdwg.mxu0
  %1472 = vmatprep.subr.mxu0 0.0
  %1473 = vmatpush1.msra.mxu0 %v404
  %1474 = vmatprep.subr.mxu0 0.0
  %1475 = vmatpush1.msra.mxu0 %v401
  %1476 = vmatprep.subr.mxu0 0.0
  %1477 = vmatpush1.msra.mxu0 %v398
  %1478 = vmatprep.subr.mxu0 0.0
  %1479 = vmatpush1.msra.mxu0 %v395
  %1480 = vmatprep.subr.mxu0 0.0
  %1481 = vmatpush1.msra.mxu0 %v392
  %1482 = vmatprep.subr.mxu0 0.0
  %1483 = vmatpush1.msra.mxu0 %v389
  %1484 = vmatprep.subr.mxu0 0.0
  %1485 = vmatpush1.msra.mxu0 %v386
  %1486 = vmatprep.subr.mxu0 0.0
  %1487 = vmatpush1.msra.mxu0 %v383
  %1488 = vmatprep.subr.mxu0 0.0
  %1489 = vmatpush1.msra.mxu0 %v380
  %1490 = vmatprep.subr.mxu0 0.0
  %1491 = vmatpush1.msra.mxu0 %v377
  %1492 = vmatprep.subr.mxu0 0.0
  %1493 = vmatpush1.msra.mxu0 %v374
  %1494 = vmatprep.subr.mxu0 0.0
  %1495 = vmatpush1.msra.mxu0 %v371
  %1496 = vmatprep.subr.mxu0 0.0
  %1497 = vmatpush1.msra.mxu0 %v368
  %1498 = vmatprep.subr.mxu0 0.0
  %1499 = vmatpush1.msra.mxu0 %v365
  %1500 = vmatprep.subr.mxu0 0.0
  %1501 = vmatpush1.msra.mxu0 %v362
  %1502 = vmatprep.subr.mxu0 0.0
  %1503 = vmatpush1.msra.mxu0 %v359
  %1504 = vmatprep.subr.mxu0 0.0
  %1505 = vmatpush2.msra.mxu0 0.0
  %1506 = vmatprep.subr.mxu0 0.0
  %1507 = vmatpush2.msra.mxu0 0.0
  %1508 = vmatprep.subr.mxu0 0.0
  %1509 = vmatpush2.msra.mxu0 0.0
  %1510 = vmatprep.subr.mxu0 0.0
  %1511 = vmatpush2.msra.mxu0 0.0
  %1512 = vmatprep.subr.mxu0 0.0
  %1513 = vmatpush2.msra.mxu0 0.0
  %1514 = vmatprep.subr.mxu0 0.0
  %1515 = vmatpush2.msra.mxu0 0.0
  %1516 = vmatprep.subr.mxu0 0.0
  %1517 = vmatpush2.msra.mxu0 0.0
  %1518 = vmatprep.subr.mxu0 0.0
  %1519 = vmatpush2.msra.mxu0 0.0
  %1520 = vmatprep.subr.mxu0 0.0
  %1521 = vmatpush2.msra.mxu0 0.0
  %1522 = vmatprep.subr.mxu0 0.0
  %1523 = vmatpush2.msra.mxu0 0.0
  %1524 = vmatprep.subr.mxu0 0.0
  %1525 = vmatpush2.msra.mxu0 0.0
  %1526 = vmatprep.subr.mxu0 0.0
  %1527 = vmatpush2.msra.mxu0 0.0
  %1528 = vmatprep.subr.mxu0 0.0
  %1529 = vmatpush2.msra.mxu0 0.0
  %1530 = vmatprep.subr.mxu0 0.0
  %1531 = vmatpush2.msra.mxu0 0.0
  %1532 = vmatprep.subr.mxu0 0.0
  %1533 = vmatpush2.msra.mxu0 0.0
  %1534 = vmatprep.subr.mxu0 0.0
  %1535 = vmatpush2.msra.mxu0 0.0
  %1536 = vmatprep.mubr.f32.mxu0 0.0
  %1537 = vmatmul.mubr.f32.gmra.mxu0 %v1396
  %v1538 = vpop.f32.mrf.mxu0
  %v1539 = vadd.f32 0.0, %v1538
  %v1540 = vpop.f32.mrf.mxu0
  %1541 = vdwg.mxu0
  %v1542 = vadd.f32 %v1398, %v1468
  %v1543 = vxor.u32 %v1542, 2147483648
  %v1544 = vmul.f32 %v1543, 1.442695
  %v1545 = vpow.pop %v1544
  %v1546 = vadd.f32 %v1545, 1.0
  %v1547 = vrcp.pop %v1546
  %v1548 = vmul.f32 1.0, %v1547
  %v1549 = vadd.f32 %v1399, %v1470
  %v1550 = vxor.u32 %v1549, 2147483648
  %v1551 = vmul.f32 %v1550, 1.442695
  %v1552 = vpow.pop %v1551
  %v1553 = vadd.f32 %v1552, 1.0
  %v1554 = vrcp.pop %v1553
  %v1555 = vmul.f32 1.0, %v1554
  %v1556 = vadd.f32 %v1539, %v351
  %v1557 = vmul.f32 %v1548, %v1556
  %v1558 = vadd.f32 %v1400, %v1557
  %v1559 = vtanh.pop %v1558
  %v1560 = vsub.f32 %v1396, %v1559
  %v1561 = vmul.f32 %v1555, %v1560
  %v1562 = vadd.f32 %v1559, %v1561
  %s1563 = scalar_lea.vmem [#allocation3], 168
  %v1564 = vld [vmem:[%s1563] sm:$0xff]
  %v1565 = vld [vmem:[%s1563 + $0x8] sm:$0xff]
  %v1566 = vld [vmem:[%s1563 + $0x10] sm:$0xff]
  %1567 = vmatprep.subr.mxu0 %v403
  %1568 = vmatpush1.msra.mxu0 %v402
  %1569 = vmatprep.subr.mxu0 %v400
  %1570 = vmatpush1.msra.mxu0 %v399
  %1571 = vmatprep.subr.mxu0 %v397
  %1572 = vmatpush1.msra.mxu0 %v396
  %1573 = vmatprep.subr.mxu0 %v394
  %1574 = vmatpush1.msra.mxu0 %v393
  %1575 = vmatprep.subr.mxu0 %v391
  %1576 = vmatpush1.msra.mxu0 %v390
  %1577 = vmatprep.subr.mxu0 %v388
  %1578 = vmatpush1.msra.mxu0 %v387
  %1579 = vmatprep.subr.mxu0 %v385
  %1580 = vmatpush1.msra.mxu0 %v384
  %1581 = vmatprep.subr.mxu0 %v382
  %1582 = vmatpush1.msra.mxu0 %v381
  %1583 = vmatprep.subr.mxu0 %v379
  %1584 = vmatpush1.msra.mxu0 %v378
  %1585 = vmatprep.subr.mxu0 %v376
  %1586 = vmatpush1.msra.mxu0 %v375
  %1587 = vmatprep.subr.mxu0 %v373
  %1588 = vmatpush1.msra.mxu0 %v372
  %1589 = vmatprep.subr.mxu0 %v370
  %1590 = vmatpush1.msra.mxu0 %v369
  %1591 = vmatprep.subr.mxu0 %v367
  %1592 = vmatpush1.msra.mxu0 %v366
  %1593 = vmatprep.subr.mxu0 %v364
  %1594 = vmatpush1.msra.mxu0 %v363
  %1595 = vmatprep.subr.mxu0 %v361
  %1596 = vmatpush1.msra.mxu0 %v360
  %1597 = vmatprep.subr.mxu0 %v358
  %1598 = vmatpush1.msra.mxu0 %v357
  %1599 = vmatprep.subr.mxu0 0.0
  %1600 = vmatpush2.msra.mxu0 0.0
  %1601 = vmatprep.subr.mxu0 0.0
  %1602 = vmatpush2.msra.mxu0 0.0
  %1603 = vmatprep.subr.mxu0 0.0
  %1604 = vmatpush2.msra.mxu0 0.0
  %1605 = vmatprep.subr.mxu0 0.0
  %1606 = vmatpush2.msra.mxu0 0.0
  %1607 = vmatprep.subr.mxu0 0.0
  %1608 = vmatpush2.msra.mxu0 0.0
  %1609 = vmatprep.subr.mxu0 0.0
  %1610 = vmatpush2.msra.mxu0 0.0
  %1611 = vmatprep.subr.mxu0 0.0
  %1612 = vmatpush2.msra.mxu0 0.0
  %1613 = vmatprep.subr.mxu0 0.0
  %1614 = vmatpush2.msra.mxu0 0.0
  %1615 = vmatprep.subr.mxu0 0.0
  %1616 = vmatpush2.msra.mxu0 0.0
  %1617 = vmatprep.subr.mxu0 0.0
  %1618 = vmatpush2.msra.mxu0 0.0
  %1619 = vmatprep.subr.mxu0 0.0
  %1620 = vmatpush2.msra.mxu0 0.0
  %1621 = vmatprep.subr.mxu0 0.0
  %1622 = vmatpush2.msra.mxu0 0.0
  %1623 = vmatprep.subr.mxu0 0.0
  %1624 = vmatpush2.msra.mxu0 0.0
  %1625 = vmatprep.subr.mxu0 0.0
  %1626 = vmatpush2.msra.mxu0 0.0
  %1627 = vmatprep.subr.mxu0 0.0
  %1628 = vmatpush2.msra.mxu0 0.0
  %1629 = vmatprep.subr.mxu0 0.0
  %1630 = vmatpush2.msra.mxu0 0.0
  %1631 = vmatprep.mubr.f32.mxu0 0.0
  %1632 = vmatmul.mubr.f32.gmra.mxu0 %v1562
  %v1633 = vpop.f32.mrf.mxu0
  %v1634 = vadd.f32 0.0, %v1633
  %v1635 = vpop.f32.mrf.mxu0
  %v1636 = vadd.f32 0.0, %v1635
  %1637 = vdwg.mxu0
  %1638 = vmatprep.subr.mxu0 0.0
  %1639 = vmatpush1.msra.mxu0 %v404
  %1640 = vmatprep.subr.mxu0 0.0
  %1641 = vmatpush1.msra.mxu0 %v401
  %1642 = vmatprep.subr.mxu0 0.0
  %1643 = vmatpush1.msra.mxu0 %v398
  %1644 = vmatprep.subr.mxu0 0.0
  %1645 = vmatpush1.msra.mxu0 %v395
  %1646 = vmatprep.subr.mxu0 0.0
  %1647 = vmatpush1.msra.mxu0 %v392
  %1648 = vmatprep.subr.mxu0 0.0
  %1649 = vmatpush1.msra.mxu0 %v389
  %1650 = vmatprep.subr.mxu0 0.0
  %1651 = vmatpush1.msra.mxu0 %v386
  %1652 = vmatprep.subr.mxu0 0.0
  %1653 = vmatpush1.msra.mxu0 %v383
  %1654 = vmatprep.subr.mxu0 0.0
  %1655 = vmatpush1.msra.mxu0 %v380
  %1656 = vmatprep.subr.mxu0 0.0
  %1657 = vmatpush1.msra.mxu0 %v377
  %1658 = vmatprep.subr.mxu0 0.0
  %1659 = vmatpush1.msra.mxu0 %v374
  %1660 = vmatprep.subr.mxu0 0.0
  %1661 = vmatpush1.msra.mxu0 %v371
  %1662 = vmatprep.subr.mxu0 0.0
  %1663 = vmatpush1.msra.mxu0 %v368
  %1664 = vmatprep.subr.mxu0 0.0
  %1665 = vmatpush1.msra.mxu0 %v365
  %1666 = vmatprep.subr.mxu0 0.0
  %1667 = vmatpush1.msra.mxu0 %v362
  %1668 = vmatprep.subr.mxu0 0.0
  %1669 = vmatpush1.msra.mxu0 %v359
  %1670 = vmatprep.subr.mxu0 0.0
  %1671 = vmatpush2.msra.mxu0 0.0
  %1672 = vmatprep.subr.mxu0 0.0
  %1673 = vmatpush2.msra.mxu0 0.0
  %1674 = vmatprep.subr.mxu0 0.0
  %1675 = vmatpush2.msra.mxu0 0.0
  %1676 = vmatprep.subr.mxu0 0.0
  %1677 = vmatpush2.msra.mxu0 0.0
  %1678 = vmatprep.subr.mxu0 0.0
  %1679 = vmatpush2.msra.mxu0 0.0
  %1680 = vmatprep.subr.mxu0 0.0
  %1681 = vmatpush2.msra.mxu0 0.0
  %1682 = vmatprep.subr.mxu0 0.0
  %1683 = vmatpush2.msra.mxu0 0.0
  %1684 = vmatprep.subr.mxu0 0.0
  %1685 = vmatpush2.msra.mxu0 0.0
  %1686 = vmatprep.subr.mxu0 0.0
  %1687 = vmatpush2.msra.mxu0 0.0
  %1688 = vmatprep.subr.mxu0 0.0
  %1689 = vmatpush2.msra.mxu0 0.0
  %1690 = vmatprep.subr.mxu0 0.0
  %1691 = vmatpush2.msra.mxu0 0.0
  %1692 = vmatprep.subr.mxu0 0.0
  %1693 = vmatpush2.msra.mxu0 0.0
  %1694 = vmatprep.subr.mxu0 0.0
  %1695 = vmatpush2.msra.mxu0 0.0
  %1696 = vmatprep.subr.mxu0 0.0
  %1697 = vmatpush2.msra.mxu0 0.0
  %1698 = vmatprep.subr.mxu0 0.0
  %1699 = vmatpush2.msra.mxu0 0.0
  %1700 = vmatprep.subr.mxu0 0.0
  %1701 = vmatpush2.msra.mxu0 0.0
  %1702 = vmatprep.mubr.f32.mxu0 0.0
  %1703 = vmatmul.mubr.f32.gmra.mxu0 %v1562
  %v1704 = vpop.f32.mrf.mxu0
  %v1705 = vadd.f32 0.0, %v1704
  %v1706 = vpop.f32.mrf.mxu0
  %1707 = vdwg.mxu0
  %v1708 = vadd.f32 %v1564, %v1634
  %v1709 = vxor.u32 %v1708, 2147483648
  %v1710 = vmul.f32 %v1709, 1.442695
  %v1711 = vpow.pop %v1710
  %v1712 = vadd.f32 %v1711, 1.0
  %v1713 = vrcp.pop %v1712
  %v1714 = vmul.f32 1.0, %v1713
  %v1715 = vadd.f32 %v1565, %v1636
  %v1716 = vxor.u32 %v1715, 2147483648
  %v1717 = vmul.f32 %v1716, 1.442695
  %v1718 = vpow.pop %v1717
  %v1719 = vadd.f32 %v1718, 1.0
  %v1720 = vrcp.pop %v1719
  %v1721 = vmul.f32 1.0, %v1720
  %v1722 = vadd.f32 %v1705, %v351
  %v1723 = vmul.f32 %v1714, %v1722
  %v1724 = vadd.f32 %v1566, %v1723
  %v1725 = vtanh.pop %v1724
  %v1726 = vsub.f32 %v1562, %v1725
  %v1727 = vmul.f32 %v1721, %v1726
  %v1728 = vadd.f32 %v1725, %v1727
  %1729 = vst [vmem:[#allocation2] sm:$0xff] %v1728
  // Predicated region
  $region34: #{gru_forward.3} parent=0 // pred_check
    %p1730 = pneg %p26
  $region35: #{gru_forward.3} parent=0 // pred_check_branch
    %1732 = sbr.rel (%p1730) target = $region37
  $region36: #{gru_forward.3} parent=0 // pred_region
    %v1733 = vld [vmem:[%s5] sm:$0xff]
    %v1734 = vld [vmem:[%s5 + $0x8] sm:$0xff]
    %v1735 = vld [vmem:[%s5 + $0x10] sm:$0xff]
    %v1736 = vld [vmem:[%s5 + $0x18] sm:$0xff]
    %v1737 = vld [vmem:[%s5 + $0x20] sm:$0xff]
    %v1738 = vld [vmem:[%s5 + $0x28] sm:$0xff]
    %v1739 = vld [vmem:[%s5 + $0x30] sm:$0xff]
    %v1740 = vld [vmem:[%s5 + $0x38] sm:$0xff]
    %v1741 = vld [vmem:[%s5 + $0x40] sm:$0xff]
    %v1742 = vld [vmem:[%s5 + $0x48] sm:$0xff]
    %v1743 = vld [vmem:[%s5 + $0x50] sm:$0xff]
    %v1744 = vld [vmem:[%s5 + $0x58] sm:$0xff]
    %v1745 = vld [vmem:[%s5 + $0x60] sm:$0xff]
    %v1746 = vld [vmem:[%s5 + $0x68] sm:$0xff]
    %v1747 = vld [vmem:[%s5 + $0x70] sm:$0xff]
    %v1748 = vld [vmem:[%s5 + $0x78] sm:$0xff]
    %v1749 = vld [vmem:[%s6] sm:$0x1]
    %v1751 = vlaneseq
    %v1752 = vshrl.u32 %v1751, 7
    %v1753 = vsub.s32 0, %v1752
    %v1754 = vrot.slane %v1749, %v1753
    %1756 = vmatprep.subr.mxu0 0.0
    %1757 = vmatpush1.msra.mxu0 %v1748
    %1758 = vmatprep.subr.mxu0 0.0
    %1759 = vmatpush1.msra.mxu0 %v1747
    %1760 = vmatprep.subr.mxu0 0.0
    %1761 = vmatpush1.msra.mxu0 %v1746
    %1762 = vmatprep.subr.mxu0 0.0
    %1763 = vmatpush1.msra.mxu0 %v1745
    %1764 = vmatprep.subr.mxu0 0.0
    %1765 = vmatpush1.msra.mxu0 %v1744
    %1766 = vmatprep.subr.mxu0 0.0
    %1767 = vmatpush1.msra.mxu0 %v1743
    %1768 = vmatprep.subr.mxu0 0.0
    %1769 = vmatpush1.msra.mxu0 %v1742
    %1770 = vmatprep.subr.mxu0 0.0
    %1771 = vmatpush1.msra.mxu0 %v1741
    %1772 = vmatprep.subr.mxu0 0.0
    %1773 = vmatpush1.msra.mxu0 %v1740
    %1774 = vmatprep.subr.mxu0 0.0
    %1775 = vmatpush1.msra.mxu0 %v1739
    %1776 = vmatprep.subr.mxu0 0.0
    %1777 = vmatpush1.msra.mxu0 %v1738
    %1778 = vmatprep.subr.mxu0 0.0
    %1779 = vmatpush1.msra.mxu0 %v1737
    %1780 = vmatprep.subr.mxu0 0.0
    %1781 = vmatpush1.msra.mxu0 %v1736
    %1782 = vmatprep.subr.mxu0 0.0
    %1783 = vmatpush1.msra.mxu0 %v1735
    %1784 = vmatprep.subr.mxu0 0.0
    %1785 = vmatpush1.msra.mxu0 %v1734
    %1786 = vmatprep.subr.mxu0 0.0
    %1787 = vmatpush1.msra.mxu0 %v1733
    %1788 = vmatprep.subr.mxu0 0.0
    %1789 = vmatpush2.msra.mxu0 0.0
    %1790 = vmatprep.subr.mxu0 0.0
    %1791 = vmatpush2.msra.mxu0 0.0
    %1792 = vmatprep.subr.mxu0 0.0
    %1793 = vmatpush2.msra.mxu0 0.0
    %1794 = vmatprep.subr.mxu0 0.0
    %1795 = vmatpush2.msra.mxu0 0.0
    %1796 = vmatprep.subr.mxu0 0.0
    %1797 = vmatpush2.msra.mxu0 0.0
    %1798 = vmatprep.subr.mxu0 0.0
    %1799 = vmatpush2.msra.mxu0 0.0
    %1800 = vmatprep.subr.mxu0 0.0
    %1801 = vmatpush2.msra.mxu0 0.0
    %1802 = vmatprep.subr.mxu0 0.0
    %1803 = vmatpush2.msra.mxu0 0.0
    %1804 = vmatprep.subr.mxu0 0.0
    %1805 = vmatpush2.msra.mxu0 0.0
    %1806 = vmatprep.subr.mxu0 0.0
    %1807 = vmatpush2.msra.mxu0 0.0
    %1808 = vmatprep.subr.mxu0 0.0
    %1809 = vmatpush2.msra.mxu0 0.0
    %1810 = vmatprep.subr.mxu0 0.0
    %1811 = vmatpush2.msra.mxu0 0.0
    %1812 = vmatprep.subr.mxu0 0.0
    %1813 = vmatpush2.msra.mxu0 0.0
    %1814 = vmatprep.subr.mxu0 0.0
    %1815 = vmatpush2.msra.mxu0 0.0
    %1816 = vmatprep.subr.mxu0 0.0
    %1817 = vmatpush2.msra.mxu0 0.0
    %1818 = vmatprep.subr.mxu0 0.0
    %1819 = vmatpush2.msra.mxu0 0.0
    %1820 = vmatprep.mubr.f32.mxu0 0.0
    %1821 = vmatmul.mubr.f32.gmra.mxu0 %v1728
    %v1822 = vpop.f32.mrf.mxu0
    %v1823 = vadd.f32 %v1754, %v1822
    %v1824 = vpop.f32.mrf.mxu0
    %1825 = vdwg.mxu0
    %vm1826 = vcmask 31744
    %1827 = vst.msk [vmem:[%s7] sm:$0xff] %vm1826, %v1823
  $region37: #{gru_forward.3} parent=0 // pred_fallthru
    _
  // Predicated region
  $region38: #{gru_forward.3} parent=0 // pred_check
    _
  $region39: #{gru_forward.3} parent=0 // pred_check_branch
    %1829 = sbr.rel (0) target = $region41
  $region40: #{gru_forward.3} parent=0 // pred_region
    _
  $region41: #{gru_forward.3} parent=0 // pred_fallthru
    _
  // Predicated region
  $region42: #{gru_forward.3} parent=0 // pred_check
    _
  $region43: #{gru_forward.3} parent=0 // pred_check_branch
    %1831 = sbr.rel (0) target = $region45
  $region44: #{gru_forward.3} parent=0 // pred_region
    _
  $region45: #{gru_forward.3} parent=0 // pred_fallthru
    _

</llo_original>
